<compile_context>
chip_gen: v7x
topology: tpu7x:2x2x1
jax: 0.10.0
libtpu: 0.0.40
codegen_flags: <defaults>
</compile_context>

<pallas_src>
import functools

import jax
import jax.numpy as jnp
import numpy as np
from jax import lax
from jax.experimental import pallas as pl
from jax.experimental.pallas import tpu as pltpu


# -----------------------------------------------------------------------------
# Stage 1: conv1/bn1/tanh -> conv2/bn2/tanh -> conv3/bn3 (pre-activation) ->
# running max over points.  Channels-major throughout: acts are (C, TILE_N).
# -----------------------------------------------------------------------------
def _feat_kernel(x_ref, w1_ref, b1_ref, w2_ref, b2_ref, w3_ref, b3_ref,
                 gmax_ref, *, n_points, tile_n, ragged):
    t = pl.program_id(1)

    @pl.when(t == 0)
    def _init():
        gmax_ref[...] = jnp.full(gmax_ref.shape, -jnp.inf, dtype=gmax_ref.dtype)

    x = x_ref[...]                                            # (k, TILE_N) bf16

    h = jnp.dot(w1_ref[...], x, preferred_element_type=jnp.float32)
    h = jnp.tanh(h + b1_ref[...])                             # (64, TILE_N) f32

    h = jnp.dot(w2_ref[...], h.astype(jnp.bfloat16),
                preferred_element_type=jnp.float32)
    h = jnp.tanh(h + b2_ref[...])                             # (128, TILE_N) f32

    h = jnp.dot(w3_ref[...], h.astype(jnp.bfloat16),
                preferred_element_type=jnp.float32)
    h = h + b3_ref[...]                                       # (1024, TILE_N)
    # NOTE: no tanh here.  max(tanh(x)) == tanh(max(x)); the single tanh is
    # applied on the (B, 1024) pooled vector in the stage-2 head kernel.

    if ragged:
        # Mask padded point columns of the boundary tile with -inf before the
        # max (padded block contents are unspecified; -inf, NOT 0, is correct).
        col = t * tile_n + lax.broadcasted_iota(jnp.int32, h.shape, 1)
        h = jnp.where(col < n_points, h, -jnp.inf)

    # Running max over point tiles: last-axis (lane) reduce into the resident
    # (1024, 1) accumulator; only this tiny block stays live across tiles.
    gmax_ref[...] = jnp.maximum(gmax_ref[...],
                                jnp.max(h, axis=1, keepdims=True))


# -----------------------------------------------------------------------------
# Stage 2: tanh(pooled) -> fc1/tanh -> fc2/tanh -> fc3 + flattened identity,
# batched over B (three dense matmuls total, not per-batch matvecs).
# -----------------------------------------------------------------------------
def _head_kernel(g_ref, w4_ref, b4_ref, w5_ref, b5_ref, w6_ref, b6_ref,
                 iden_ref, out_ref):
    g = jnp.tanh(g_ref[...])                                  # relocated bn3 tanh
    f = jnp.dot(g.astype(jnp.bfloat16), w4_ref[...],
                preferred_element_type=jnp.float32)
    f = jnp.tanh(f + b4_ref[...])                             # (B, 512)
    f = jnp.dot(f.astype(jnp.bfloat16), w5_ref[...],
                preferred_element_type=jnp.float32)
    f = jnp.tanh(f + b5_ref[...])                             # (B, 256)
    out = jnp.dot(f.astype(jnp.bfloat16), w6_ref[...],
                  preferred_element_type=jnp.float32)
    out_ref[...] = out + b6_ref[...] + iden_ref[...]          # (B, kk_pad)


def _const_spec(shape):
    """Full-array block whose index is grid-invariant (loaded once, reused)."""
    nd = len(shape)
    return pl.BlockSpec(shape, lambda *_, _nd=nd: (0,) * _nd)


def stnkd_forward(x_nck, params, k, *, tile_n=512):
    """x_nck: (B, k, N) float32, PyTorch Conv1d layout.  Returns (B, k, k).

    tile_n: point-tile size.  512 suits the 256-wide MXUs (v6e/v7x); use 256
    on v5e.  It is clamped to the (128-rounded) problem size automatically.
    """
    B, C, N = x_nck.shape
    assert C == k
    (w1, b1, w2, b2, w3, b3, w4, b4, w5, b5, w6, b6) = params

    # ---- glue: lane-aligned tile size, bf16 casts, channels-major weights ----
    tn = max(128, (int(tile_n) // 128) * 128)
    tn = min(tn, ((N + 127) // 128) * 128)      # never exceed the rounded-up N
    n_tiles = pl.cdiv(N, tn)
    ragged = (N % tn) != 0                      # boundary tile needs masking

    bf16 = lambda a: a.astype(jnp.bfloat16)
    x = bf16(x_nck)                              # halves streamed x DMA
    w1t, w2t, w3t = bf16(w1.T), bf16(w2.T), bf16(w3.T)       # (C_out, C_in)
    b1c = b1.reshape(-1, 1).astype(jnp.float32)              # (C_out, 1)
    b2c = b2.reshape(-1, 1).astype(jnp.float32)
    b3c = b3.reshape(-1, 1).astype(jnp.float32)
    w4b, w5b, w6b = bf16(w4), bf16(w5), bf16(w6)

    # Pad the k*k output width up to a lane-dense multiple of 128.
    kk = k * k
    kkp = ((kk + 127) // 128) * 128
    w6p = jnp.pad(w6b, ((0, 0), (0, kkp - kk)))
    b6p = jnp.pad(b6.astype(jnp.float32), ((0, 0), (0, kkp - kk)))
    iden = jnp.pad(jnp.eye(k, dtype=jnp.float32).reshape(1, kk),
                   ((0, 0), (0, kkp - kk)))

    # ---- stage 1: per-point conv stack + global max -> (B, 1024, 1) ----
    feat = functools.partial(_feat_kernel, n_points=N, tile_n=tn, ragged=ragged)
    gmax = pl.pallas_call(
        feat,
        out_shape=jax.ShapeDtypeStruct((B, 1024, 1), jnp.float32),
        grid=(B, n_tiles),
        in_specs=[
            pl.BlockSpec((None, C, tn), lambda b, t: (b, 0, t)),   # x tile
            _const_spec(w1t.shape), _const_spec(b1c.shape),
            _const_spec(w2t.shape), _const_spec(b2c.shape),
            _const_spec(w3t.shape), _const_spec(b3c.shape),
        ],
        out_specs=pl.BlockSpec((None, 1024, 1), lambda b, t: (b, 0, 0)),
        compiler_params=pltpu.CompilerParams(
            dimension_semantics=("parallel", "arbitrary"),
            vmem_limit_bytes=32 * 1024 * 1024),
    )(x, w1t, b1c, w2t, b2c, w3t, b3c)

    # ---- stage 2: batched FC head, M = B ----
    # TODO(synk): for very large B (>~1024), tile the B axis instead of one
    # full-array block so stage-2 VMEM stays constant (small-B STN use keeps
    # this well under the scoped limit).
    g = gmax.reshape(B, 1024)
    out = pl.pallas_call(
        _head_kernel,
        out_shape=jax.ShapeDtypeStruct((B, kkp), jnp.float32),
        grid=(1,),
        in_specs=[
            _const_spec((B, 1024)),
            _const_spec(w4b.shape), _const_spec(b4.shape),
            _const_spec(w5b.shape), _const_spec(b5.shape),
            _const_spec(w6p.shape), _const_spec(b6p.shape),
            _const_spec(iden.shape),
        ],
        out_specs=_const_spec((B, kkp)),
        compiler_params=pltpu.CompilerParams(
            dimension_semantics=("arbitrary",),
            vmem_limit_bytes=32 * 1024 * 1024),
    )(g, w4b, b4, w5b, b5, w6p, b6p, iden)

    return out[:, :kk].reshape(B, k, k)


def make_params(key, k):
    """Deterministic synthetic params.  BatchNorm1d (inference-mode running
    stats) for bn1-bn3 is folded into each conv's matmul weight/bias.
    bn4/bn5 exist in __init__ but are not applied in the spec's forward."""
    eps = 1e-5
    ks = jax.random.split(key, 32)
    ki = iter(range(32))

    def rnd(shape, scale=0.1):
        return (scale * jax.random.normal(ks[next(ki)], shape)).astype(jnp.float32)

    def conv_bn(cin, cout):
        w = rnd((cin, cout))                 # 1x1 Conv1d == (Cin, Cout) matmul
        b = rnd((1, cout))
        gamma = 1.0 + rnd((1, cout))
        beta = rnd((1, cout))
        mean = rnd((1, cout))
        var = jnp.abs(rnd((1, cout))) + 1.0
        scale = gamma / jnp.sqrt(var + eps)
        return ((w * scale).astype(jnp.float32),
                ((b - mean) * scale + beta).astype(jnp.float32))

    def linear(cin, cout):
        return rnd((cin, cout)), rnd((1, cout))

    w1, b1 = conv_bn(k, 64)
    w2, b2 = conv_bn(64, 128)
    w3, b3 = conv_bn(128, 1024)
    w4, b4 = linear(1024, 512)
    w5, b5 = linear(512, 256)
    w6, b6 = linear(256, k * k)
    return (w1, b1, w2, b2, w3, b3, w4, b4, w5, b5, w6, b6)


def stnkd_reference(x_nck, params, k):
    """Pure-JAX reference (tanh BEFORE the max, exactly as the PyTorch forward)
    using the same bf16-operand / f32-accumulate matmuls."""
    (w1, b1, w2, b2, w3, b3, w4, b4, w5, b5, w6, b6) = params

    def mm(a, w):
        return jnp.dot(a.astype(jnp.bfloat16), w.astype(jnp.bfloat16),
                       preferred_element_type=jnp.float32)

    x = jnp.transpose(x_nck, (0, 2, 1)).astype(jnp.float32)   # (B, N, k)
    h = jnp.tanh(mm(x, w1) + b1)
    h = jnp.tanh(mm(h, w2) + b2)
    h = jnp.tanh(mm(h, w3) + b3)
    g = jnp.max(h, axis=1)                                    # (B, 1024)
    f = jnp.tanh(mm(g, w4) + b4)
    f = jnp.tanh(mm(f, w5) + b5)
    out = mm(f, w6) + b6 + jnp.eye(k, dtype=jnp.float32).reshape(1, k * k)
    return out.reshape(-1, k, k)


if __name__ == "__main__":
    # Small demo shapes: batch=2, k=16 channels, 256 points.
    B, K, N = 2, 16, 256
    key = jax.random.PRNGKey(0)
    kx, kp = jax.random.split(key)
    x = jax.random.normal(kx, (B, K, N), dtype=jnp.float32)   # PyTorch (B, k, N)
    params = make_params(kp, K)

    fwd = jax.jit(functools.partial(stnkd_forward, k=K))
    out = jax.block_until_ready(fwd(x, params))

    ref = jax.block_until_ready(stnkd_reference(x, params, K))
    assert out.shape == (B, K, K)
    np.testing.assert_allclose(np.asarray(out), np.asarray(ref),
                               rtol=5e-3, atol=5e-3)
    print("KERNEL_OK")
</pallas_src>

<mosaic_0001>
module attributes {stable_mosaic.version = 11 : i64} {
  func.func @_feat_kernel(%arg0: i32, %arg1: i32, %arg2: memref<1x16x256xbf16, #tpu.memory_space<vmem>>, %arg3: memref<64x16xbf16, #tpu.memory_space<vmem>>, %arg4: memref<64x1xf32, #tpu.memory_space<vmem>>, %arg5: memref<128x64xbf16, #tpu.memory_space<vmem>>, %arg6: memref<128x1xf32, #tpu.memory_space<vmem>>, %arg7: memref<1024x128xbf16, #tpu.memory_space<vmem>>, %arg8: memref<1024x1xf32, #tpu.memory_space<vmem>>, %arg9: memref<1x1024x1xf32, #tpu.memory_space<vmem>>) attributes {dimension_semantics = [#tpu.dimension_semantics<parallel>, #tpu.dimension_semantics<arbitrary>], iteration_bounds = array<i64: 2, 1>, scalar_prefetch = 0 : i64, scratch_operands = 0 : i64, tpu.core_type = #tpu.core_type<tc>, window_params = [{transform_indices = @transform_0, window_bounds = array<i64: 1, 16, 256>}, {pipeline_mode = #tpu.pipeline_mode<synchronous>, transform_indices = @transform_1, window_bounds = array<i64: 64, 16>}, {pipeline_mode = #tpu.pipeline_mode<synchronous>, transform_indices = @transform_2, window_bounds = array<i64: 64, 1>}, {pipeline_mode = #tpu.pipeline_mode<synchronous>, transform_indices = @transform_3, window_bounds = array<i64: 128, 64>}, {pipeline_mode = #tpu.pipeline_mode<synchronous>, transform_indices = @transform_4, window_bounds = array<i64: 128, 1>}, {pipeline_mode = #tpu.pipeline_mode<synchronous>, transform_indices = @transform_5, window_bounds = array<i64: 1024, 128>}, {pipeline_mode = #tpu.pipeline_mode<synchronous>, transform_indices = @transform_6, window_bounds = array<i64: 1024, 1>}, {transform_indices = @transform_7, window_bounds = array<i64: 1, 1024, 1>}]} {
    %c0_i32 = arith.constant 0 : i32
    %0 = arith.cmpi eq, %arg1, %c0_i32 : i32
    %1 = arith.extui %0 : i1 to i32
    %c0_i32_0 = arith.constant 0 : i32
    %2 = arith.cmpi ne, %1, %c0_i32_0 : i32
    scf.if %2 {
      %cst_24 = arith.constant 0xFF800000 : f32
      %32 = vector.broadcast %cst_24 : f32 to vector<1024x1xf32>
      %c0_25 = arith.constant 0 : index
      %c0_26 = arith.constant 0 : index
      %c0_27 = arith.constant 0 : index
      %33 = vector.load %arg9[%c0_25, %c0_26, %c0_27] : memref<1x1024x1xf32, #tpu.memory_space<vmem>>, vector<1x1024x1xf32>
      %34 = vector.shape_cast %33 : vector<1x1024x1xf32> to vector<1024x1xf32>
      %35 = vector.shape_cast %32 : vector<1024x1xf32> to vector<1x1024x1xf32>
      tpu.vector_store %arg9[%c0_25, %c0_26, %c0_27], %35 {strides = array<i32>} : memref<1x1024x1xf32, #tpu.memory_space<vmem>>, vector<1x1024x1xf32>,
    } else {
    }
    %c0 = arith.constant 0 : index
    %c0_1 = arith.constant 0 : index
    %c0_2 = arith.constant 0 : index
    %3 = vector.load %arg2[%c0, %c0_1, %c0_2] : memref<1x16x256xbf16, #tpu.memory_space<vmem>>, vector<1x16x256xbf16>
    %4 = vector.shape_cast %3 : vector<1x16x256xbf16> to vector<16x256xbf16>
    %c0_3 = arith.constant 0 : index
    %c0_4 = arith.constant 0 : index
    %5 = vector.load %arg3[%c0_3, %c0_4] : memref<64x16xbf16, #tpu.memory_space<vmem>>, vector<64x16xbf16>
    %cst = arith.constant dense<0.000000e+00> : vector<64x256xf32>
    %6 = tpu.matmul %5, %4, %cst {dimension_numbers = #tpu.dot_dimension_numbers<[1], [0], [0], [1], [0, 0, 1, 1], [], []>} : vector<64x16xbf16>, vector<16x256xbf16>, vector<64x256xf32> -> vector<64x256xf32>
    %c0_5 = arith.constant 0 : index
    %c0_6 = arith.constant 0 : index
    %7 = vector.load %arg4[%c0_5, %c0_6] : memref<64x1xf32, #tpu.memory_space<vmem>>, vector<64x1xf32>
    %8 = vector.broadcast %7 : vector<64x1xf32> to vector<64x256xf32>
    %9 = arith.addf %6, %8 : vector<64x256xf32>
    %10 = math.tanh %9 : vector<64x256xf32>
    %c0_7 = arith.constant 0 : index
    %c0_8 = arith.constant 0 : index
    %11 = vector.load %arg5[%c0_7, %c0_8] : memref<128x64xbf16, #tpu.memory_space<vmem>>, vector<128x64xbf16>
    %12 = arith.truncf %10 : vector<64x256xf32> to vector<64x256xbf16>
    %cst_9 = arith.constant dense<0.000000e+00> : vector<128x256xf32>
    %13 = tpu.matmul %11, %12, %cst_9 {dimension_numbers = #tpu.dot_dimension_numbers<[1], [0], [0], [1], [0, 0, 1, 1], [], []>} : vector<128x64xbf16>, vector<64x256xbf16>, vector<128x256xf32> -> vector<128x256xf32>
    %c0_10 = arith.constant 0 : index
    %c0_11 = arith.constant 0 : index
    %14 = vector.load %arg6[%c0_10, %c0_11] : memref<128x1xf32, #tpu.memory_space<vmem>>, vector<128x1xf32>
    %15 = vector.broadcast %14 : vector<128x1xf32> to vector<128x256xf32>
    %16 = arith.addf %13, %15 : vector<128x256xf32>
    %17 = math.tanh %16 : vector<128x256xf32>
    %c0_12 = arith.constant 0 : index
    %c0_13 = arith.constant 0 : index
    %18 = vector.load %arg7[%c0_12, %c0_13] : memref<1024x128xbf16, #tpu.memory_space<vmem>>, vector<1024x128xbf16>
    %19 = arith.truncf %17 : vector<128x256xf32> to vector<128x256xbf16>
    %cst_14 = arith.constant dense<0.000000e+00> : vector<1024x256xf32>
    %20 = tpu.matmul %18, %19, %cst_14 {dimension_numbers = #tpu.dot_dimension_numbers<[1], [0], [0], [1], [0, 0, 1, 1], [], []>} : vector<1024x128xbf16>, vector<128x256xbf16>, vector<1024x256xf32> -> vector<1024x256xf32>
    %c0_15 = arith.constant 0 : index
    %c0_16 = arith.constant 0 : index
    %21 = vector.load %arg8[%c0_15, %c0_16] : memref<1024x1xf32, #tpu.memory_space<vmem>>, vector<1024x1xf32>
    %22 = vector.broadcast %21 : vector<1024x1xf32> to vector<1024x256xf32>
    %23 = arith.addf %20, %22 : vector<1024x256xf32>
    %c0_17 = arith.constant 0 : index
    %c0_18 = arith.constant 0 : index
    %c0_19 = arith.constant 0 : index
    %24 = vector.load %arg9[%c0_17, %c0_18, %c0_19] : memref<1x1024x1xf32, #tpu.memory_space<vmem>>, vector<1x1024x1xf32>
    %25 = vector.shape_cast %24 : vector<1x1024x1xf32> to vector<1024x1xf32>
    %cst_20 = arith.constant dense<0xFF800000> : vector<1024xf32>
    %26 = vector.multi_reduction <maximumf>, %23, %cst_20 [1] : vector<1024x256xf32> to vector<1024xf32>
    %27 = vector.shape_cast %26 : vector<1024xf32> to vector<1024x1xf32>
    %28 = arith.maximumf %25, %27 : vector<1024x1xf32>
    %c0_21 = arith.constant 0 : index
    %c0_22 = arith.constant 0 : index
    %c0_23 = arith.constant 0 : index
    %29 = vector.load %arg9[%c0_21, %c0_22, %c0_23] : memref<1x1024x1xf32, #tpu.memory_space<vmem>>, vector<1x1024x1xf32>
    %30 = vector.shape_cast %29 : vector<1x1024x1xf32> to vector<1024x1xf32>
    %31 = vector.shape_cast %28 : vector<1024x1xf32> to vector<1x1024x1xf32>
    tpu.vector_store %arg9[%c0_21, %c0_22, %c0_23], %31 {strides = array<i32>} : memref<1x1024x1xf32, #tpu.memory_space<vmem>>, vector<1x1024x1xf32>,
    return
  }
  func.func @transform_0(%arg0: i32, %arg1: i32) -> (i32, i32, i32) {
    %c0_i32 = arith.constant 0 : i32
    %c0_i32_0 = arith.constant 0 : i32
    return %arg0, %c0_i32, %arg1 : i32, i32, i32
  }
  func.func @transform_1(%arg0: i32, %arg1: i32) -> (i32, i32) {
    %c0_i32 = arith.constant 0 : i32
    %c0_i32_0 = arith.constant 0 : i32
    %c0_i32_1 = arith.constant 0 : i32
    return %c0_i32, %c0_i32_0 : i32, i32
  }
  func.func @transform_2(%arg0: i32, %arg1: i32) -> (i32, i32) {
    %c0_i32 = arith.constant 0 : i32
    %c0_i32_0 = arith.constant 0 : i32
    %c0_i32_1 = arith.constant 0 : i32
    return %c0_i32, %c0_i32_0 : i32, i32
  }
  func.func @transform_3(%arg0: i32, %arg1: i32) -> (i32, i32) {
    %c0_i32 = arith.constant 0 : i32
    %c0_i32_0 = arith.constant 0 : i32
    %c0_i32_1 = arith.constant 0 : i32
    return %c0_i32, %c0_i32_0 : i32, i32
  }
  func.func @transform_4(%arg0: i32, %arg1: i32) -> (i32, i32) {
    %c0_i32 = arith.constant 0 : i32
    %c0_i32_0 = arith.constant 0 : i32
    %c0_i32_1 = arith.constant 0 : i32
    return %c0_i32, %c0_i32_0 : i32, i32
  }
  func.func @transform_5(%arg0: i32, %arg1: i32) -> (i32, i32) {
    %c0_i32 = arith.constant 0 : i32
    %c0_i32_0 = arith.constant 0 : i32
    %c0_i32_1 = arith.constant 0 : i32
    return %c0_i32, %c0_i32_0 : i32, i32
  }
  func.func @transform_6(%arg0: i32, %arg1: i32) -> (i32, i32) {
    %c0_i32 = arith.constant 0 : i32
    %c0_i32_0 = arith.constant 0 : i32
    %c0_i32_1 = arith.constant 0 : i32
    return %c0_i32, %c0_i32_0 : i32, i32
  }
  func.func @transform_7(%arg0: i32, %arg1: i32) -> (i32, i32, i32) {
    %c0_i32 = arith.constant 0 : i32
    %c0_i32_0 = arith.constant 0 : i32
    %c0_i32_1 = arith.constant 0 : i32
    return %arg0, %c0_i32, %c0_i32_0 : i32, i32, i32
  }
}

module attributes {stable_mosaic.version = 11 : i64} {
  func.func @_head_kernel(%arg0: i32, %arg1: memref<2x1024xf32, #tpu.memory_space<vmem>>, %arg2: memref<1024x512xbf16, #tpu.memory_space<vmem>>, %arg3: memref<1x512xf32, #tpu.memory_space<vmem>>, %arg4: memref<512x256xbf16, #tpu.memory_space<vmem>>, %arg5: memref<1x256xf32, #tpu.memory_space<vmem>>, %arg6: memref<256x256xbf16, #tpu.memory_space<vmem>>, %arg7: memref<1x256xf32, #tpu.memory_space<vmem>>, %arg8: memref<1x256xf32, #tpu.memory_space<vmem>>, %arg9: memref<2x256xf32, #tpu.memory_space<vmem>>) attributes {dimension_semantics = [#tpu.dimension_semantics<arbitrary>], iteration_bounds = array<i64: 1>, scalar_prefetch = 0 : i64, scratch_operands = 0 : i64, tpu.core_type = #tpu.core_type<tc>, window_params = [{pipeline_mode = #tpu.pipeline_mode<synchronous>, transform_indices = @transform_0, window_bounds = array<i64: 2, 1024>}, {pipeline_mode = #tpu.pipeline_mode<synchronous>, transform_indices = @transform_1, window_bounds = array<i64: 1024, 512>}, {pipeline_mode = #tpu.pipeline_mode<synchronous>, transform_indices = @transform_2, window_bounds = array<i64: 1, 512>}, {pipeline_mode = #tpu.pipeline_mode<synchronous>, transform_indices = @transform_3, window_bounds = array<i64: 512, 256>}, {pipeline_mode = #tpu.pipeline_mode<synchronous>, transform_indices = @transform_4, window_bounds = array<i64: 1, 256>}, {pipeline_mode = #tpu.pipeline_mode<synchronous>, transform_indices = @transform_5, window_bounds = array<i64: 256, 256>}, {pipeline_mode = #tpu.pipeline_mode<synchronous>, transform_indices = @transform_6, window_bounds = array<i64: 1, 256>}, {pipeline_mode = #tpu.pipeline_mode<synchronous>, transform_indices = @transform_7, window_bounds = array<i64: 1, 256>}, {pipeline_mode = #tpu.pipeline_mode<synchronous>, transform_indices = @transform_8, window_bounds = array<i64: 2, 256>}]} {
    %c0 = arith.constant 0 : index
    %c0_0 = arith.constant 0 : index
    %0 = vector.load %arg1[%c0, %c0_0] : memref<2x1024xf32, #tpu.memory_space<vmem>>, vector<2x1024xf32>
    %1 = math.tanh %0 : vector<2x1024xf32>
    %2 = arith.truncf %1 : vector<2x1024xf32> to vector<2x1024xbf16>
    %c0_1 = arith.constant 0 : index
    %c0_2 = arith.constant 0 : index
    %3 = vector.load %arg2[%c0_1, %c0_2] : memref<1024x512xbf16, #tpu.memory_space<vmem>>, vector<1024x512xbf16>
    %cst = arith.constant dense<0.000000e+00> : vector<2x512xf32>
    %4 = tpu.matmul %2, %3, %cst {dimension_numbers = #tpu.dot_dimension_numbers<[1], [0], [0], [1], [0, 0, 1, 1], [], []>} : vector<2x1024xbf16>, vector<1024x512xbf16>, vector<2x512xf32> -> vector<2x512xf32>
    %c0_3 = arith.constant 0 : index
    %c0_4 = arith.constant 0 : index
    %5 = vector.load %arg3[%c0_3, %c0_4] : memref<1x512xf32, #tpu.memory_space<vmem>>, vector<1x512xf32>
    %6 = vector.broadcast %5 : vector<1x512xf32> to vector<2x512xf32>
    %7 = arith.addf %4, %6 : vector<2x512xf32>
    %8 = math.tanh %7 : vector<2x512xf32>
    %9 = arith.truncf %8 : vector<2x512xf32> to vector<2x512xbf16>
    %c0_5 = arith.constant 0 : index
    %c0_6 = arith.constant 0 : index
    %10 = vector.load %arg4[%c0_5, %c0_6] : memref<512x256xbf16, #tpu.memory_space<vmem>>, vector<512x256xbf16>
    %cst_7 = arith.constant dense<0.000000e+00> : vector<2x256xf32>
    %11 = tpu.matmul %9, %10, %cst_7 {dimension_numbers = #tpu.dot_dimension_numbers<[1], [0], [0], [1], [0, 0, 1, 1], [], []>} : vector<2x512xbf16>, vector<512x256xbf16>, vector<2x256xf32> -> vector<2x256xf32>
    %c0_8 = arith.constant 0 : index
    %c0_9 = arith.constant 0 : index
    %12 = vector.load %arg5[%c0_8, %c0_9] : memref<1x256xf32, #tpu.memory_space<vmem>>, vector<1x256xf32>
    %13 = vector.broadcast %12 : vector<1x256xf32> to vector<2x256xf32>
    %14 = arith.addf %11, %13 : vector<2x256xf32>
    %15 = math.tanh %14 : vector<2x256xf32>
    %16 = arith.truncf %15 : vector<2x256xf32> to vector<2x256xbf16>
    %c0_10 = arith.constant 0 : index
    %c0_11 = arith.constant 0 : index
    %17 = vector.load %arg6[%c0_10, %c0_11] : memref<256x256xbf16, #tpu.memory_space<vmem>>, vector<256x256xbf16>
    %cst_12 = arith.constant dense<0.000000e+00> : vector<2x256xf32>
    %18 = tpu.matmul %16, %17, %cst_12 {dimension_numbers = #tpu.dot_dimension_numbers<[1], [0], [0], [1], [0, 0, 1, 1], [], []>} : vector<2x256xbf16>, vector<256x256xbf16>, vector<2x256xf32> -> vector<2x256xf32>
    %c0_13 = arith.constant 0 : index
    %c0_14 = arith.constant 0 : index
    %19 = vector.load %arg7[%c0_13, %c0_14] : memref<1x256xf32, #tpu.memory_space<vmem>>, vector<1x256xf32>
    %20 = vector.broadcast %19 : vector<1x256xf32> to vector<2x256xf32>
    %21 = arith.addf %18, %20 : vector<2x256xf32>
    %c0_15 = arith.constant 0 : index
    %c0_16 = arith.constant 0 : index
    %22 = vector.load %arg8[%c0_15, %c0_16] : memref<1x256xf32, #tpu.memory_space<vmem>>, vector<1x256xf32>
    %23 = vector.broadcast %22 : vector<1x256xf32> to vector<2x256xf32>
    %24 = arith.addf %21, %23 : vector<2x256xf32>
    %c0_17 = arith.constant 0 : index
    %c0_18 = arith.constant 0 : index
    %25 = vector.load %arg9[%c0_17, %c0_18] : memref<2x256xf32, #tpu.memory_space<vmem>>, vector<2x256xf32>
    tpu.vector_store %arg9[%c0_17, %c0_18], %24 {strides = array<i32>} : memref<2x256xf32, #tpu.memory_space<vmem>>, vector<2x256xf32>,
    return
  }
  func.func @transform_0(%arg0: i32) -> (i32, i32) {
    %c0_i32 = arith.constant 0 : i32
    %c0_i32_0 = arith.constant 0 : i32
    %c0_i32_1 = arith.constant 0 : i32
    return %c0_i32, %c0_i32_0 : i32, i32
  }
  func.func @transform_1(%arg0: i32) -> (i32, i32) {
    %c0_i32 = arith.constant 0 : i32
    %c0_i32_0 = arith.constant 0 : i32
    %c0_i32_1 = arith.constant 0 : i32
    return %c0_i32, %c0_i32_0 : i32, i32
  }
  func.func @transform_2(%arg0: i32) -> (i32, i32) {
    %c0_i32 = arith.constant 0 : i32
    %c0_i32_0 = arith.constant 0 : i32
    %c0_i32_1 = arith.constant 0 : i32
    return %c0_i32, %c0_i32_0 : i32, i32
  }
  func.func @transform_3(%arg0: i32) -> (i32, i32) {
    %c0_i32 = arith.constant 0 : i32
    %c0_i32_0 = arith.constant 0 : i32
    %c0_i32_1 = arith.constant 0 : i32
    return %c0_i32, %c0_i32_0 : i32, i32
  }
  func.func @transform_4(%arg0: i32) -> (i32, i32) {
    %c0_i32 = arith.constant 0 : i32
    %c0_i32_0 = arith.constant 0 : i32
    %c0_i32_1 = arith.constant 0 : i32
    return %c0_i32, %c0_i32_0 : i32, i32
  }
  func.func @transform_5(%arg0: i32) -> (i32, i32) {
    %c0_i32 = arith.constant 0 : i32
    %c0_i32_0 = arith.constant 0 : i32
    %c0_i32_1 = arith.constant 0 : i32
    return %c0_i32, %c0_i32_0 : i32, i32
  }
  func.func @transform_6(%arg0: i32) -> (i32, i32) {
    %c0_i32 = arith.constant 0 : i32
    %c0_i32_0 = arith.constant 0 : i32
    %c0_i32_1 = arith.constant 0 : i32
    return %c0_i32, %c0_i32_0 : i32, i32
  }
  func.func @transform_7(%arg0: i32) -> (i32, i32) {
    %c0_i32 = arith.constant 0 : i32
    %c0_i32_0 = arith.constant 0 : i32
    %c0_i32_1 = arith.constant 0 : i32
    return %c0_i32, %c0_i32_0 : i32, i32
  }
  func.func @transform_8(%arg0: i32) -> (i32, i32) {
    %c0_i32 = arith.constant 0 : i32
    %c0_i32_0 = arith.constant 0 : i32
    %c0_i32_1 = arith.constant 0 : i32
    return %c0_i32, %c0_i32_0 : i32, i32
  }
}

</mosaic_0001>

<llo_original>
// kernel: stnkd_forward.2
$region0: #{stnkd_forward.2}
  #allocation0 [shape = 'u32[]', space=smem, size = 0x4, offset = 0x4, fixed_abs, tag = 'smem constant byte address 0x4 - core index']
  #allocation1 [shape = 'u32[144,128]{1,0:T(1,128)}', space=vmem, size = 0x12000, scoped, tag = 'internal scratch']
  %s0 = inlined_call_operand.vmem [shape: bf16[2,16,256], index: 0, kind: input, shape index: {}]
  %s1 = inlined_call_operand.vmem [shape: bf16[64,16], index: 1, kind: input, shape index: {}]
  %s2 = inlined_call_operand.vmem [shape: f32[64,1], index: 2, kind: input, shape index: {}]
  %s3 = inlined_call_operand.vmem [shape: bf16[128,64], index: 3, kind: input, shape index: {}]
  %s4 = inlined_call_operand.vmem [shape: f32[128,1], index: 4, kind: input, shape index: {}]
  %s5 = inlined_call_operand.vmem [shape: bf16[1024,128], index: 5, kind: input, shape index: {}]
  %s6 = inlined_call_operand.vmem [shape: f32[1024,1], index: 6, kind: input, shape index: {}]
  %s7 = inlined_call_operand.vmem [shape: f32[2,1024,1], index: 7, kind: output, shape index: {}]
  %s8 = sld [smem:[#allocation0]]
  $region65: #{stnkd_forward.2} parent=0
    _
  %s10 = ssub.s32 1, %s8
  %s11 = scalar_select 0, %s10, %s8
  loop: start=0, step=1, limit=4
  $region2: #{stnkd_forward.2} parent=0 // loop_pre_header
    _
  $region3: #{stnkd_forward.2} parent=0 // loop_header
    %s13 = sphi 0, %s17
    %p14 = scmp.ge.s32.totalorder %s13, 4
    %s20 = sphi 0, %s32
    %s21 = sphi 0, %s28
    %s22 = sphi 0, %s20
    %s23 = sphi 0, %s21
    %s24 = sphi 0, %s22
    %s25 = sphi 0, %s23
    %s37 = sphi 0, %s39
    %s40 = sphi 0, %s37
    %s41 = sphi 0, %s40
    %s57 = sphi 0, %s41
    %s61 = sphi 0, %s61
    %s63 = sphi 0, %s61
    %s64 = sphi 0, %s63
    %s78 = sphi 0, %s64
    %s82 = sphi 0, %s82
    %s84 = sphi 0, %s82
    %s85 = sphi 0, %s84
    %s99 = sphi 0, %s85
    %s103 = sphi 0, %s103
    %s105 = sphi 0, %s103
    %s106 = sphi 0, %s105
    %s120 = sphi 0, %s106
    %s124 = sphi 0, %s124
    %s126 = sphi 0, %s124
    %s127 = sphi 0, %s126
    %s141 = sphi 0, %s127
    %s145 = sphi 0, %s145
    %s147 = sphi 0, %s145
    %s148 = sphi 0, %s147
    %s162 = sphi 0, %s148
    %s166 = sphi 0, %s166
    %s168 = sphi 0, %s166
    %s169 = sphi 0, %s168
    %s183 = sphi 0, %s169
    %s189 = sphi 0, %s191
    %s192 = sphi 0, %s189
    %s193 = sphi 0, %s192
    %s209 = sphi 0, %s193
  $region4: #{stnkd_forward.2} parent=0 // loop_header_branch
    %16 = sbr.rel (%p14) target = $region8
  $region5: #{stnkd_forward.2} parent=0 // loop_body
    %s18 = ssub.s32 %s13, 1
    %s19 = ssub.s32 %s13, 2
    %s26 = sadd.s32 1, %s21
    %p27 = scmp.ge.s32.totalorder %s26, 1
    %s28 = scalar_select %p27, 0, %s26
    %s29 = sadd.s32 1, %s20
    %s30 = scalar_select %p27, %s29, %s20
    %p31 = scmp.ge.s32.totalorder %s30, 2
    %s32 = scalar_select %p31, 0, %s30
    %s33 = ssub.s32 %s20, %s32
    %s34 = ssub.s32 %s21, %s28
    %s35 = sor.u32 %s33, %s34
    %p36 = scmp.eq.s32.totalorder %s35, 0
    %s38 = sadd.s32 %s37, 1
    %s39 = scalar_select %p36, %s37, %s38
    %p42 = pneg %p36
    %p43 = scmp.eq.s32.totalorder %s13, 1
    %p44 = por %p42, %p43
    %p45 = scmp.ne.s32.totalorder %s37, %s40
    %p46 = scmp.eq.s32.totalorder %s13, 0
    %p47 = por %p45, %p46
    %p48 = scmp.ne.s32.totalorder %s37, %s40
    %p49 = scmp.eq.s32.totalorder %s18, 1
    %p50 = por %p48, %p49
    %p51 = scmp.ne.s32.totalorder %s40, %s41
    %p52 = scmp.eq.s32.totalorder %s18, 0
    %p53 = por %p51, %p52
    %p54 = scmp.ne.s32.totalorder %s40, %s41
    %p55 = scmp.eq.s32.totalorder %s19, 1
    %p56 = por %p54, %p55
    %p58 = scmp.ne.s32.totalorder %s41, %s57
    %p59 = scmp.eq.s32.totalorder %s19, 0
    %p60 = por %p58, %p59
    %s62 = sadd.s32 %s61, 1
    %p65 = scmp.eq.s32.totalorder %s13, 1
    %p66 = scmp.ne.s32.totalorder %s61, %s63
    %p67 = scmp.eq.s32.totalorder %s13, 0
    %p68 = por %p66, %p67
    %p69 = scmp.ne.s32.totalorder %s61, %s63
    %p70 = scmp.eq.s32.totalorder %s18, 1
    %p71 = por %p69, %p70
    %p72 = scmp.ne.s32.totalorder %s63, %s64
    %p73 = scmp.eq.s32.totalorder %s18, 0
    %p74 = por %p72, %p73
    %p75 = scmp.ne.s32.totalorder %s63, %s64
    %p76 = scmp.eq.s32.totalorder %s19, 1
    %p77 = por %p75, %p76
    %p79 = scmp.ne.s32.totalorder %s64, %s78
    %p80 = scmp.eq.s32.totalorder %s19, 0
    %p81 = por %p79, %p80
    %s83 = sadd.s32 %s82, 1
    %p86 = scmp.eq.s32.totalorder %s13, 1
    %p87 = scmp.ne.s32.totalorder %s82, %s84
    %p88 = scmp.eq.s32.totalorder %s13, 0
    %p89 = por %p87, %p88
    %p90 = scmp.ne.s32.totalorder %s82, %s84
    %p91 = scmp.eq.s32.totalorder %s18, 1
    %p92 = por %p90, %p91
    %p93 = scmp.ne.s32.totalorder %s84, %s85
    %p94 = scmp.eq.s32.totalorder %s18, 0
    %p95 = por %p93, %p94
    %p96 = scmp.ne.s32.totalorder %s84, %s85
    %p97 = scmp.eq.s32.totalorder %s19, 1
    %p98 = por %p96, %p97
    %p100 = scmp.ne.s32.totalorder %s85, %s99
    %p101 = scmp.eq.s32.totalorder %s19, 0
    %p102 = por %p100, %p101
    %s104 = sadd.s32 %s103, 1
    %p107 = scmp.eq.s32.totalorder %s13, 1
    %p108 = scmp.ne.s32.totalorder %s103, %s105
    %p109 = scmp.eq.s32.totalorder %s13, 0
    %p110 = por %p108, %p109
    %p111 = scmp.ne.s32.totalorder %s103, %s105
    %p112 = scmp.eq.s32.totalorder %s18, 1
    %p113 = por %p111, %p112
    %p114 = scmp.ne.s32.totalorder %s105, %s106
    %p115 = scmp.eq.s32.totalorder %s18, 0
    %p116 = por %p114, %p115
    %p117 = scmp.ne.s32.totalorder %s105, %s106
    %p118 = scmp.eq.s32.totalorder %s19, 1
    %p119 = por %p117, %p118
    %p121 = scmp.ne.s32.totalorder %s106, %s120
    %p122 = scmp.eq.s32.totalorder %s19, 0
    %p123 = por %p121, %p122
    %s125 = sadd.s32 %s124, 1
    %p128 = scmp.eq.s32.totalorder %s13, 1
    %p129 = scmp.ne.s32.totalorder %s124, %s126
    %p130 = scmp.eq.s32.totalorder %s13, 0
    %p131 = por %p129, %p130
    %p132 = scmp.ne.s32.totalorder %s124, %s126
    %p133 = scmp.eq.s32.totalorder %s18, 1
    %p134 = por %p132, %p133
    %p135 = scmp.ne.s32.totalorder %s126, %s127
    %p136 = scmp.eq.s32.totalorder %s18, 0
    %p137 = por %p135, %p136
    %p138 = scmp.ne.s32.totalorder %s126, %s127
    %p139 = scmp.eq.s32.totalorder %s19, 1
    %p140 = por %p138, %p139
    %p142 = scmp.ne.s32.totalorder %s127, %s141
    %p143 = scmp.eq.s32.totalorder %s19, 0
    %p144 = por %p142, %p143
    %s146 = sadd.s32 %s145, 1
    %p149 = scmp.eq.s32.totalorder %s13, 1
    %p150 = scmp.ne.s32.totalorder %s145, %s147
    %p151 = scmp.eq.s32.totalorder %s13, 0
    %p152 = por %p150, %p151
    %p153 = scmp.ne.s32.totalorder %s145, %s147
    %p154 = scmp.eq.s32.totalorder %s18, 1
    %p155 = por %p153, %p154
    %p156 = scmp.ne.s32.totalorder %s147, %s148
    %p157 = scmp.eq.s32.totalorder %s18, 0
    %p158 = por %p156, %p157
    %p159 = scmp.ne.s32.totalorder %s147, %s148
    %p160 = scmp.eq.s32.totalorder %s19, 1
    %p161 = por %p159, %p160
    %p163 = scmp.ne.s32.totalorder %s148, %s162
    %p164 = scmp.eq.s32.totalorder %s19, 0
    %p165 = por %p163, %p164
    %s167 = sadd.s32 %s166, 1
    %p170 = scmp.eq.s32.totalorder %s13, 1
    %p171 = scmp.ne.s32.totalorder %s166, %s168
    %p172 = scmp.eq.s32.totalorder %s13, 0
    %p173 = por %p171, %p172
    %p174 = scmp.ne.s32.totalorder %s166, %s168
    %p175 = scmp.eq.s32.totalorder %s18, 1
    %p176 = por %p174, %p175
    %p177 = scmp.ne.s32.totalorder %s168, %s169
    %p178 = scmp.eq.s32.totalorder %s18, 0
    %p179 = por %p177, %p178
    %p180 = scmp.ne.s32.totalorder %s168, %s169
    %p181 = scmp.eq.s32.totalorder %s19, 1
    %p182 = por %p180, %p181
    %p184 = scmp.ne.s32.totalorder %s169, %s183
    %p185 = scmp.eq.s32.totalorder %s19, 0
    %p186 = por %p184, %p185
    %s187 = ssub.s32 %s20, %s32
    %p188 = scmp.eq.s32.totalorder %s187, 0
    %s190 = sadd.s32 %s189, 1
    %s191 = scalar_select %p188, %s189, %s190
    %p194 = pneg %p188
    %p195 = scmp.eq.s32.totalorder %s13, 1
    %p196 = por %p194, %p195
    %p197 = scmp.ne.s32.totalorder %s189, %s192
    %p198 = scmp.eq.s32.totalorder %s13, 0
    %p199 = por %p197, %p198
    %p200 = scmp.ne.s32.totalorder %s189, %s192
    %p201 = scmp.eq.s32.totalorder %s18, 1
    %p202 = por %p200, %p201
    %p203 = scmp.ne.s32.totalorder %s192, %s193
    %p204 = scmp.eq.s32.totalorder %s18, 0
    %p205 = por %p203, %p204
    %p206 = scmp.ne.s32.totalorder %s192, %s193
    %p207 = scmp.eq.s32.totalorder %s19, 1
    %p208 = por %p206, %p207
    %p210 = scmp.ne.s32.totalorder %s193, %s209
    %p211 = scmp.eq.s32.totalorder %s19, 0
    %p212 = por %p210, %p211
    %p213 = scmp.le.s32.totalorder 1, %s13
    %p214 = scmp.lt.s32.totalorder %s13, 3
    %p215 = pnand %p213, %p214
    %p216 = pneg %p215
    // Predicated region
    $region9: #{stnkd_forward.2} parent=5 // pred_check
      _
    $region10: #{stnkd_forward.2} parent=5 // pred_check_branch
      %218 = sbr.rel (%p215) target = $region12
    $region11: #{stnkd_forward.2} parent=5 // pred_region
      %s219 = ssub.s32 %s13, 1
      // Predicated region
      $region13: #{stnkd_forward.2} parent=11 // pred_check
        %p220 = pneg %p74
      $region14: #{stnkd_forward.2} parent=11 // pred_check_branch
        %222 = sbr.rel (%p220) target = $region16
      $region15: #{stnkd_forward.2} parent=11 // pred_region
        _
      $region16: #{stnkd_forward.2} parent=11 // pred_fallthru
        _
      // Predicated region
      $region17: #{stnkd_forward.2} parent=11 // pred_check
        %p223 = pneg %p95
      $region18: #{stnkd_forward.2} parent=11 // pred_check_branch
        %225 = sbr.rel (%p223) target = $region20
      $region19: #{stnkd_forward.2} parent=11 // pred_region
        _
      $region20: #{stnkd_forward.2} parent=11 // pred_fallthru
        _
      // Predicated region
      $region21: #{stnkd_forward.2} parent=11 // pred_check
        %p226 = pneg %p116
      $region22: #{stnkd_forward.2} parent=11 // pred_check_branch
        %228 = sbr.rel (%p226) target = $region24
      $region23: #{stnkd_forward.2} parent=11 // pred_region
        _
      $region24: #{stnkd_forward.2} parent=11 // pred_fallthru
        _
      // Predicated region
      $region25: #{stnkd_forward.2} parent=11 // pred_check
        %p229 = pneg %p137
      $region26: #{stnkd_forward.2} parent=11 // pred_check_branch
        %231 = sbr.rel (%p229) target = $region28
      $region27: #{stnkd_forward.2} parent=11 // pred_region
        _
      $region28: #{stnkd_forward.2} parent=11 // pred_fallthru
        _
      // Predicated region
      $region29: #{stnkd_forward.2} parent=11 // pred_check
        %p232 = pneg %p158
      $region30: #{stnkd_forward.2} parent=11 // pred_check_branch
        %234 = sbr.rel (%p232) target = $region32
      $region31: #{stnkd_forward.2} parent=11 // pred_region
        _
      $region32: #{stnkd_forward.2} parent=11 // pred_fallthru
        _
      // Predicated region
      $region33: #{stnkd_forward.2} parent=11 // pred_check
        %p235 = pneg %p179
      $region34: #{stnkd_forward.2} parent=11 // pred_check_branch
        %237 = sbr.rel (%p235) target = $region36
      $region35: #{stnkd_forward.2} parent=11 // pred_region
        _
      $region36: #{stnkd_forward.2} parent=11 // pred_fallthru
        _
    $region12: #{stnkd_forward.2} parent=5 // pred_fallthru
      _
    %p238 = scmp.lt.s32.totalorder %s13, 2
    // Predicated region
    $region37: #{stnkd_forward.2} parent=5 // pred_check
      %p239 = pneg %p238
    $region38: #{stnkd_forward.2} parent=5 // pred_check_branch
      %241 = sbr.rel (%p239) target = $region40
    $region39: #{stnkd_forward.2} parent=5 // pred_region
      // Predicated region
      $region41: #{stnkd_forward.2} parent=39 // pred_check
        %p242 = pneg %p47
      $region42: #{stnkd_forward.2} parent=39 // pred_check_branch
        %244 = sbr.rel (%p242) target = $region44
      $region43: #{stnkd_forward.2} parent=39 // pred_region
        %s245 = smul.u32 2, %s21
        %p246 = scmp.lt.s32.totalorder %s20, 1
        %s247 = scalar_select %p246, %s20, 1
        %p248 = scmp.lt.s32.totalorder %s245, 1
        %s249 = scalar_select %p248, %s245, 1
        %s250 = smul.addr %s247, 4
        %s251 = sadd.s32 %s249, %s250
        %s252 = smul.addr %s251, 4
        %s253 = scalar_lea.vmem %s0, %s252
        %s254 = smul.u32 2, %s21
      $region44: #{stnkd_forward.2} parent=39 // pred_fallthru
        _
    $region40: #{stnkd_forward.2} parent=5 // pred_fallthru
      _
    %p255 = scmp.le.s32.totalorder 1, %s13
    %p256 = scmp.lt.s32.totalorder %s13, 3
    %p257 = pnand %p255, %p256
    %p258 = pneg %p257
    // Predicated region
    $region45: #{stnkd_forward.2} parent=5 // pred_check
      _
    $region46: #{stnkd_forward.2} parent=5 // pred_check_branch
      %260 = sbr.rel (%p257) target = $region48
    $region47: #{stnkd_forward.2} parent=5 // pred_region
      %s261 = ssub.s32 %s13, 1
      %s262 = smul.u32 2, %s23
      %p263 = scmp.lt.s32.totalorder %s22, 1
      %s264 = scalar_select %p263, %s22, 1
      %p265 = scmp.lt.s32.totalorder %s262, 1
      %s266 = scalar_select %p265, %s262, 1
      %s267 = smul.addr %s264, 4
      %s268 = sadd.s32 %s266, %s267
      %s269 = smul.addr %s268, 4
      %s270 = scalar_lea.vmem %s0, %s269
      %p271 = pneg %p53
      %p272 = pneg %p50
      %p273 = pneg %p74
      %p274 = pneg %p71
      %p275 = pneg %p95
      %p276 = pneg %p92
      %p277 = pneg %p116
      %p278 = pneg %p113
      %p279 = pneg %p137
      %p280 = pneg %p134
      %p281 = pneg %p158
      %p282 = pneg %p155
      %p283 = pneg %p179
      %p284 = pneg %p176
      %p285 = pneg %p205
      %p286 = pneg %p202
      %p287 = scmp.lt.s32.totalorder %s22, 1
      %s288 = scalar_select %p287, %s22, 1
      %s289 = smul.addr %s288, 128
      %s290 = smul.addr %s289, 8
      %s291 = scalar_lea.vmem %s7, %s290
      %s292 = smul.u32 2, %s23
      %p293 = scmp.lt.s32.totalorder %s22, 1
      %s294 = scalar_select %p293, %s22, 1
      %p295 = scmp.lt.s32.totalorder %s292, 1
      %s296 = scalar_select %p295, %s292, 1
      %s297 = smul.addr %s294, 4
      %s298 = sadd.s32 %s296, %s297
      %s299 = smul.addr %s298, 4
      %s300 = scalar_lea.vmem %s0, %s299
      %s301 = smul.u32 2, %s23
      %p302 = scmp.lt.s32.totalorder %s22, 1
      %s303 = scalar_select %p302, %s22, 1
      %s304 = smul.addr %s303, 128
      %s305 = smul.addr %s304, 8
      %s306 = scalar_lea.vmem %s7, %s305
      %p308 = scmp.eq.s32.totalorder %s23, 0
      // Predicated region
      $region49: #{stnkd_forward.2} parent=47 // pred_check
        %p309 = pneg %p308
      $region50: #{stnkd_forward.2} parent=47 // pred_check_branch
        %311 = sbr.rel (%p309) target = $region52
      $region51: #{stnkd_forward.2} parent=47 // pred_region
        %vm312 = vcmask 7168
        %313 = vst.msk [vmem:[%s306] sm:$0xff] %vm312, -inf
        %314 = vst.msk [vmem:[%s306 + $0x8] sm:$0xff] %vm312, -inf
        %315 = vst.msk [vmem:[%s306 + $0x10] sm:$0xff] %vm312, -inf
        %316 = vst.msk [vmem:[%s306 + $0x18] sm:$0xff] %vm312, -inf
        %317 = vst.msk [vmem:[%s306 + $0x20] sm:$0xff] %vm312, -inf
        %318 = vst.msk [vmem:[%s306 + $0x28] sm:$0xff] %vm312, -inf
        %319 = vst.msk [vmem:[%s306 + $0x30] sm:$0xff] %vm312, -inf
        %320 = vst.msk [vmem:[%s306 + $0x38] sm:$0xff] %vm312, -inf
        %321 = vst.msk [vmem:[%s306 + $0x40] sm:$0xff] %vm312, -inf
        %322 = vst.msk [vmem:[%s306 + $0x48] sm:$0xff] %vm312, -inf
        %323 = vst.msk [vmem:[%s306 + $0x50] sm:$0xff] %vm312, -inf
        %324 = vst.msk [vmem:[%s306 + $0x58] sm:$0xff] %vm312, -inf
        %325 = vst.msk [vmem:[%s306 + $0x60] sm:$0xff] %vm312, -inf
        %326 = vst.msk [vmem:[%s306 + $0x68] sm:$0xff] %vm312, -inf
        %327 = vst.msk [vmem:[%s306 + $0x70] sm:$0xff] %vm312, -inf
        %328 = vst.msk [vmem:[%s306 + $0x78] sm:$0xff] %vm312, -inf
        %329 = vst.msk [vmem:[%s306 + $0x80] sm:$0xff] %vm312, -inf
        %330 = vst.msk [vmem:[%s306 + $0x88] sm:$0xff] %vm312, -inf
        %331 = vst.msk [vmem:[%s306 + $0x90] sm:$0xff] %vm312, -inf
        %332 = vst.msk [vmem:[%s306 + $0x98] sm:$0xff] %vm312, -inf
        %333 = vst.msk [vmem:[%s306 + $0xa0] sm:$0xff] %vm312, -inf
        %334 = vst.msk [vmem:[%s306 + $0xa8] sm:$0xff] %vm312, -inf
        %335 = vst.msk [vmem:[%s306 + $0xb0] sm:$0xff] %vm312, -inf
        %336 = vst.msk [vmem:[%s306 + $0xb8] sm:$0xff] %vm312, -inf
        %337 = vst.msk [vmem:[%s306 + $0xc0] sm:$0xff] %vm312, -inf
        %338 = vst.msk [vmem:[%s306 + $0xc8] sm:$0xff] %vm312, -inf
        %339 = vst.msk [vmem:[%s306 + $0xd0] sm:$0xff] %vm312, -inf
        %340 = vst.msk [vmem:[%s306 + $0xd8] sm:$0xff] %vm312, -inf
        %341 = vst.msk [vmem:[%s306 + $0xe0] sm:$0xff] %vm312, -inf
        %342 = vst.msk [vmem:[%s306 + $0xe8] sm:$0xff] %vm312, -inf
        %343 = vst.msk [vmem:[%s306 + $0xf0] sm:$0xff] %vm312, -inf
        %344 = vst.msk [vmem:[%s306 + $0xf8] sm:$0xff] %vm312, -inf
        %345 = vst.msk [vmem:[%s306 + $0x100] sm:$0xff] %vm312, -inf
        %346 = vst.msk [vmem:[%s306 + $0x108] sm:$0xff] %vm312, -inf
        %347 = vst.msk [vmem:[%s306 + $0x110] sm:$0xff] %vm312, -inf
        %348 = vst.msk [vmem:[%s306 + $0x118] sm:$0xff] %vm312, -inf
        %349 = vst.msk [vmem:[%s306 + $0x120] sm:$0xff] %vm312, -inf
        %350 = vst.msk [vmem:[%s306 + $0x128] sm:$0xff] %vm312, -inf
        %351 = vst.msk [vmem:[%s306 + $0x130] sm:$0xff] %vm312, -inf
        %352 = vst.msk [vmem:[%s306 + $0x138] sm:$0xff] %vm312, -inf
        %353 = vst.msk [vmem:[%s306 + $0x140] sm:$0xff] %vm312, -inf
        %354 = vst.msk [vmem:[%s306 + $0x148] sm:$0xff] %vm312, -inf
        %355 = vst.msk [vmem:[%s306 + $0x150] sm:$0xff] %vm312, -inf
        %356 = vst.msk [vmem:[%s306 + $0x158] sm:$0xff] %vm312, -inf
        %357 = vst.msk [vmem:[%s306 + $0x160] sm:$0xff] %vm312, -inf
        %358 = vst.msk [vmem:[%s306 + $0x168] sm:$0xff] %vm312, -inf
        %359 = vst.msk [vmem:[%s306 + $0x170] sm:$0xff] %vm312, -inf
        %360 = vst.msk [vmem:[%s306 + $0x178] sm:$0xff] %vm312, -inf
        %361 = vst.msk [vmem:[%s306 + $0x180] sm:$0xff] %vm312, -inf
        %362 = vst.msk [vmem:[%s306 + $0x188] sm:$0xff] %vm312, -inf
        %363 = vst.msk [vmem:[%s306 + $0x190] sm:$0xff] %vm312, -inf
        %364 = vst.msk [vmem:[%s306 + $0x198] sm:$0xff] %vm312, -inf
        %365 = vst.msk [vmem:[%s306 + $0x1a0] sm:$0xff] %vm312, -inf
        %366 = vst.msk [vmem:[%s306 + $0x1a8] sm:$0xff] %vm312, -inf
        %367 = vst.msk [vmem:[%s306 + $0x1b0] sm:$0xff] %vm312, -inf
        %368 = vst.msk [vmem:[%s306 + $0x1b8] sm:$0xff] %vm312, -inf
        %369 = vst.msk [vmem:[%s306 + $0x1c0] sm:$0xff] %vm312, -inf
        %370 = vst.msk [vmem:[%s306 + $0x1c8] sm:$0xff] %vm312, -inf
        %371 = vst.msk [vmem:[%s306 + $0x1d0] sm:$0xff] %vm312, -inf
        %372 = vst.msk [vmem:[%s306 + $0x1d8] sm:$0xff] %vm312, -inf
        %373 = vst.msk [vmem:[%s306 + $0x1e0] sm:$0xff] %vm312, -inf
        %374 = vst.msk [vmem:[%s306 + $0x1e8] sm:$0xff] %vm312, -inf
        %375 = vst.msk [vmem:[%s306 + $0x1f0] sm:$0xff] %vm312, -inf
        %376 = vst.msk [vmem:[%s306 + $0x1f8] sm:$0xff] %vm312, -inf
        %377 = vst.msk [vmem:[%s306 + $0x200] sm:$0xff] %vm312, -inf
        %378 = vst.msk [vmem:[%s306 + $0x208] sm:$0xff] %vm312, -inf
        %379 = vst.msk [vmem:[%s306 + $0x210] sm:$0xff] %vm312, -inf
        %380 = vst.msk [vmem:[%s306 + $0x218] sm:$0xff] %vm312, -inf
        %381 = vst.msk [vmem:[%s306 + $0x220] sm:$0xff] %vm312, -inf
        %382 = vst.msk [vmem:[%s306 + $0x228] sm:$0xff] %vm312, -inf
        %383 = vst.msk [vmem:[%s306 + $0x230] sm:$0xff] %vm312, -inf
        %384 = vst.msk [vmem:[%s306 + $0x238] sm:$0xff] %vm312, -inf
        %385 = vst.msk [vmem:[%s306 + $0x240] sm:$0xff] %vm312, -inf
        %386 = vst.msk [vmem:[%s306 + $0x248] sm:$0xff] %vm312, -inf
        %387 = vst.msk [vmem:[%s306 + $0x250] sm:$0xff] %vm312, -inf
        %388 = vst.msk [vmem:[%s306 + $0x258] sm:$0xff] %vm312, -inf
        %389 = vst.msk [vmem:[%s306 + $0x260] sm:$0xff] %vm312, -inf
        %390 = vst.msk [vmem:[%s306 + $0x268] sm:$0xff] %vm312, -inf
        %391 = vst.msk [vmem:[%s306 + $0x270] sm:$0xff] %vm312, -inf
        %392 = vst.msk [vmem:[%s306 + $0x278] sm:$0xff] %vm312, -inf
        %393 = vst.msk [vmem:[%s306 + $0x280] sm:$0xff] %vm312, -inf
        %394 = vst.msk [vmem:[%s306 + $0x288] sm:$0xff] %vm312, -inf
        %395 = vst.msk [vmem:[%s306 + $0x290] sm:$0xff] %vm312, -inf
        %396 = vst.msk [vmem:[%s306 + $0x298] sm:$0xff] %vm312, -inf
        %397 = vst.msk [vmem:[%s306 + $0x2a0] sm:$0xff] %vm312, -inf
        %398 = vst.msk [vmem:[%s306 + $0x2a8] sm:$0xff] %vm312, -inf
        %399 = vst.msk [vmem:[%s306 + $0x2b0] sm:$0xff] %vm312, -inf
        %400 = vst.msk [vmem:[%s306 + $0x2b8] sm:$0xff] %vm312, -inf
        %401 = vst.msk [vmem:[%s306 + $0x2c0] sm:$0xff] %vm312, -inf
        %402 = vst.msk [vmem:[%s306 + $0x2c8] sm:$0xff] %vm312, -inf
        %403 = vst.msk [vmem:[%s306 + $0x2d0] sm:$0xff] %vm312, -inf
        %404 = vst.msk [vmem:[%s306 + $0x2d8] sm:$0xff] %vm312, -inf
        %405 = vst.msk [vmem:[%s306 + $0x2e0] sm:$0xff] %vm312, -inf
        %406 = vst.msk [vmem:[%s306 + $0x2e8] sm:$0xff] %vm312, -inf
        %407 = vst.msk [vmem:[%s306 + $0x2f0] sm:$0xff] %vm312, -inf
        %408 = vst.msk [vmem:[%s306 + $0x2f8] sm:$0xff] %vm312, -inf
        %409 = vst.msk [vmem:[%s306 + $0x300] sm:$0xff] %vm312, -inf
        %410 = vst.msk [vmem:[%s306 + $0x308] sm:$0xff] %vm312, -inf
        %411 = vst.msk [vmem:[%s306 + $0x310] sm:$0xff] %vm312, -inf
        %412 = vst.msk [vmem:[%s306 + $0x318] sm:$0xff] %vm312, -inf
        %413 = vst.msk [vmem:[%s306 + $0x320] sm:$0xff] %vm312, -inf
        %414 = vst.msk [vmem:[%s306 + $0x328] sm:$0xff] %vm312, -inf
        %415 = vst.msk [vmem:[%s306 + $0x330] sm:$0xff] %vm312, -inf
        %416 = vst.msk [vmem:[%s306 + $0x338] sm:$0xff] %vm312, -inf
        %417 = vst.msk [vmem:[%s306 + $0x340] sm:$0xff] %vm312, -inf
        %418 = vst.msk [vmem:[%s306 + $0x348] sm:$0xff] %vm312, -inf
        %419 = vst.msk [vmem:[%s306 + $0x350] sm:$0xff] %vm312, -inf
        %420 = vst.msk [vmem:[%s306 + $0x358] sm:$0xff] %vm312, -inf
        %421 = vst.msk [vmem:[%s306 + $0x360] sm:$0xff] %vm312, -inf
        %422 = vst.msk [vmem:[%s306 + $0x368] sm:$0xff] %vm312, -inf
        %423 = vst.msk [vmem:[%s306 + $0x370] sm:$0xff] %vm312, -inf
        %424 = vst.msk [vmem:[%s306 + $0x378] sm:$0xff] %vm312, -inf
        %425 = vst.msk [vmem:[%s306 + $0x380] sm:$0xff] %vm312, -inf
        %426 = vst.msk [vmem:[%s306 + $0x388] sm:$0xff] %vm312, -inf
        %427 = vst.msk [vmem:[%s306 + $0x390] sm:$0xff] %vm312, -inf
        %428 = vst.msk [vmem:[%s306 + $0x398] sm:$0xff] %vm312, -inf
        %429 = vst.msk [vmem:[%s306 + $0x3a0] sm:$0xff] %vm312, -inf
        %430 = vst.msk [vmem:[%s306 + $0x3a8] sm:$0xff] %vm312, -inf
        %431 = vst.msk [vmem:[%s306 + $0x3b0] sm:$0xff] %vm312, -inf
        %432 = vst.msk [vmem:[%s306 + $0x3b8] sm:$0xff] %vm312, -inf
        %433 = vst.msk [vmem:[%s306 + $0x3c0] sm:$0xff] %vm312, -inf
        %434 = vst.msk [vmem:[%s306 + $0x3c8] sm:$0xff] %vm312, -inf
        %435 = vst.msk [vmem:[%s306 + $0x3d0] sm:$0xff] %vm312, -inf
        %436 = vst.msk [vmem:[%s306 + $0x3d8] sm:$0xff] %vm312, -inf
        %437 = vst.msk [vmem:[%s306 + $0x3e0] sm:$0xff] %vm312, -inf
        %438 = vst.msk [vmem:[%s306 + $0x3e8] sm:$0xff] %vm312, -inf
        %439 = vst.msk [vmem:[%s306 + $0x3f0] sm:$0xff] %vm312, -inf
        %440 = vst.msk [vmem:[%s306 + $0x3f8] sm:$0xff] %vm312, -inf
      $region52: #{stnkd_forward.2} parent=47 // pred_fallthru
        _
      %v441 = vld [vmem:[%s300] sm:$0xff]
      %v442 = vld [vmem:[%s300 + $0x8] sm:$0xff]
      %v443 = vld [vmem:[%s1] sm:$0xf]
      %v444 = vld [vmem:[%s1 + $0x4] sm:$0xf]
      %v445 = vld [vmem:[%s1 + $0x8] sm:$0xf]
      %v446 = vld [vmem:[%s1 + $0xc] sm:$0xf]
      %v447 = vld [vmem:[%s1 + $0x10] sm:$0xf]
      %v448 = vld [vmem:[%s1 + $0x14] sm:$0xf]
      %v449 = vld [vmem:[%s1 + $0x18] sm:$0xf]
      %v450 = vld [vmem:[%s1 + $0x1c] sm:$0xf]
      %v451 = vld [vmem:[%s2] sm:$0xff]
      %v452 = vld [vmem:[%s2 + $0x8] sm:$0xff]
      %v453 = vld [vmem:[%s2 + $0x10] sm:$0xff]
      %v454 = vld [vmem:[%s2 + $0x18] sm:$0xff]
      %v455 = vld [vmem:[%s2 + $0x20] sm:$0xff]
      %v456 = vld [vmem:[%s2 + $0x28] sm:$0xff]
      %v457 = vld [vmem:[%s2 + $0x30] sm:$0xff]
      %v458 = vld [vmem:[%s2 + $0x38] sm:$0xff]
      %460 = vset.pattern.permute.xlu0 0
      %461 = vperm.xlu0 %460, %v451
      %v462 = vpop.permute.xlu0 %461
      %465 = vset.pattern.permute.xlu0 0
      %466 = vperm.xlu0 %465, %v452
      %v467 = vpop.permute.xlu0 %466
      %470 = vset.pattern.permute.xlu0 0
      %471 = vperm.xlu0 %470, %v453
      %v472 = vpop.permute.xlu0 %471
      %475 = vset.pattern.permute.xlu0 0
      %476 = vperm.xlu0 %475, %v454
      %v477 = vpop.permute.xlu0 %476
      %480 = vset.pattern.permute.xlu0 0
      %481 = vperm.xlu0 %480, %v455
      %v482 = vpop.permute.xlu0 %481
      %485 = vset.pattern.permute.xlu0 0
      %486 = vperm.xlu0 %485, %v456
      %v487 = vpop.permute.xlu0 %486
      %490 = vset.pattern.permute.xlu0 0
      %491 = vperm.xlu0 %490, %v457
      %v492 = vpop.permute.xlu0 %491
      %495 = vset.pattern.permute.xlu0 0
      %496 = vperm.xlu0 %495, %v458
      %v497 = vpop.permute.xlu0 %496
      %v507 = vunpack.c.l.b16 %v443
      %v508 = vunpack.c.l.b16 %v444
      %v509 = vunpack.c.l.b16 %v445
      %v510 = vunpack.c.l.b16 %v446
      %v511 = vunpack.c.l.b16 %v447
      %v512 = vunpack.c.l.b16 %v448
      %v513 = vunpack.c.l.b16 %v449
      %v514 = vunpack.c.l.b16 %v450
      %v515 = vpack.c.b16 %v508, %v507
      %v516 = vpack.c.b16 %v510, %v509
      %v517 = vpack.c.b16 %v512, %v511
      %v518 = vpack.c.b16 %v514, %v513
      %v521 = vunpack.c.l.b16 %v441
      %v522 = vunpack.c.h.b16 %v441
      %v523 = vunpack.c.l.b16 %v442
      %v524 = vunpack.c.h.b16 %v442
      %v525 = vpack.c.b16 %v523, %v521
      %v526 = vpack.c.b16 %v524, %v522
      %vm529 = vcmask 130048
      %v531 = vsel %vm529, %v515, 0
      %v534 = vsel %vm529, %v516, 0
      %v537 = vsel %vm529, %v517, 0
      %v540 = vsel %vm529, %v518, 0
      %542 = vmatprep.subr.bf16.mxu0 %v526
      %543 = vmatpush1.bf16.msra.mxu0 %v525
      %544 = vmatprep.subr.bf16.mxu0 0
      %545 = vmatpush1.bf16.msra.mxu0 0
      %546 = vmatprep.subr.bf16.mxu0 0
      %547 = vmatpush1.bf16.msra.mxu0 0
      %548 = vmatprep.subr.bf16.mxu0 0
      %549 = vmatpush1.bf16.msra.mxu0 0
      %550 = vmatprep.subr.bf16.mxu0 0
      %551 = vmatpush1.bf16.msra.mxu0 0
      %552 = vmatprep.subr.bf16.mxu0 0
      %553 = vmatpush1.bf16.msra.mxu0 0
      %554 = vmatprep.subr.bf16.mxu0 0
      %555 = vmatpush1.bf16.msra.mxu0 0
      %556 = vmatprep.subr.bf16.mxu0 0
      %557 = vmatpush1.bf16.msra.mxu0 0
      %558 = vmatprep.subr.bf16.mxu0 0
      %559 = vmatpush1.bf16.msra.mxu0 0
      %560 = vmatprep.subr.bf16.mxu0 0
      %561 = vmatpush1.bf16.msra.mxu0 0
      %562 = vmatprep.subr.bf16.mxu0 0
      %563 = vmatpush1.bf16.msra.mxu0 0
      %564 = vmatprep.subr.bf16.mxu0 0
      %565 = vmatpush1.bf16.msra.mxu0 0
      %566 = vmatprep.subr.bf16.mxu0 0
      %567 = vmatpush1.bf16.msra.mxu0 0
      %568 = vmatprep.subr.bf16.mxu0 0
      %569 = vmatpush1.bf16.msra.mxu0 0
      %570 = vmatprep.subr.bf16.mxu0 0
      %571 = vmatpush1.bf16.msra.mxu0 0
      %572 = vmatprep.subr.bf16.mxu0 0
      %573 = vmatpush1.bf16.msra.mxu0 0
      %574 = vmatprep.mubr.bf16.mxu0 0
      %575 = vmatmul.mubr.bf16.gmra.mrb[0].mxu0 %v531
      %v576 = vpop.f32.mrb[0].mxu0
      %v577 = vadd.f32 %v462, %v576
      %v578 = vpop.f32.mrb[0].mxu0
      %v579 = vadd.f32 %v462, %v578
      %v580 = vpop.f32.mrb[0].mxu0
      %v581 = vadd.f32 %v467, %v580
      %v582 = vpop.f32.mrb[0].mxu0
      %v583 = vadd.f32 %v467, %v582
      %584 = vmatprep.mubr.bf16.mxu0 0
      %585 = vmatmul.mubr.bf16.gmra.mrb[0].mxu0 %v534
      %v586 = vpop.f32.mrb[0].mxu0
      %v587 = vadd.f32 %v472, %v586
      %v588 = vpop.f32.mrb[0].mxu0
      %v589 = vadd.f32 %v472, %v588
      %v590 = vpop.f32.mrb[0].mxu0
      %v591 = vadd.f32 %v477, %v590
      %v592 = vpop.f32.mrb[0].mxu0
      %v593 = vadd.f32 %v477, %v592
      %594 = vmatprep.mubr.bf16.mxu0 0
      %595 = vmatmul.mubr.bf16.gmra.mrb[0].mxu0 %v537
      %v596 = vpop.f32.mrb[0].mxu0
      %v597 = vadd.f32 %v482, %v596
      %v598 = vpop.f32.mrb[0].mxu0
      %v599 = vadd.f32 %v482, %v598
      %v600 = vpop.f32.mrb[0].mxu0
      %v601 = vadd.f32 %v487, %v600
      %v602 = vpop.f32.mrb[0].mxu0
      %v603 = vadd.f32 %v487, %v602
      %604 = vmatprep.mubr.bf16.mxu0 0
      %605 = vmatmul.mubr.bf16.gmra.mrb[0].mxu0 %v540
      %v606 = vpop.f32.mrb[0].mxu0
      %v607 = vadd.f32 %v492, %v606
      %v608 = vpop.f32.mrb[0].mxu0
      %v609 = vadd.f32 %v492, %v608
      %v610 = vpop.f32.mrb[0].mxu0
      %v611 = vadd.f32 %v497, %v610
      %v612 = vpop.f32.mrb[0].mxu0
      %v613 = vadd.f32 %v497, %v612
      %614 = vdwg.mxu0
      %v615 = vtanh.pop %v577
      %v616 = vtanh.pop %v579
      %v617 = vtanh.pop %v581
      %v618 = vtanh.pop %v583
      %v619 = vtanh.pop %v587
      %v620 = vtanh.pop %v589
      %v621 = vtanh.pop %v591
      %v622 = vtanh.pop %v593
      %v623 = vtanh.pop %v597
      %v624 = vtanh.pop %v599
      %v625 = vtanh.pop %v601
      %v626 = vtanh.pop %v603
      %v627 = vtanh.pop %v607
      %v628 = vtanh.pop %v609
      %v629 = vtanh.pop %v611
      %v630 = vtanh.pop %v613
      %v631 = vld [vmem:[%s3] sm:$0xf]
      %v632 = vld [vmem:[%s3 + $0x4] sm:$0xf]
      %v633 = vld [vmem:[%s3 + $0x8] sm:$0xf]
      %v634 = vld [vmem:[%s3 + $0xc] sm:$0xf]
      %v635 = vld [vmem:[%s3 + $0x10] sm:$0xf]
      %v636 = vld [vmem:[%s3 + $0x14] sm:$0xf]
      %v637 = vld [vmem:[%s3 + $0x18] sm:$0xf]
      %v638 = vld [vmem:[%s3 + $0x1c] sm:$0xf]
      %v639 = vld [vmem:[%s3 + $0x20] sm:$0xf]
      %v640 = vld [vmem:[%s3 + $0x24] sm:$0xf]
      %v641 = vld [vmem:[%s3 + $0x28] sm:$0xf]
      %v642 = vld [vmem:[%s3 + $0x2c] sm:$0xf]
      %v643 = vld [vmem:[%s3 + $0x30] sm:$0xf]
      %v644 = vld [vmem:[%s3 + $0x34] sm:$0xf]
      %v645 = vld [vmem:[%s3 + $0x38] sm:$0xf]
      %v646 = vld [vmem:[%s3 + $0x3c] sm:$0xf]
      %v647 = vpack.c.bf16 %v617, %v615
      %v648 = vpack.c.bf16 %v618, %v616
      %v649 = vpack.c.bf16 %v621, %v619
      %v650 = vpack.c.bf16 %v622, %v620
      %v651 = vpack.c.bf16 %v625, %v623
      %v652 = vpack.c.bf16 %v626, %v624
      %v653 = vpack.c.bf16 %v629, %v627
      %v654 = vpack.c.bf16 %v630, %v628
      %v655 = vld [vmem:[%s4] sm:$0xff]
      %v656 = vld [vmem:[%s4 + $0x8] sm:$0xff]
      %v657 = vld [vmem:[%s4 + $0x10] sm:$0xff]
      %v658 = vld [vmem:[%s4 + $0x18] sm:$0xff]
      %v659 = vld [vmem:[%s4 + $0x20] sm:$0xff]
      %v660 = vld [vmem:[%s4 + $0x28] sm:$0xff]
      %v661 = vld [vmem:[%s4 + $0x30] sm:$0xff]
      %v662 = vld [vmem:[%s4 + $0x38] sm:$0xff]
      %v663 = vld [vmem:[%s4 + $0x40] sm:$0xff]
      %v664 = vld [vmem:[%s4 + $0x48] sm:$0xff]
      %v665 = vld [vmem:[%s4 + $0x50] sm:$0xff]
      %v666 = vld [vmem:[%s4 + $0x58] sm:$0xff]
      %v667 = vld [vmem:[%s4 + $0x60] sm:$0xff]
      %v668 = vld [vmem:[%s4 + $0x68] sm:$0xff]
      %v669 = vld [vmem:[%s4 + $0x70] sm:$0xff]
      %v670 = vld [vmem:[%s4 + $0x78] sm:$0xff]
      %672 = vset.pattern.permute.xlu0 0
      %673 = vperm.xlu0 %672, %v655
      %v674 = vpop.permute.xlu0 %673
      %677 = vset.pattern.permute.xlu0 0
      %678 = vperm.xlu0 %677, %v656
      %v679 = vpop.permute.xlu0 %678
      %682 = vset.pattern.permute.xlu0 0
      %683 = vperm.xlu0 %682, %v657
      %v684 = vpop.permute.xlu0 %683
      %687 = vset.pattern.permute.xlu0 0
      %688 = vperm.xlu0 %687, %v658
      %v689 = vpop.permute.xlu0 %688
      %692 = vset.pattern.permute.xlu0 0
      %693 = vperm.xlu0 %692, %v659
      %v694 = vpop.permute.xlu0 %693
      %697 = vset.pattern.permute.xlu0 0
      %698 = vperm.xlu0 %697, %v660
      %v699 = vpop.permute.xlu0 %698
      %702 = vset.pattern.permute.xlu0 0
      %703 = vperm.xlu0 %702, %v661
      %v704 = vpop.permute.xlu0 %703
      %707 = vset.pattern.permute.xlu0 0
      %708 = vperm.xlu0 %707, %v662
      %v709 = vpop.permute.xlu0 %708
      %712 = vset.pattern.permute.xlu0 0
      %713 = vperm.xlu0 %712, %v663
      %v714 = vpop.permute.xlu0 %713
      %717 = vset.pattern.permute.xlu0 0
      %718 = vperm.xlu0 %717, %v664
      %v719 = vpop.permute.xlu0 %718
      %722 = vset.pattern.permute.xlu0 0
      %723 = vperm.xlu0 %722, %v665
      %v724 = vpop.permute.xlu0 %723
      %727 = vset.pattern.permute.xlu0 0
      %728 = vperm.xlu0 %727, %v666
      %v729 = vpop.permute.xlu0 %728
      %732 = vset.pattern.permute.xlu0 0
      %733 = vperm.xlu0 %732, %v667
      %v734 = vpop.permute.xlu0 %733
      %737 = vset.pattern.permute.xlu0 0
      %738 = vperm.xlu0 %737, %v668
      %v739 = vpop.permute.xlu0 %738
      %742 = vset.pattern.permute.xlu0 0
      %743 = vperm.xlu0 %742, %v669
      %v744 = vpop.permute.xlu0 %743
      %747 = vset.pattern.permute.xlu0 0
      %748 = vperm.xlu0 %747, %v670
      %v749 = vpop.permute.xlu0 %748
      %v767 = vunpack.c.l.b16 %v631
      %v768 = vunpack.c.l.b16 %v632
      %v769 = vunpack.c.l.b16 %v633
      %v770 = vunpack.c.l.b16 %v634
      %v771 = vunpack.c.l.b16 %v635
      %v772 = vunpack.c.l.b16 %v636
      %v773 = vunpack.c.l.b16 %v637
      %v774 = vunpack.c.l.b16 %v638
      %v775 = vunpack.c.l.b16 %v639
      %v776 = vunpack.c.l.b16 %v640
      %v777 = vunpack.c.l.b16 %v641
      %v778 = vunpack.c.l.b16 %v642
      %v779 = vunpack.c.l.b16 %v643
      %v780 = vunpack.c.l.b16 %v644
      %v781 = vunpack.c.l.b16 %v645
      %v782 = vunpack.c.l.b16 %v646
      %v783 = vpack.c.b16 %v768, %v767
      %v784 = vpack.c.b16 %v770, %v769
      %v785 = vpack.c.b16 %v772, %v771
      %v786 = vpack.c.b16 %v774, %v773
      %v787 = vpack.c.b16 %v776, %v775
      %v788 = vpack.c.b16 %v778, %v777
      %v789 = vpack.c.b16 %v780, %v779
      %v790 = vpack.c.b16 %v782, %v781
      %vm791 = vcmask 523264
      %v793 = vsel %vm791, %v783, 0
      %v796 = vsel %vm791, %v784, 0
      %v799 = vsel %vm791, %v785, 0
      %v802 = vsel %vm791, %v786, 0
      %v805 = vsel %vm791, %v787, 0
      %v808 = vsel %vm791, %v788, 0
      %v811 = vsel %vm791, %v789, 0
      %v814 = vsel %vm791, %v790, 0
      %816 = vmatprep.subr.bf16.mxu0 %v648
      %817 = vmatpush1.bf16.msra.mxu0 %v647
      %818 = vmatprep.subr.bf16.mxu0 %v650
      %819 = vmatpush1.bf16.msra.mxu0 %v649
      %820 = vmatprep.subr.bf16.mxu0 %v652
      %821 = vmatpush1.bf16.msra.mxu0 %v651
      %822 = vmatprep.subr.bf16.mxu0 %v654
      %823 = vmatpush1.bf16.msra.mxu0 %v653
      %824 = vmatprep.subr.bf16.mxu0 0
      %825 = vmatpush1.bf16.msra.mxu0 0
      %826 = vmatprep.subr.bf16.mxu0 0
      %827 = vmatpush1.bf16.msra.mxu0 0
      %828 = vmatprep.subr.bf16.mxu0 0
      %829 = vmatpush1.bf16.msra.mxu0 0
      %830 = vmatprep.subr.bf16.mxu0 0
      %831 = vmatpush1.bf16.msra.mxu0 0
      %832 = vmatprep.subr.bf16.mxu0 0
      %833 = vmatpush1.bf16.msra.mxu0 0
      %834 = vmatprep.subr.bf16.mxu0 0
      %835 = vmatpush1.bf16.msra.mxu0 0
      %836 = vmatprep.subr.bf16.mxu0 0
      %837 = vmatpush1.bf16.msra.mxu0 0
      %838 = vmatprep.subr.bf16.mxu0 0
      %839 = vmatpush1.bf16.msra.mxu0 0
      %840 = vmatprep.subr.bf16.mxu0 0
      %841 = vmatpush1.bf16.msra.mxu0 0
      %842 = vmatprep.subr.bf16.mxu0 0
      %843 = vmatpush1.bf16.msra.mxu0 0
      %844 = vmatprep.subr.bf16.mxu0 0
      %845 = vmatpush1.bf16.msra.mxu0 0
      %846 = vmatprep.subr.bf16.mxu0 0
      %847 = vmatpush1.bf16.msra.mxu0 0
      %848 = vmatprep.mubr.bf16.mxu0 0
      %849 = vmatmul.mubr.bf16.gmra.mrb[0].mxu0 %v793
      %v850 = vpop.f32.mrb[0].mxu0
      %v851 = vadd.f32 %v674, %v850
      %v852 = vpop.f32.mrb[0].mxu0
      %v853 = vadd.f32 %v674, %v852
      %v854 = vpop.f32.mrb[0].mxu0
      %v855 = vadd.f32 %v679, %v854
      %v856 = vpop.f32.mrb[0].mxu0
      %v857 = vadd.f32 %v679, %v856
      %858 = vmatprep.mubr.bf16.mxu0 0
      %859 = vmatmul.mubr.bf16.gmra.mrb[0].mxu0 %v796
      %v860 = vpop.f32.mrb[0].mxu0
      %v861 = vadd.f32 %v684, %v860
      %v862 = vpop.f32.mrb[0].mxu0
      %v863 = vadd.f32 %v684, %v862
      %v864 = vpop.f32.mrb[0].mxu0
      %v865 = vadd.f32 %v689, %v864
      %v866 = vpop.f32.mrb[0].mxu0
      %v867 = vadd.f32 %v689, %v866
      %868 = vmatprep.mubr.bf16.mxu0 0
      %869 = vmatmul.mubr.bf16.gmra.mrb[0].mxu0 %v799
      %v870 = vpop.f32.mrb[0].mxu0
      %v871 = vadd.f32 %v694, %v870
      %v872 = vpop.f32.mrb[0].mxu0
      %v873 = vadd.f32 %v694, %v872
      %v874 = vpop.f32.mrb[0].mxu0
      %v875 = vadd.f32 %v699, %v874
      %v876 = vpop.f32.mrb[0].mxu0
      %v877 = vadd.f32 %v699, %v876
      %878 = vmatprep.mubr.bf16.mxu0 0
      %879 = vmatmul.mubr.bf16.gmra.mrb[0].mxu0 %v802
      %v880 = vpop.f32.mrb[0].mxu0
      %v881 = vadd.f32 %v704, %v880
      %v882 = vpop.f32.mrb[0].mxu0
      %v883 = vadd.f32 %v704, %v882
      %v884 = vpop.f32.mrb[0].mxu0
      %v885 = vadd.f32 %v709, %v884
      %v886 = vpop.f32.mrb[0].mxu0
      %v887 = vadd.f32 %v709, %v886
      %888 = vmatprep.mubr.bf16.mxu0 0
      %889 = vmatmul.mubr.bf16.gmra.mrb[0].mxu0 %v805
      %v890 = vpop.f32.mrb[0].mxu0
      %v891 = vadd.f32 %v714, %v890
      %v892 = vpop.f32.mrb[0].mxu0
      %v893 = vadd.f32 %v714, %v892
      %v894 = vpop.f32.mrb[0].mxu0
      %v895 = vadd.f32 %v719, %v894
      %v896 = vpop.f32.mrb[0].mxu0
      %v897 = vadd.f32 %v719, %v896
      %898 = vmatprep.mubr.bf16.mxu0 0
      %899 = vmatmul.mubr.bf16.gmra.mrb[0].mxu0 %v808
      %v900 = vpop.f32.mrb[0].mxu0
      %v901 = vadd.f32 %v724, %v900
      %v902 = vpop.f32.mrb[0].mxu0
      %v903 = vadd.f32 %v724, %v902
      %v904 = vpop.f32.mrb[0].mxu0
      %v905 = vadd.f32 %v729, %v904
      %v906 = vpop.f32.mrb[0].mxu0
      %v907 = vadd.f32 %v729, %v906
      %908 = vmatprep.mubr.bf16.mxu0 0
      %909 = vmatmul.mubr.bf16.gmra.mrb[0].mxu0 %v811
      %v910 = vpop.f32.mrb[0].mxu0
      %v911 = vadd.f32 %v734, %v910
      %v912 = vpop.f32.mrb[0].mxu0
      %v913 = vadd.f32 %v734, %v912
      %v914 = vpop.f32.mrb[0].mxu0
      %v915 = vadd.f32 %v739, %v914
      %v916 = vpop.f32.mrb[0].mxu0
      %v917 = vadd.f32 %v739, %v916
      %918 = vmatprep.mubr.bf16.mxu0 0
      %919 = vmatmul.mubr.bf16.gmra.mrb[0].mxu0 %v814
      %v920 = vpop.f32.mrb[0].mxu0
      %v921 = vadd.f32 %v744, %v920
      %v922 = vpop.f32.mrb[0].mxu0
      %v923 = vadd.f32 %v744, %v922
      %v924 = vpop.f32.mrb[0].mxu0
      %v925 = vadd.f32 %v749, %v924
      %v926 = vpop.f32.mrb[0].mxu0
      %v927 = vadd.f32 %v749, %v926
      %928 = vdwg.mxu0
      %v929 = vtanh.pop %v851
      %v930 = vtanh.pop %v853
      %v931 = vtanh.pop %v855
      %v932 = vtanh.pop %v857
      %v933 = vtanh.pop %v861
      %v934 = vtanh.pop %v863
      %v935 = vtanh.pop %v865
      %v936 = vtanh.pop %v867
      %v937 = vtanh.pop %v871
      %v938 = vtanh.pop %v873
      %v939 = vtanh.pop %v875
      %v940 = vtanh.pop %v877
      %v941 = vtanh.pop %v881
      %v942 = vtanh.pop %v883
      %v943 = vtanh.pop %v885
      %v944 = vtanh.pop %v887
      %v945 = vtanh.pop %v891
      %v946 = vtanh.pop %v893
      %v947 = vtanh.pop %v895
      %v948 = vtanh.pop %v897
      %v949 = vtanh.pop %v901
      %v950 = vtanh.pop %v903
      %v951 = vtanh.pop %v905
      %v952 = vtanh.pop %v907
      %v953 = vtanh.pop %v911
      %v954 = vtanh.pop %v913
      %v955 = vtanh.pop %v915
      %v956 = vtanh.pop %v917
      %v957 = vtanh.pop %v921
      %v958 = vtanh.pop %v923
      %v959 = vtanh.pop %v925
      %v960 = vtanh.pop %v927
      %v961 = vld [vmem:[%s5] sm:$0xf]
      %v962 = vld [vmem:[%s5 + $0x4] sm:$0xf]
      %v963 = vld [vmem:[%s5 + $0x8] sm:$0xf]
      %v964 = vld [vmem:[%s5 + $0xc] sm:$0xf]
      %v965 = vld [vmem:[%s5 + $0x10] sm:$0xf]
      %v966 = vld [vmem:[%s5 + $0x14] sm:$0xf]
      %v967 = vld [vmem:[%s5 + $0x18] sm:$0xf]
      %v968 = vld [vmem:[%s5 + $0x1c] sm:$0xf]
      %v969 = vld [vmem:[%s5 + $0x20] sm:$0xf]
      %v970 = vld [vmem:[%s5 + $0x24] sm:$0xf]
      %v971 = vld [vmem:[%s5 + $0x28] sm:$0xf]
      %v972 = vld [vmem:[%s5 + $0x2c] sm:$0xf]
      %v973 = vld [vmem:[%s5 + $0x30] sm:$0xf]
      %v974 = vld [vmem:[%s5 + $0x34] sm:$0xf]
      %v975 = vld [vmem:[%s5 + $0x38] sm:$0xf]
      %v976 = vld [vmem:[%s5 + $0x3c] sm:$0xf]
      %v977 = vld [vmem:[%s5 + $0x40] sm:$0xf]
      %v978 = vld [vmem:[%s5 + $0x44] sm:$0xf]
      %v979 = vld [vmem:[%s5 + $0x48] sm:$0xf]
      %v980 = vld [vmem:[%s5 + $0x4c] sm:$0xf]
      %v981 = vld [vmem:[%s5 + $0x50] sm:$0xf]
      %v982 = vld [vmem:[%s5 + $0x54] sm:$0xf]
      %v983 = vld [vmem:[%s5 + $0x58] sm:$0xf]
      %v984 = vld [vmem:[%s5 + $0x5c] sm:$0xf]
      %v985 = vld [vmem:[%s5 + $0x60] sm:$0xf]
      %v986 = vld [vmem:[%s5 + $0x64] sm:$0xf]
      %v987 = vld [vmem:[%s5 + $0x68] sm:$0xf]
      %v988 = vld [vmem:[%s5 + $0x6c] sm:$0xf]
      %v989 = vld [vmem:[%s5 + $0x70] sm:$0xf]
      %v990 = vld [vmem:[%s5 + $0x74] sm:$0xf]
      %v991 = vld [vmem:[%s5 + $0x78] sm:$0xf]
      %v992 = vld [vmem:[%s5 + $0x7c] sm:$0xf]
      %v993 = vld [vmem:[%s5 + $0x80] sm:$0xf]
      %v994 = vld [vmem:[%s5 + $0x84] sm:$0xf]
      %v995 = vld [vmem:[%s5 + $0x88] sm:$0xf]
      %v996 = vld [vmem:[%s5 + $0x8c] sm:$0xf]
      %v997 = vld [vmem:[%s5 + $0x90] sm:$0xf]
      %v998 = vld [vmem:[%s5 + $0x94] sm:$0xf]
      %v999 = vld [vmem:[%s5 + $0x98] sm:$0xf]
      %v1000 = vld [vmem:[%s5 + $0x9c] sm:$0xf]
      %v1001 = vld [vmem:[%s5 + $0xa0] sm:$0xf]
      %v1002 = vld [vmem:[%s5 + $0xa4] sm:$0xf]
      %v1003 = vld [vmem:[%s5 + $0xa8] sm:$0xf]
      %v1004 = vld [vmem:[%s5 + $0xac] sm:$0xf]
      %v1005 = vld [vmem:[%s5 + $0xb0] sm:$0xf]
      %v1006 = vld [vmem:[%s5 + $0xb4] sm:$0xf]
      %v1007 = vld [vmem:[%s5 + $0xb8] sm:$0xf]
      %v1008 = vld [vmem:[%s5 + $0xbc] sm:$0xf]
      %v1009 = vld [vmem:[%s5 + $0xc0] sm:$0xf]
      %v1010 = vld [vmem:[%s5 + $0xc4] sm:$0xf]
      %v1011 = vld [vmem:[%s5 + $0xc8] sm:$0xf]
      %v1012 = vld [vmem:[%s5 + $0xcc] sm:$0xf]
      %v1013 = vld [vmem:[%s5 + $0xd0] sm:$0xf]
      %v1014 = vld [vmem:[%s5 + $0xd4] sm:$0xf]
      %v1015 = vld [vmem:[%s5 + $0xd8] sm:$0xf]
      %v1016 = vld [vmem:[%s5 + $0xdc] sm:$0xf]
      %v1017 = vld [vmem:[%s5 + $0xe0] sm:$0xf]
      %v1018 = vld [vmem:[%s5 + $0xe4] sm:$0xf]
      %v1019 = vld [vmem:[%s5 + $0xe8] sm:$0xf]
      %v1020 = vld [vmem:[%s5 + $0xec] sm:$0xf]
      %v1021 = vld [vmem:[%s5 + $0xf0] sm:$0xf]
      %v1022 = vld [vmem:[%s5 + $0xf4] sm:$0xf]
      %v1023 = vld [vmem:[%s5 + $0xf8] sm:$0xf]
      %v1024 = vld [vmem:[%s5 + $0xfc] sm:$0xf]
      %v1025 = vld [vmem:[%s5 + $0x100] sm:$0xf]
      %v1026 = vld [vmem:[%s5 + $0x104] sm:$0xf]
      %v1027 = vld [vmem:[%s5 + $0x108] sm:$0xf]
      %v1028 = vld [vmem:[%s5 + $0x10c] sm:$0xf]
      %v1029 = vld [vmem:[%s5 + $0x110] sm:$0xf]
      %v1030 = vld [vmem:[%s5 + $0x114] sm:$0xf]
      %v1031 = vld [vmem:[%s5 + $0x118] sm:$0xf]
      %v1032 = vld [vmem:[%s5 + $0x11c] sm:$0xf]
      %v1033 = vld [vmem:[%s5 + $0x120] sm:$0xf]
      %v1034 = vld [vmem:[%s5 + $0x124] sm:$0xf]
      %v1035 = vld [vmem:[%s5 + $0x128] sm:$0xf]
      %v1036 = vld [vmem:[%s5 + $0x12c] sm:$0xf]
      %v1037 = vld [vmem:[%s5 + $0x130] sm:$0xf]
      %v1038 = vld [vmem:[%s5 + $0x134] sm:$0xf]
      %v1039 = vld [vmem:[%s5 + $0x138] sm:$0xf]
      %v1040 = vld [vmem:[%s5 + $0x13c] sm:$0xf]
      %v1041 = vld [vmem:[%s5 + $0x140] sm:$0xf]
      %v1042 = vld [vmem:[%s5 + $0x144] sm:$0xf]
      %v1043 = vld [vmem:[%s5 + $0x148] sm:$0xf]
      %v1044 = vld [vmem:[%s5 + $0x14c] sm:$0xf]
      %v1045 = vld [vmem:[%s5 + $0x150] sm:$0xf]
      %v1046 = vld [vmem:[%s5 + $0x154] sm:$0xf]
      %v1047 = vld [vmem:[%s5 + $0x158] sm:$0xf]
      %v1048 = vld [vmem:[%s5 + $0x15c] sm:$0xf]
      %v1049 = vld [vmem:[%s5 + $0x160] sm:$0xf]
      %v1050 = vld [vmem:[%s5 + $0x164] sm:$0xf]
      %v1051 = vld [vmem:[%s5 + $0x168] sm:$0xf]
      %v1052 = vld [vmem:[%s5 + $0x16c] sm:$0xf]
      %v1053 = vld [vmem:[%s5 + $0x170] sm:$0xf]
      %v1054 = vld [vmem:[%s5 + $0x174] sm:$0xf]
      %v1055 = vld [vmem:[%s5 + $0x178] sm:$0xf]
      %v1056 = vld [vmem:[%s5 + $0x17c] sm:$0xf]
      %v1057 = vld [vmem:[%s5 + $0x180] sm:$0xf]
      %v1058 = vld [vmem:[%s5 + $0x184] sm:$0xf]
      %v1059 = vld [vmem:[%s5 + $0x188] sm:$0xf]
      %v1060 = vld [vmem:[%s5 + $0x18c] sm:$0xf]
      %v1061 = vld [vmem:[%s5 + $0x190] sm:$0xf]
      %v1062 = vld [vmem:[%s5 + $0x194] sm:$0xf]
      %v1063 = vld [vmem:[%s5 + $0x198] sm:$0xf]
      %v1064 = vld [vmem:[%s5 + $0x19c] sm:$0xf]
      %v1065 = vld [vmem:[%s5 + $0x1a0] sm:$0xf]
      %v1066 = vld [vmem:[%s5 + $0x1a4] sm:$0xf]
      %v1067 = vld [vmem:[%s5 + $0x1a8] sm:$0xf]
      %v1068 = vld [vmem:[%s5 + $0x1ac] sm:$0xf]
      %v1069 = vld [vmem:[%s5 + $0x1b0] sm:$0xf]
      %v1070 = vld [vmem:[%s5 + $0x1b4] sm:$0xf]
      %v1071 = vld [vmem:[%s5 + $0x1b8] sm:$0xf]
      %v1072 = vld [vmem:[%s5 + $0x1bc] sm:$0xf]
      %v1073 = vld [vmem:[%s5 + $0x1c0] sm:$0xf]
      %v1074 = vld [vmem:[%s5 + $0x1c4] sm:$0xf]
      %v1075 = vld [vmem:[%s5 + $0x1c8] sm:$0xf]
      %v1076 = vld [vmem:[%s5 + $0x1cc] sm:$0xf]
      %v1077 = vld [vmem:[%s5 + $0x1d0] sm:$0xf]
      %v1078 = vld [vmem:[%s5 + $0x1d4] sm:$0xf]
      %v1079 = vld [vmem:[%s5 + $0x1d8] sm:$0xf]
      %v1080 = vld [vmem:[%s5 + $0x1dc] sm:$0xf]
      %v1081 = vld [vmem:[%s5 + $0x1e0] sm:$0xf]
      %v1082 = vld [vmem:[%s5 + $0x1e4] sm:$0xf]
      %v1083 = vld [vmem:[%s5 + $0x1e8] sm:$0xf]
      %v1084 = vld [vmem:[%s5 + $0x1ec] sm:$0xf]
      %v1085 = vld [vmem:[%s5 + $0x1f0] sm:$0xf]
      %v1086 = vld [vmem:[%s5 + $0x1f4] sm:$0xf]
      %v1087 = vld [vmem:[%s5 + $0x1f8] sm:$0xf]
      %v1088 = vld [vmem:[%s5 + $0x1fc] sm:$0xf]
      %v1089 = vpack.c.bf16 %v931, %v929
      %v1090 = vpack.c.bf16 %v932, %v930
      %v1091 = vpack.c.bf16 %v935, %v933
      %v1092 = vpack.c.bf16 %v936, %v934
      %v1093 = vpack.c.bf16 %v939, %v937
      %v1094 = vpack.c.bf16 %v940, %v938
      %v1095 = vpack.c.bf16 %v943, %v941
      %v1096 = vpack.c.bf16 %v944, %v942
      %v1097 = vpack.c.bf16 %v947, %v945
      %v1098 = vpack.c.bf16 %v948, %v946
      %v1099 = vpack.c.bf16 %v951, %v949
      %v1100 = vpack.c.bf16 %v952, %v950
      %v1101 = vpack.c.bf16 %v955, %v953
      %v1102 = vpack.c.bf16 %v956, %v954
      %v1103 = vpack.c.bf16 %v959, %v957
      %v1104 = vpack.c.bf16 %v960, %v958
      %v1105 = vld [vmem:[%s6] sm:$0xff]
      %v1106 = vld [vmem:[%s6 + $0x8] sm:$0xff]
      %v1107 = vld [vmem:[%s6 + $0x10] sm:$0xff]
      %v1108 = vld [vmem:[%s6 + $0x18] sm:$0xff]
      %v1109 = vld [vmem:[%s6 + $0x20] sm:$0xff]
      %v1110 = vld [vmem:[%s6 + $0x28] sm:$0xff]
      %v1111 = vld [vmem:[%s6 + $0x30] sm:$0xff]
      %v1112 = vld [vmem:[%s6 + $0x38] sm:$0xff]
      %v1113 = vld [vmem:[%s6 + $0x40] sm:$0xff]
      %v1114 = vld [vmem:[%s6 + $0x48] sm:$0xff]
      %v1115 = vld [vmem:[%s6 + $0x50] sm:$0xff]
      %v1116 = vld [vmem:[%s6 + $0x58] sm:$0xff]
      %v1117 = vld [vmem:[%s6 + $0x60] sm:$0xff]
      %v1118 = vld [vmem:[%s6 + $0x68] sm:$0xff]
      %v1119 = vld [vmem:[%s6 + $0x70] sm:$0xff]
      %v1120 = vld [vmem:[%s6 + $0x78] sm:$0xff]
      %v1121 = vld [vmem:[%s6 + $0x80] sm:$0xff]
      %v1122 = vld [vmem:[%s6 + $0x88] sm:$0xff]
      %v1123 = vld [vmem:[%s6 + $0x90] sm:$0xff]
      %v1124 = vld [vmem:[%s6 + $0x98] sm:$0xff]
      %v1125 = vld [vmem:[%s6 + $0xa0] sm:$0xff]
      %v1126 = vld [vmem:[%s6 + $0xa8] sm:$0xff]
      %v1127 = vld [vmem:[%s6 + $0xb0] sm:$0xff]
      %v1128 = vld [vmem:[%s6 + $0xb8] sm:$0xff]
      %v1129 = vld [vmem:[%s6 + $0xc0] sm:$0xff]
      %v1130 = vld [vmem:[%s6 + $0xc8] sm:$0xff]
      %v1131 = vld [vmem:[%s6 + $0xd0] sm:$0xff]
      %v1132 = vld [vmem:[%s6 + $0xd8] sm:$0xff]
      %v1133 = vld [vmem:[%s6 + $0xe0] sm:$0xff]
      %v1134 = vld [vmem:[%s6 + $0xe8] sm:$0xff]
      %v1135 = vld [vmem:[%s6 + $0xf0] sm:$0xff]
      %v1136 = vld [vmem:[%s6 + $0xf8] sm:$0xff]
      %v1137 = vld [vmem:[%s6 + $0x100] sm:$0xff]
      %v1138 = vld [vmem:[%s6 + $0x108] sm:$0xff]
      %v1139 = vld [vmem:[%s6 + $0x110] sm:$0xff]
      %v1140 = vld [vmem:[%s6 + $0x118] sm:$0xff]
      %v1141 = vld [vmem:[%s6 + $0x120] sm:$0xff]
      %v1142 = vld [vmem:[%s6 + $0x128] sm:$0xff]
      %v1143 = vld [vmem:[%s6 + $0x130] sm:$0xff]
      %v1144 = vld [vmem:[%s6 + $0x138] sm:$0xff]
      %v1145 = vld [vmem:[%s6 + $0x140] sm:$0xff]
      %v1146 = vld [vmem:[%s6 + $0x148] sm:$0xff]
      %v1147 = vld [vmem:[%s6 + $0x150] sm:$0xff]
      %v1148 = vld [vmem:[%s6 + $0x158] sm:$0xff]
      %v1149 = vld [vmem:[%s6 + $0x160] sm:$0xff]
      %v1150 = vld [vmem:[%s6 + $0x168] sm:$0xff]
      %v1151 = vld [vmem:[%s6 + $0x170] sm:$0xff]
      %v1152 = vld [vmem:[%s6 + $0x178] sm:$0xff]
      %v1153 = vld [vmem:[%s6 + $0x180] sm:$0xff]
      %v1154 = vld [vmem:[%s6 + $0x188] sm:$0xff]
      %v1155 = vld [vmem:[%s6 + $0x190] sm:$0xff]
      %v1156 = vld [vmem:[%s6 + $0x198] sm:$0xff]
      %v1157 = vld [vmem:[%s6 + $0x1a0] sm:$0xff]
      %v1158 = vld [vmem:[%s6 + $0x1a8] sm:$0xff]
      %v1159 = vld [vmem:[%s6 + $0x1b0] sm:$0xff]
      %v1160 = vld [vmem:[%s6 + $0x1b8] sm:$0xff]
      %v1161 = vld [vmem:[%s6 + $0x1c0] sm:$0xff]
      %v1162 = vld [vmem:[%s6 + $0x1c8] sm:$0xff]
      %v1163 = vld [vmem:[%s6 + $0x1d0] sm:$0xff]
      %v1164 = vld [vmem:[%s6 + $0x1d8] sm:$0xff]
      %v1165 = vld [vmem:[%s6 + $0x1e0] sm:$0xff]
      %v1166 = vld [vmem:[%s6 + $0x1e8] sm:$0xff]
      %v1167 = vld [vmem:[%s6 + $0x1f0] sm:$0xff]
      %v1168 = vld [vmem:[%s6 + $0x1f8] sm:$0xff]
      %v1169 = vld [vmem:[%s6 + $0x200] sm:$0xff]
      %v1170 = vld [vmem:[%s6 + $0x208] sm:$0xff]
      %v1171 = vld [vmem:[%s6 + $0x210] sm:$0xff]
      %v1172 = vld [vmem:[%s6 + $0x218] sm:$0xff]
      %v1173 = vld [vmem:[%s6 + $0x220] sm:$0xff]
      %v1174 = vld [vmem:[%s6 + $0x228] sm:$0xff]
      %v1175 = vld [vmem:[%s6 + $0x230] sm:$0xff]
      %v1176 = vld [vmem:[%s6 + $0x238] sm:$0xff]
      %v1177 = vld [vmem:[%s6 + $0x240] sm:$0xff]
      %v1178 = vld [vmem:[%s6 + $0x248] sm:$0xff]
      %v1179 = vld [vmem:[%s6 + $0x250] sm:$0xff]
      %v1180 = vld [vmem:[%s6 + $0x258] sm:$0xff]
      %v1181 = vld [vmem:[%s6 + $0x260] sm:$0xff]
      %v1182 = vld [vmem:[%s6 + $0x268] sm:$0xff]
      %v1183 = vld [vmem:[%s6 + $0x270] sm:$0xff]
      %v1184 = vld [vmem:[%s6 + $0x278] sm:$0xff]
      %v1185 = vld [vmem:[%s6 + $0x280] sm:$0xff]
      %v1186 = vld [vmem:[%s6 + $0x288] sm:$0xff]
      %v1187 = vld [vmem:[%s6 + $0x290] sm:$0xff]
      %v1188 = vld [vmem:[%s6 + $0x298] sm:$0xff]
      %v1189 = vld [vmem:[%s6 + $0x2a0] sm:$0xff]
      %v1190 = vld [vmem:[%s6 + $0x2a8] sm:$0xff]
      %v1191 = vld [vmem:[%s6 + $0x2b0] sm:$0xff]
      %v1192 = vld [vmem:[%s6 + $0x2b8] sm:$0xff]
      %v1193 = vld [vmem:[%s6 + $0x2c0] sm:$0xff]
      %v1194 = vld [vmem:[%s6 + $0x2c8] sm:$0xff]
      %v1195 = vld [vmem:[%s6 + $0x2d0] sm:$0xff]
      %v1196 = vld [vmem:[%s6 + $0x2d8] sm:$0xff]
      %v1197 = vld [vmem:[%s6 + $0x2e0] sm:$0xff]
      %v1198 = vld [vmem:[%s6 + $0x2e8] sm:$0xff]
      %v1199 = vld [vmem:[%s6 + $0x2f0] sm:$0xff]
      %v1200 = vld [vmem:[%s6 + $0x2f8] sm:$0xff]
      %v1201 = vld [vmem:[%s6 + $0x300] sm:$0xff]
      %v1202 = vld [vmem:[%s6 + $0x308] sm:$0xff]
      %v1203 = vld [vmem:[%s6 + $0x310] sm:$0xff]
      %v1204 = vld [vmem:[%s6 + $0x318] sm:$0xff]
      %v1205 = vld [vmem:[%s6 + $0x320] sm:$0xff]
      %v1206 = vld [vmem:[%s6 + $0x328] sm:$0xff]
      %v1207 = vld [vmem:[%s6 + $0x330] sm:$0xff]
      %v1208 = vld [vmem:[%s6 + $0x338] sm:$0xff]
      %v1209 = vld [vmem:[%s6 + $0x340] sm:$0xff]
      %v1210 = vld [vmem:[%s6 + $0x348] sm:$0xff]
      %v1211 = vld [vmem:[%s6 + $0x350] sm:$0xff]
      %v1212 = vld [vmem:[%s6 + $0x358] sm:$0xff]
      %v1213 = vld [vmem:[%s6 + $0x360] sm:$0xff]
      %v1214 = vld [vmem:[%s6 + $0x368] sm:$0xff]
      %v1215 = vld [vmem:[%s6 + $0x370] sm:$0xff]
      %v1216 = vld [vmem:[%s6 + $0x378] sm:$0xff]
      %v1217 = vld [vmem:[%s6 + $0x380] sm:$0xff]
      %v1218 = vld [vmem:[%s6 + $0x388] sm:$0xff]
      %v1219 = vld [vmem:[%s6 + $0x390] sm:$0xff]
      %v1220 = vld [vmem:[%s6 + $0x398] sm:$0xff]
      %v1221 = vld [vmem:[%s6 + $0x3a0] sm:$0xff]
      %v1222 = vld [vmem:[%s6 + $0x3a8] sm:$0xff]
      %v1223 = vld [vmem:[%s6 + $0x3b0] sm:$0xff]
      %v1224 = vld [vmem:[%s6 + $0x3b8] sm:$0xff]
      %v1225 = vld [vmem:[%s6 + $0x3c0] sm:$0xff]
      %v1226 = vld [vmem:[%s6 + $0x3c8] sm:$0xff]
      %v1227 = vld [vmem:[%s6 + $0x3d0] sm:$0xff]
      %v1228 = vld [vmem:[%s6 + $0x3d8] sm:$0xff]
      %v1229 = vld [vmem:[%s6 + $0x3e0] sm:$0xff]
      %v1230 = vld [vmem:[%s6 + $0x3e8] sm:$0xff]
      %v1231 = vld [vmem:[%s6 + $0x3f0] sm:$0xff]
      %v1232 = vld [vmem:[%s6 + $0x3f8] sm:$0xff]
      %1234 = vset.pattern.permute.xlu0 0
      %1235 = vperm.xlu0 %1234, %v1105
      %v1236 = vpop.permute.xlu0 %1235
      %1239 = vset.pattern.permute.xlu0 0
      %1240 = vperm.xlu0 %1239, %v1106
      %v1241 = vpop.permute.xlu0 %1240
      %1244 = vset.pattern.permute.xlu0 0
      %1245 = vperm.xlu0 %1244, %v1107
      %v1246 = vpop.permute.xlu0 %1245
      %1249 = vset.pattern.permute.xlu0 0
      %1250 = vperm.xlu0 %1249, %v1108
      %v1251 = vpop.permute.xlu0 %1250
      %1254 = vset.pattern.permute.xlu0 0
      %1255 = vperm.xlu0 %1254, %v1109
      %v1256 = vpop.permute.xlu0 %1255
      %1259 = vset.pattern.permute.xlu0 0
      %1260 = vperm.xlu0 %1259, %v1110
      %v1261 = vpop.permute.xlu0 %1260
      %1264 = vset.pattern.permute.xlu0 0
      %1265 = vperm.xlu0 %1264, %v1111
      %v1266 = vpop.permute.xlu0 %1265
      %1269 = vset.pattern.permute.xlu0 0
      %1270 = vperm.xlu0 %1269, %v1112
      %v1271 = vpop.permute.xlu0 %1270
      %1274 = vset.pattern.permute.xlu0 0
      %1275 = vperm.xlu0 %1274, %v1113
      %v1276 = vpop.permute.xlu0 %1275
      %1279 = vset.pattern.permute.xlu0 0
      %1280 = vperm.xlu0 %1279, %v1114
      %v1281 = vpop.permute.xlu0 %1280
      %1284 = vset.pattern.permute.xlu0 0
      %1285 = vperm.xlu0 %1284, %v1115
      %v1286 = vpop.permute.xlu0 %1285
      %1289 = vset.pattern.permute.xlu0 0
      %1290 = vperm.xlu0 %1289, %v1116
      %v1291 = vpop.permute.xlu0 %1290
      %1294 = vset.pattern.permute.xlu0 0
      %1295 = vperm.xlu0 %1294, %v1117
      %v1296 = vpop.permute.xlu0 %1295
      %1299 = vset.pattern.permute.xlu0 0
      %1300 = vperm.xlu0 %1299, %v1118
      %v1301 = vpop.permute.xlu0 %1300
      %1304 = vset.pattern.permute.xlu0 0
      %1305 = vperm.xlu0 %1304, %v1119
      %v1306 = vpop.permute.xlu0 %1305
      %1309 = vset.pattern.permute.xlu0 0
      %1310 = vperm.xlu0 %1309, %v1120
      %v1311 = vpop.permute.xlu0 %1310
      %1314 = vset.pattern.permute.xlu0 0
      %1315 = vperm.xlu0 %1314, %v1121
      %v1316 = vpop.permute.xlu0 %1315
      %1319 = vset.pattern.permute.xlu0 0
      %1320 = vperm.xlu0 %1319, %v1122
      %v1321 = vpop.permute.xlu0 %1320
      %1324 = vset.pattern.permute.xlu0 0
      %1325 = vperm.xlu0 %1324, %v1123
      %v1326 = vpop.permute.xlu0 %1325
      %1329 = vset.pattern.permute.xlu0 0
      %1330 = vperm.xlu0 %1329, %v1124
      %v1331 = vpop.permute.xlu0 %1330
      %1334 = vset.pattern.permute.xlu0 0
      %1335 = vperm.xlu0 %1334, %v1125
      %v1336 = vpop.permute.xlu0 %1335
      %1339 = vset.pattern.permute.xlu0 0
      %1340 = vperm.xlu0 %1339, %v1126
      %v1341 = vpop.permute.xlu0 %1340
      %1344 = vset.pattern.permute.xlu0 0
      %1345 = vperm.xlu0 %1344, %v1127
      %v1346 = vpop.permute.xlu0 %1345
      %1349 = vset.pattern.permute.xlu0 0
      %1350 = vperm.xlu0 %1349, %v1128
      %v1351 = vpop.permute.xlu0 %1350
      %1354 = vset.pattern.permute.xlu0 0
      %1355 = vperm.xlu0 %1354, %v1129
      %v1356 = vpop.permute.xlu0 %1355
      %1359 = vset.pattern.permute.xlu0 0
      %1360 = vperm.xlu0 %1359, %v1130
      %v1361 = vpop.permute.xlu0 %1360
      %1364 = vset.pattern.permute.xlu0 0
      %1365 = vperm.xlu0 %1364, %v1131
      %v1366 = vpop.permute.xlu0 %1365
      %1369 = vset.pattern.permute.xlu0 0
      %1370 = vperm.xlu0 %1369, %v1132
      %v1371 = vpop.permute.xlu0 %1370
      %1374 = vset.pattern.permute.xlu0 0
      %1375 = vperm.xlu0 %1374, %v1133
      %v1376 = vpop.permute.xlu0 %1375
      %1379 = vset.pattern.permute.xlu0 0
      %1380 = vperm.xlu0 %1379, %v1134
      %v1381 = vpop.permute.xlu0 %1380
      %1384 = vset.pattern.permute.xlu0 0
      %1385 = vperm.xlu0 %1384, %v1135
      %v1386 = vpop.permute.xlu0 %1385
      %1389 = vset.pattern.permute.xlu0 0
      %1390 = vperm.xlu0 %1389, %v1136
      %v1391 = vpop.permute.xlu0 %1390
      %1394 = vset.pattern.permute.xlu0 0
      %1395 = vperm.xlu0 %1394, %v1137
      %v1396 = vpop.permute.xlu0 %1395
      %1399 = vset.pattern.permute.xlu0 0
      %1400 = vperm.xlu0 %1399, %v1138
      %v1401 = vpop.permute.xlu0 %1400
      %1404 = vset.pattern.permute.xlu0 0
      %1405 = vperm.xlu0 %1404, %v1139
      %v1406 = vpop.permute.xlu0 %1405
      %1409 = vset.pattern.permute.xlu0 0
      %1410 = vperm.xlu0 %1409, %v1140
      %v1411 = vpop.permute.xlu0 %1410
      %1414 = vset.pattern.permute.xlu0 0
      %1415 = vperm.xlu0 %1414, %v1141
      %v1416 = vpop.permute.xlu0 %1415
      %1419 = vset.pattern.permute.xlu0 0
      %1420 = vperm.xlu0 %1419, %v1142
      %v1421 = vpop.permute.xlu0 %1420
      %1424 = vset.pattern.permute.xlu0 0
      %1425 = vperm.xlu0 %1424, %v1143
      %v1426 = vpop.permute.xlu0 %1425
      %1429 = vset.pattern.permute.xlu0 0
      %1430 = vperm.xlu0 %1429, %v1144
      %v1431 = vpop.permute.xlu0 %1430
      %1434 = vset.pattern.permute.xlu0 0
      %1435 = vperm.xlu0 %1434, %v1145
      %v1436 = vpop.permute.xlu0 %1435
      %1439 = vset.pattern.permute.xlu0 0
      %1440 = vperm.xlu0 %1439, %v1146
      %v1441 = vpop.permute.xlu0 %1440
      %1444 = vset.pattern.permute.xlu0 0
      %1445 = vperm.xlu0 %1444, %v1147
      %v1446 = vpop.permute.xlu0 %1445
      %1449 = vset.pattern.permute.xlu0 0
      %1450 = vperm.xlu0 %1449, %v1148
      %v1451 = vpop.permute.xlu0 %1450
      %1454 = vset.pattern.permute.xlu0 0
      %1455 = vperm.xlu0 %1454, %v1149
      %v1456 = vpop.permute.xlu0 %1455
      %1459 = vset.pattern.permute.xlu0 0
      %1460 = vperm.xlu0 %1459, %v1150
      %v1461 = vpop.permute.xlu0 %1460
      %1464 = vset.pattern.permute.xlu0 0
      %1465 = vperm.xlu0 %1464, %v1151
      %v1466 = vpop.permute.xlu0 %1465
      %1469 = vset.pattern.permute.xlu0 0
      %1470 = vperm.xlu0 %1469, %v1152
      %v1471 = vpop.permute.xlu0 %1470
      %1474 = vset.pattern.permute.xlu0 0
      %1475 = vperm.xlu0 %1474, %v1153
      %v1476 = vpop.permute.xlu0 %1475
      %1479 = vset.pattern.permute.xlu0 0
      %1480 = vperm.xlu0 %1479, %v1154
      %v1481 = vpop.permute.xlu0 %1480
      %1484 = vset.pattern.permute.xlu0 0
      %1485 = vperm.xlu0 %1484, %v1155
      %v1486 = vpop.permute.xlu0 %1485
      %1489 = vset.pattern.permute.xlu0 0
      %1490 = vperm.xlu0 %1489, %v1156
      %v1491 = vpop.permute.xlu0 %1490
      %1494 = vset.pattern.permute.xlu0 0
      %1495 = vperm.xlu0 %1494, %v1157
      %v1496 = vpop.permute.xlu0 %1495
      %1499 = vset.pattern.permute.xlu0 0
      %1500 = vperm.xlu0 %1499, %v1158
      %v1501 = vpop.permute.xlu0 %1500
      %1504 = vset.pattern.permute.xlu0 0
      %1505 = vperm.xlu0 %1504, %v1159
      %v1506 = vpop.permute.xlu0 %1505
      %1509 = vset.pattern.permute.xlu0 0
      %1510 = vperm.xlu0 %1509, %v1160
      %v1511 = vpop.permute.xlu0 %1510
      %1514 = vset.pattern.permute.xlu0 0
      %1515 = vperm.xlu0 %1514, %v1161
      %v1516 = vpop.permute.xlu0 %1515
      %1519 = vset.pattern.permute.xlu0 0
      %1520 = vperm.xlu0 %1519, %v1162
      %v1521 = vpop.permute.xlu0 %1520
      %1524 = vset.pattern.permute.xlu0 0
      %1525 = vperm.xlu0 %1524, %v1163
      %v1526 = vpop.permute.xlu0 %1525
      %1529 = vset.pattern.permute.xlu0 0
      %1530 = vperm.xlu0 %1529, %v1164
      %v1531 = vpop.permute.xlu0 %1530
      %1534 = vset.pattern.permute.xlu0 0
      %1535 = vperm.xlu0 %1534, %v1165
      %v1536 = vpop.permute.xlu0 %1535
      %1539 = vset.pattern.permute.xlu0 0
      %1540 = vperm.xlu0 %1539, %v1166
      %v1541 = vpop.permute.xlu0 %1540
      %1544 = vset.pattern.permute.xlu0 0
      %1545 = vperm.xlu0 %1544, %v1167
      %v1546 = vpop.permute.xlu0 %1545
      %1549 = vset.pattern.permute.xlu0 0
      %1550 = vperm.xlu0 %1549, %v1168
      %v1551 = vpop.permute.xlu0 %1550
      %1554 = vset.pattern.permute.xlu0 0
      %1555 = vperm.xlu0 %1554, %v1169
      %v1556 = vpop.permute.xlu0 %1555
      %1559 = vset.pattern.permute.xlu0 0
      %1560 = vperm.xlu0 %1559, %v1170
      %v1561 = vpop.permute.xlu0 %1560
      %1564 = vset.pattern.permute.xlu0 0
      %1565 = vperm.xlu0 %1564, %v1171
      %v1566 = vpop.permute.xlu0 %1565
      %1569 = vset.pattern.permute.xlu0 0
      %1570 = vperm.xlu0 %1569, %v1172
      %v1571 = vpop.permute.xlu0 %1570
      %1574 = vset.pattern.permute.xlu0 0
      %1575 = vperm.xlu0 %1574, %v1173
      %v1576 = vpop.permute.xlu0 %1575
      %1579 = vset.pattern.permute.xlu0 0
      %1580 = vperm.xlu0 %1579, %v1174
      %v1581 = vpop.permute.xlu0 %1580
      %1584 = vset.pattern.permute.xlu0 0
      %1585 = vperm.xlu0 %1584, %v1175
      %v1586 = vpop.permute.xlu0 %1585
      %1589 = vset.pattern.permute.xlu0 0
      %1590 = vperm.xlu0 %1589, %v1176
      %v1591 = vpop.permute.xlu0 %1590
      %1594 = vset.pattern.permute.xlu0 0
      %1595 = vperm.xlu0 %1594, %v1177
      %v1596 = vpop.permute.xlu0 %1595
      %1599 = vset.pattern.permute.xlu0 0
      %1600 = vperm.xlu0 %1599, %v1178
      %v1601 = vpop.permute.xlu0 %1600
      %1604 = vset.pattern.permute.xlu0 0
      %1605 = vperm.xlu0 %1604, %v1179
      %v1606 = vpop.permute.xlu0 %1605
      %1609 = vset.pattern.permute.xlu0 0
      %1610 = vperm.xlu0 %1609, %v1180
      %v1611 = vpop.permute.xlu0 %1610
      %1614 = vset.pattern.permute.xlu0 0
      %1615 = vperm.xlu0 %1614, %v1181
      %v1616 = vpop.permute.xlu0 %1615
      %1619 = vset.pattern.permute.xlu0 0
      %1620 = vperm.xlu0 %1619, %v1182
      %v1621 = vpop.permute.xlu0 %1620
      %1624 = vset.pattern.permute.xlu0 0
      %1625 = vperm.xlu0 %1624, %v1183
      %v1626 = vpop.permute.xlu0 %1625
      %1629 = vset.pattern.permute.xlu0 0
      %1630 = vperm.xlu0 %1629, %v1184
      %v1631 = vpop.permute.xlu0 %1630
      %1634 = vset.pattern.permute.xlu0 0
      %1635 = vperm.xlu0 %1634, %v1185
      %v1636 = vpop.permute.xlu0 %1635
      %1639 = vset.pattern.permute.xlu0 0
      %1640 = vperm.xlu0 %1639, %v1186
      %v1641 = vpop.permute.xlu0 %1640
      %1644 = vset.pattern.permute.xlu0 0
      %1645 = vperm.xlu0 %1644, %v1187
      %v1646 = vpop.permute.xlu0 %1645
      %1649 = vset.pattern.permute.xlu0 0
      %1650 = vperm.xlu0 %1649, %v1188
      %v1651 = vpop.permute.xlu0 %1650
      %1654 = vset.pattern.permute.xlu0 0
      %1655 = vperm.xlu0 %1654, %v1189
      %v1656 = vpop.permute.xlu0 %1655
      %1659 = vset.pattern.permute.xlu0 0
      %1660 = vperm.xlu0 %1659, %v1190
      %v1661 = vpop.permute.xlu0 %1660
      %1664 = vset.pattern.permute.xlu0 0
      %1665 = vperm.xlu0 %1664, %v1191
      %v1666 = vpop.permute.xlu0 %1665
      %1669 = vset.pattern.permute.xlu0 0
      %1670 = vperm.xlu0 %1669, %v1192
      %v1671 = vpop.permute.xlu0 %1670
      %1674 = vset.pattern.permute.xlu0 0
      %1675 = vperm.xlu0 %1674, %v1193
      %v1676 = vpop.permute.xlu0 %1675
      %1679 = vset.pattern.permute.xlu0 0
      %1680 = vperm.xlu0 %1679, %v1194
      %v1681 = vpop.permute.xlu0 %1680
      %1684 = vset.pattern.permute.xlu0 0
      %1685 = vperm.xlu0 %1684, %v1195
      %v1686 = vpop.permute.xlu0 %1685
      %1689 = vset.pattern.permute.xlu0 0
      %1690 = vperm.xlu0 %1689, %v1196
      %v1691 = vpop.permute.xlu0 %1690
      %1694 = vset.pattern.permute.xlu0 0
      %1695 = vperm.xlu0 %1694, %v1197
      %v1696 = vpop.permute.xlu0 %1695
      %1699 = vset.pattern.permute.xlu0 0
      %1700 = vperm.xlu0 %1699, %v1198
      %v1701 = vpop.permute.xlu0 %1700
      %1704 = vset.pattern.permute.xlu0 0
      %1705 = vperm.xlu0 %1704, %v1199
      %v1706 = vpop.permute.xlu0 %1705
      %1709 = vset.pattern.permute.xlu0 0
      %1710 = vperm.xlu0 %1709, %v1200
      %v1711 = vpop.permute.xlu0 %1710
      %1714 = vset.pattern.permute.xlu0 0
      %1715 = vperm.xlu0 %1714, %v1201
      %v1716 = vpop.permute.xlu0 %1715
      %1719 = vset.pattern.permute.xlu0 0
      %1720 = vperm.xlu0 %1719, %v1202
      %v1721 = vpop.permute.xlu0 %1720
      %1724 = vset.pattern.permute.xlu0 0
      %1725 = vperm.xlu0 %1724, %v1203
      %v1726 = vpop.permute.xlu0 %1725
      %1729 = vset.pattern.permute.xlu0 0
      %1730 = vperm.xlu0 %1729, %v1204
      %v1731 = vpop.permute.xlu0 %1730
      %1734 = vset.pattern.permute.xlu0 0
      %1735 = vperm.xlu0 %1734, %v1205
      %v1736 = vpop.permute.xlu0 %1735
      %1739 = vset.pattern.permute.xlu0 0
      %1740 = vperm.xlu0 %1739, %v1206
      %v1741 = vpop.permute.xlu0 %1740
      %1744 = vset.pattern.permute.xlu0 0
      %1745 = vperm.xlu0 %1744, %v1207
      %v1746 = vpop.permute.xlu0 %1745
      %1749 = vset.pattern.permute.xlu0 0
      %1750 = vperm.xlu0 %1749, %v1208
      %v1751 = vpop.permute.xlu0 %1750
      %1754 = vset.pattern.permute.xlu0 0
      %1755 = vperm.xlu0 %1754, %v1209
      %v1756 = vpop.permute.xlu0 %1755
      %1759 = vset.pattern.permute.xlu0 0
      %1760 = vperm.xlu0 %1759, %v1210
      %v1761 = vpop.permute.xlu0 %1760
      %1764 = vset.pattern.permute.xlu0 0
      %1765 = vperm.xlu0 %1764, %v1211
      %v1766 = vpop.permute.xlu0 %1765
      %1769 = vset.pattern.permute.xlu0 0
      %1770 = vperm.xlu0 %1769, %v1212
      %v1771 = vpop.permute.xlu0 %1770
      %1774 = vset.pattern.permute.xlu0 0
      %1775 = vperm.xlu0 %1774, %v1213
      %v1776 = vpop.permute.xlu0 %1775
      %1779 = vset.pattern.permute.xlu0 0
      %1780 = vperm.xlu0 %1779, %v1214
      %v1781 = vpop.permute.xlu0 %1780
      %1784 = vset.pattern.permute.xlu0 0
      %1785 = vperm.xlu0 %1784, %v1215
      %v1786 = vpop.permute.xlu0 %1785
      %1789 = vset.pattern.permute.xlu0 0
      %1790 = vperm.xlu0 %1789, %v1216
      %v1791 = vpop.permute.xlu0 %1790
      %1794 = vset.pattern.permute.xlu0 0
      %1795 = vperm.xlu0 %1794, %v1217
      %v1796 = vpop.permute.xlu0 %1795
      %1799 = vset.pattern.permute.xlu0 0
      %1800 = vperm.xlu0 %1799, %v1218
      %v1801 = vpop.permute.xlu0 %1800
      %1804 = vset.pattern.permute.xlu0 0
      %1805 = vperm.xlu0 %1804, %v1219
      %v1806 = vpop.permute.xlu0 %1805
      %1809 = vset.pattern.permute.xlu0 0
      %1810 = vperm.xlu0 %1809, %v1220
      %v1811 = vpop.permute.xlu0 %1810
      %1814 = vset.pattern.permute.xlu0 0
      %1815 = vperm.xlu0 %1814, %v1221
      %v1816 = vpop.permute.xlu0 %1815
      %1819 = vset.pattern.permute.xlu0 0
      %1820 = vperm.xlu0 %1819, %v1222
      %v1821 = vpop.permute.xlu0 %1820
      %1824 = vset.pattern.permute.xlu0 0
      %1825 = vperm.xlu0 %1824, %v1223
      %v1826 = vpop.permute.xlu0 %1825
      %1829 = vset.pattern.permute.xlu0 0
      %1830 = vperm.xlu0 %1829, %v1224
      %v1831 = vpop.permute.xlu0 %1830
      %1834 = vset.pattern.permute.xlu0 0
      %1835 = vperm.xlu0 %1834, %v1225
      %v1836 = vpop.permute.xlu0 %1835
      %1839 = vset.pattern.permute.xlu0 0
      %1840 = vperm.xlu0 %1839, %v1226
      %v1841 = vpop.permute.xlu0 %1840
      %1844 = vset.pattern.permute.xlu0 0
      %1845 = vperm.xlu0 %1844, %v1227
      %v1846 = vpop.permute.xlu0 %1845
      %1849 = vset.pattern.permute.xlu0 0
      %1850 = vperm.xlu0 %1849, %v1228
      %v1851 = vpop.permute.xlu0 %1850
      %1854 = vset.pattern.permute.xlu0 0
      %1855 = vperm.xlu0 %1854, %v1229
      %v1856 = vpop.permute.xlu0 %1855
      %1859 = vset.pattern.permute.xlu0 0
      %1860 = vperm.xlu0 %1859, %v1230
      %v1861 = vpop.permute.xlu0 %1860
      %1864 = vset.pattern.permute.xlu0 0
      %1865 = vperm.xlu0 %1864, %v1231
      %v1866 = vpop.permute.xlu0 %1865
      %1869 = vset.pattern.permute.xlu0 0
      %1870 = vperm.xlu0 %1869, %v1232
      %v1871 = vpop.permute.xlu0 %1870
      %v2001 = vunpack.c.l.b16 %v961
      %v2002 = vunpack.c.l.b16 %v962
      %v2003 = vunpack.c.l.b16 %v963
      %v2004 = vunpack.c.l.b16 %v964
      %v2005 = vunpack.c.l.b16 %v965
      %v2006 = vunpack.c.l.b16 %v966
      %v2007 = vunpack.c.l.b16 %v967
      %v2008 = vunpack.c.l.b16 %v968
      %v2009 = vunpack.c.l.b16 %v969
      %v2010 = vunpack.c.l.b16 %v970
      %v2011 = vunpack.c.l.b16 %v971
      %v2012 = vunpack.c.l.b16 %v972
      %v2013 = vunpack.c.l.b16 %v973
      %v2014 = vunpack.c.l.b16 %v974
      %v2015 = vunpack.c.l.b16 %v975
      %v2016 = vunpack.c.l.b16 %v976
      %v2017 = vunpack.c.l.b16 %v977
      %v2018 = vunpack.c.l.b16 %v978
      %v2019 = vunpack.c.l.b16 %v979
      %v2020 = vunpack.c.l.b16 %v980
      %v2021 = vunpack.c.l.b16 %v981
      %v2022 = vunpack.c.l.b16 %v982
      %v2023 = vunpack.c.l.b16 %v983
      %v2024 = vunpack.c.l.b16 %v984
      %v2025 = vunpack.c.l.b16 %v985
      %v2026 = vunpack.c.l.b16 %v986
      %v2027 = vunpack.c.l.b16 %v987
      %v2028 = vunpack.c.l.b16 %v988
      %v2029 = vunpack.c.l.b16 %v989
      %v2030 = vunpack.c.l.b16 %v990
      %v2031 = vunpack.c.l.b16 %v991
      %v2032 = vunpack.c.l.b16 %v992
      %v2033 = vunpack.c.l.b16 %v993
      %v2034 = vunpack.c.l.b16 %v994
      %v2035 = vunpack.c.l.b16 %v995
      %v2036 = vunpack.c.l.b16 %v996
      %v2037 = vunpack.c.l.b16 %v997
      %v2038 = vunpack.c.l.b16 %v998
      %v2039 = vunpack.c.l.b16 %v999
      %v2040 = vunpack.c.l.b16 %v1000
      %v2041 = vunpack.c.l.b16 %v1001
      %v2042 = vunpack.c.l.b16 %v1002
      %v2043 = vunpack.c.l.b16 %v1003
      %v2044 = vunpack.c.l.b16 %v1004
      %v2045 = vunpack.c.l.b16 %v1005
      %v2046 = vunpack.c.l.b16 %v1006
      %v2047 = vunpack.c.l.b16 %v1007
      %v2048 = vunpack.c.l.b16 %v1008
      %v2049 = vunpack.c.l.b16 %v1009
      %v2050 = vunpack.c.l.b16 %v1010
      %v2051 = vunpack.c.l.b16 %v1011
      %v2052 = vunpack.c.l.b16 %v1012
      %v2053 = vunpack.c.l.b16 %v1013
      %v2054 = vunpack.c.l.b16 %v1014
      %v2055 = vunpack.c.l.b16 %v1015
      %v2056 = vunpack.c.l.b16 %v1016
      %v2057 = vunpack.c.l.b16 %v1017
      %v2058 = vunpack.c.l.b16 %v1018
      %v2059 = vunpack.c.l.b16 %v1019
      %v2060 = vunpack.c.l.b16 %v1020
      %v2061 = vunpack.c.l.b16 %v1021
      %v2062 = vunpack.c.l.b16 %v1022
      %v2063 = vunpack.c.l.b16 %v1023
      %v2064 = vunpack.c.l.b16 %v1024
      %v2065 = vunpack.c.l.b16 %v1025
      %v2066 = vunpack.c.l.b16 %v1026
      %v2067 = vunpack.c.l.b16 %v1027
      %v2068 = vunpack.c.l.b16 %v1028
      %v2069 = vunpack.c.l.b16 %v1029
      %v2070 = vunpack.c.l.b16 %v1030
      %v2071 = vunpack.c.l.b16 %v1031
      %v2072 = vunpack.c.l.b16 %v1032
      %v2073 = vunpack.c.l.b16 %v1033
      %v2074 = vunpack.c.l.b16 %v1034
      %v2075 = vunpack.c.l.b16 %v1035
      %v2076 = vunpack.c.l.b16 %v1036
      %v2077 = vunpack.c.l.b16 %v1037
      %v2078 = vunpack.c.l.b16 %v1038
      %v2079 = vunpack.c.l.b16 %v1039
      %v2080 = vunpack.c.l.b16 %v1040
      %v2081 = vunpack.c.l.b16 %v1041
      %v2082 = vunpack.c.l.b16 %v1042
      %v2083 = vunpack.c.l.b16 %v1043
      %v2084 = vunpack.c.l.b16 %v1044
      %v2085 = vunpack.c.l.b16 %v1045
      %v2086 = vunpack.c.l.b16 %v1046
      %v2087 = vunpack.c.l.b16 %v1047
      %v2088 = vunpack.c.l.b16 %v1048
      %v2089 = vunpack.c.l.b16 %v1049
      %v2090 = vunpack.c.l.b16 %v1050
      %v2091 = vunpack.c.l.b16 %v1051
      %v2092 = vunpack.c.l.b16 %v1052
      %v2093 = vunpack.c.l.b16 %v1053
      %v2094 = vunpack.c.l.b16 %v1054
      %v2095 = vunpack.c.l.b16 %v1055
      %v2096 = vunpack.c.l.b16 %v1056
      %v2097 = vunpack.c.l.b16 %v1057
      %v2098 = vunpack.c.l.b16 %v1058
      %v2099 = vunpack.c.l.b16 %v1059
      %v2100 = vunpack.c.l.b16 %v1060
      %v2101 = vunpack.c.l.b16 %v1061
      %v2102 = vunpack.c.l.b16 %v1062
      %v2103 = vunpack.c.l.b16 %v1063
      %v2104 = vunpack.c.l.b16 %v1064
      %v2105 = vunpack.c.l.b16 %v1065
      %v2106 = vunpack.c.l.b16 %v1066
      %v2107 = vunpack.c.l.b16 %v1067
      %v2108 = vunpack.c.l.b16 %v1068
      %v2109 = vunpack.c.l.b16 %v1069
      %v2110 = vunpack.c.l.b16 %v1070
      %v2111 = vunpack.c.l.b16 %v1071
      %v2112 = vunpack.c.l.b16 %v1072
      %v2113 = vunpack.c.l.b16 %v1073
      %v2114 = vunpack.c.l.b16 %v1074
      %v2115 = vunpack.c.l.b16 %v1075
      %v2116 = vunpack.c.l.b16 %v1076
      %v2117 = vunpack.c.l.b16 %v1077
      %v2118 = vunpack.c.l.b16 %v1078
      %v2119 = vunpack.c.l.b16 %v1079
      %v2120 = vunpack.c.l.b16 %v1080
      %v2121 = vunpack.c.l.b16 %v1081
      %v2122 = vunpack.c.l.b16 %v1082
      %v2123 = vunpack.c.l.b16 %v1083
      %v2124 = vunpack.c.l.b16 %v1084
      %v2125 = vunpack.c.l.b16 %v1085
      %v2126 = vunpack.c.l.b16 %v1086
      %v2127 = vunpack.c.l.b16 %v1087
      %v2128 = vunpack.c.l.b16 %v1088
      %v2129 = vpack.c.b16 %v2002, %v2001
      %v2130 = vpack.c.b16 %v2004, %v2003
      %v2131 = vpack.c.b16 %v2006, %v2005
      %v2132 = vpack.c.b16 %v2008, %v2007
      %v2133 = vpack.c.b16 %v2010, %v2009
      %v2134 = vpack.c.b16 %v2012, %v2011
      %v2135 = vpack.c.b16 %v2014, %v2013
      %v2136 = vpack.c.b16 %v2016, %v2015
      %v2137 = vpack.c.b16 %v2018, %v2017
      %v2138 = vpack.c.b16 %v2020, %v2019
      %v2139 = vpack.c.b16 %v2022, %v2021
      %v2140 = vpack.c.b16 %v2024, %v2023
      %v2141 = vpack.c.b16 %v2026, %v2025
      %v2142 = vpack.c.b16 %v2028, %v2027
      %v2143 = vpack.c.b16 %v2030, %v2029
      %v2144 = vpack.c.b16 %v2032, %v2031
      %v2145 = vpack.c.b16 %v2034, %v2033
      %v2146 = vpack.c.b16 %v2036, %v2035
      %v2147 = vpack.c.b16 %v2038, %v2037
      %v2148 = vpack.c.b16 %v2040, %v2039
      %v2149 = vpack.c.b16 %v2042, %v2041
      %v2150 = vpack.c.b16 %v2044, %v2043
      %v2151 = vpack.c.b16 %v2046, %v2045
      %v2152 = vpack.c.b16 %v2048, %v2047
      %v2153 = vpack.c.b16 %v2050, %v2049
      %v2154 = vpack.c.b16 %v2052, %v2051
      %v2155 = vpack.c.b16 %v2054, %v2053
      %v2156 = vpack.c.b16 %v2056, %v2055
      %v2157 = vpack.c.b16 %v2058, %v2057
      %v2158 = vpack.c.b16 %v2060, %v2059
      %v2159 = vpack.c.b16 %v2062, %v2061
      %v2160 = vpack.c.b16 %v2064, %v2063
      %v2161 = vpack.c.b16 %v2066, %v2065
      %v2162 = vpack.c.b16 %v2068, %v2067
      %v2163 = vpack.c.b16 %v2070, %v2069
      %v2164 = vpack.c.b16 %v2072, %v2071
      %v2165 = vpack.c.b16 %v2074, %v2073
      %v2166 = vpack.c.b16 %v2076, %v2075
      %v2167 = vpack.c.b16 %v2078, %v2077
      %v2168 = vpack.c.b16 %v2080, %v2079
      %v2169 = vpack.c.b16 %v2082, %v2081
      %v2170 = vpack.c.b16 %v2084, %v2083
      %v2171 = vpack.c.b16 %v2086, %v2085
      %v2172 = vpack.c.b16 %v2088, %v2087
      %v2173 = vpack.c.b16 %v2090, %v2089
      %v2174 = vpack.c.b16 %v2092, %v2091
      %v2175 = vpack.c.b16 %v2094, %v2093
      %v2176 = vpack.c.b16 %v2096, %v2095
      %v2177 = vpack.c.b16 %v2098, %v2097
      %v2178 = vpack.c.b16 %v2100, %v2099
      %v2179 = vpack.c.b16 %v2102, %v2101
      %v2180 = vpack.c.b16 %v2104, %v2103
      %v2181 = vpack.c.b16 %v2106, %v2105
      %v2182 = vpack.c.b16 %v2108, %v2107
      %v2183 = vpack.c.b16 %v2110, %v2109
      %v2184 = vpack.c.b16 %v2112, %v2111
      %v2185 = vpack.c.b16 %v2114, %v2113
      %v2186 = vpack.c.b16 %v2116, %v2115
      %v2187 = vpack.c.b16 %v2118, %v2117
      %v2188 = vpack.c.b16 %v2120, %v2119
      %v2189 = vpack.c.b16 %v2122, %v2121
      %v2190 = vpack.c.b16 %v2124, %v2123
      %v2191 = vpack.c.b16 %v2126, %v2125
      %v2192 = vpack.c.b16 %v2128, %v2127
      %2257 = vmatprep.subr.bf16.mxu0 %v1090
      %2258 = vmatpush1.bf16.msra.mxu0 %v1089
      %2259 = vmatprep.subr.bf16.mxu0 %v1092
      %2260 = vmatpush1.bf16.msra.mxu0 %v1091
      %2261 = vmatprep.subr.bf16.mxu0 %v1094
      %2262 = vmatpush1.bf16.msra.mxu0 %v1093
      %2263 = vmatprep.subr.bf16.mxu0 %v1096
      %2264 = vmatpush1.bf16.msra.mxu0 %v1095
      %2265 = vmatprep.subr.bf16.mxu0 %v1098
      %2266 = vmatpush1.bf16.msra.mxu0 %v1097
      %2267 = vmatprep.subr.bf16.mxu0 %v1100
      %2268 = vmatpush1.bf16.msra.mxu0 %v1099
      %2269 = vmatprep.subr.bf16.mxu0 %v1102
      %2270 = vmatpush1.bf16.msra.mxu0 %v1101
      %2271 = vmatprep.subr.bf16.mxu0 %v1104
      %2272 = vmatpush1.bf16.msra.mxu0 %v1103
      %2273 = vmatprep.subr.bf16.mxu0 0
      %2274 = vmatpush1.bf16.msra.mxu0 0
      %2275 = vmatprep.subr.bf16.mxu0 0
      %2276 = vmatpush1.bf16.msra.mxu0 0
      %2277 = vmatprep.subr.bf16.mxu0 0
      %2278 = vmatpush1.bf16.msra.mxu0 0
      %2279 = vmatprep.subr.bf16.mxu0 0
      %2280 = vmatpush1.bf16.msra.mxu0 0
      %2281 = vmatprep.subr.bf16.mxu0 0
      %2282 = vmatpush1.bf16.msra.mxu0 0
      %2283 = vmatprep.subr.bf16.mxu0 0
      %2284 = vmatpush1.bf16.msra.mxu0 0
      %2285 = vmatprep.subr.bf16.mxu0 0
      %2286 = vmatpush1.bf16.msra.mxu0 0
      %2287 = vmatprep.subr.bf16.mxu0 0
      %2288 = vmatpush1.bf16.msra.mxu0 0
      %2289 = vmatprep.mubr.bf16.mxu0 0
      %2290 = vmatmul.mubr.bf16.gmra.mrb[0].mxu0 %v2129
      %v2291 = vpop.f32.mrb[0].mxu0
      %v2292 = vadd.f32 %v1236, %v2291
      %v2293 = vpop.f32.mrb[0].mxu0
      %v2294 = vadd.f32 %v1236, %v2293
      %v2295 = vpop.f32.mrb[0].mxu0
      %v2296 = vadd.f32 %v1241, %v2295
      %v2297 = vpop.f32.mrb[0].mxu0
      %v2298 = vadd.f32 %v1241, %v2297
      %2299 = vmatprep.mubr.bf16.mxu0 0
      %2300 = vmatmul.mubr.bf16.gmra.mrb[0].mxu0 %v2130
      %v2301 = vpop.f32.mrb[0].mxu0
      %v2302 = vadd.f32 %v1246, %v2301
      %v2303 = vpop.f32.mrb[0].mxu0
      %v2304 = vadd.f32 %v1246, %v2303
      %v2305 = vpop.f32.mrb[0].mxu0
      %v2306 = vadd.f32 %v1251, %v2305
      %v2307 = vpop.f32.mrb[0].mxu0
      %v2308 = vadd.f32 %v1251, %v2307
      %2309 = vmatprep.mubr.bf16.mxu0 0
      %2310 = vmatmul.mubr.bf16.gmra.mrb[0].mxu0 %v2131
      %v2311 = vpop.f32.mrb[0].mxu0
      %v2312 = vadd.f32 %v1256, %v2311
      %v2313 = vpop.f32.mrb[0].mxu0
      %v2314 = vadd.f32 %v1256, %v2313
      %v2315 = vpop.f32.mrb[0].mxu0
      %v2316 = vadd.f32 %v1261, %v2315
      %v2317 = vpop.f32.mrb[0].mxu0
      %v2318 = vadd.f32 %v1261, %v2317
      %2319 = vmatprep.mubr.bf16.mxu0 0
      %2320 = vmatmul.mubr.bf16.gmra.mrb[0].mxu0 %v2132
      %v2321 = vpop.f32.mrb[0].mxu0
      %v2322 = vadd.f32 %v1266, %v2321
      %v2323 = vpop.f32.mrb[0].mxu0
      %v2324 = vadd.f32 %v1266, %v2323
      %v2325 = vpop.f32.mrb[0].mxu0
      %v2326 = vadd.f32 %v1271, %v2325
      %v2327 = vpop.f32.mrb[0].mxu0
      %v2328 = vadd.f32 %v1271, %v2327
      %2329 = vmatprep.mubr.bf16.mxu0 0
      %2330 = vmatmul.mubr.bf16.gmra.mrb[0].mxu0 %v2133
      %v2331 = vpop.f32.mrb[0].mxu0
      %v2332 = vadd.f32 %v1276, %v2331
      %v2333 = vpop.f32.mrb[0].mxu0
      %v2334 = vadd.f32 %v1276, %v2333
      %v2335 = vpop.f32.mrb[0].mxu0
      %v2336 = vadd.f32 %v1281, %v2335
      %v2337 = vpop.f32.mrb[0].mxu0
      %v2338 = vadd.f32 %v1281, %v2337
      %2339 = vmatprep.mubr.bf16.mxu0 0
      %2340 = vmatmul.mubr.bf16.gmra.mrb[0].mxu0 %v2134
      %v2341 = vpop.f32.mrb[0].mxu0
      %v2342 = vadd.f32 %v1286, %v2341
      %v2343 = vpop.f32.mrb[0].mxu0
      %v2344 = vadd.f32 %v1286, %v2343
      %v2345 = vpop.f32.mrb[0].mxu0
      %v2346 = vadd.f32 %v1291, %v2345
      %v2347 = vpop.f32.mrb[0].mxu0
      %v2348 = vadd.f32 %v1291, %v2347
      %2349 = vmatprep.mubr.bf16.mxu0 0
      %2350 = vmatmul.mubr.bf16.gmra.mrb[0].mxu0 %v2135
      %v2351 = vpop.f32.mrb[0].mxu0
      %v2352 = vadd.f32 %v1296, %v2351
      %v2353 = vpop.f32.mrb[0].mxu0
      %v2354 = vadd.f32 %v1296, %v2353
      %v2355 = vpop.f32.mrb[0].mxu0
      %v2356 = vadd.f32 %v1301, %v2355
      %v2357 = vpop.f32.mrb[0].mxu0
      %v2358 = vadd.f32 %v1301, %v2357
      %2359 = vmatprep.mubr.bf16.mxu0 0
      %2360 = vmatmul.mubr.bf16.gmra.mrb[0].mxu0 %v2136
      %v2361 = vpop.f32.mrb[0].mxu0
      %v2362 = vadd.f32 %v1306, %v2361
      %v2363 = vpop.f32.mrb[0].mxu0
      %v2364 = vadd.f32 %v1306, %v2363
      %v2365 = vpop.f32.mrb[0].mxu0
      %v2366 = vadd.f32 %v1311, %v2365
      %v2367 = vpop.f32.mrb[0].mxu0
      %v2368 = vadd.f32 %v1311, %v2367
      %2369 = vmatprep.mubr.bf16.mxu0 0
      %2370 = vmatmul.mubr.bf16.gmra.mrb[0].mxu0 %v2137
      %v2371 = vpop.f32.mrb[0].mxu0
      %v2372 = vadd.f32 %v1316, %v2371
      %v2373 = vpop.f32.mrb[0].mxu0
      %v2374 = vadd.f32 %v1316, %v2373
      %v2375 = vpop.f32.mrb[0].mxu0
      %v2376 = vadd.f32 %v1321, %v2375
      %v2377 = vpop.f32.mrb[0].mxu0
      %v2378 = vadd.f32 %v1321, %v2377
      %2379 = vmatprep.mubr.bf16.mxu0 0
      %2380 = vmatmul.mubr.bf16.gmra.mrb[0].mxu0 %v2138
      %v2381 = vpop.f32.mrb[0].mxu0
      %v2382 = vadd.f32 %v1326, %v2381
      %v2383 = vpop.f32.mrb[0].mxu0
      %v2384 = vadd.f32 %v1326, %v2383
      %v2385 = vpop.f32.mrb[0].mxu0
      %v2386 = vadd.f32 %v1331, %v2385
      %v2387 = vpop.f32.mrb[0].mxu0
      %v2388 = vadd.f32 %v1331, %v2387
      %2389 = vmatprep.mubr.bf16.mxu0 0
      %2390 = vmatmul.mubr.bf16.gmra.mrb[0].mxu0 %v2139
      %v2391 = vpop.f32.mrb[0].mxu0
      %v2392 = vadd.f32 %v1336, %v2391
      %v2393 = vpop.f32.mrb[0].mxu0
      %v2394 = vadd.f32 %v1336, %v2393
      %v2395 = vpop.f32.mrb[0].mxu0
      %v2396 = vadd.f32 %v1341, %v2395
      %v2397 = vpop.f32.mrb[0].mxu0
      %v2398 = vadd.f32 %v1341, %v2397
      %2399 = vmatprep.mubr.bf16.mxu0 0
      %2400 = vmatmul.mubr.bf16.gmra.mrb[0].mxu0 %v2140
      %v2401 = vpop.f32.mrb[0].mxu0
      %v2402 = vadd.f32 %v1346, %v2401
      %v2403 = vpop.f32.mrb[0].mxu0
      %v2404 = vadd.f32 %v1346, %v2403
      %v2405 = vpop.f32.mrb[0].mxu0
      %v2406 = vadd.f32 %v1351, %v2405
      %v2407 = vpop.f32.mrb[0].mxu0
      %v2408 = vadd.f32 %v1351, %v2407
      %2409 = vmatprep.mubr.bf16.mxu0 0
      %2410 = vmatmul.mubr.bf16.gmra.mrb[0].mxu0 %v2141
      %v2411 = vpop.f32.mrb[0].mxu0
      %v2412 = vadd.f32 %v1356, %v2411
      %v2413 = vpop.f32.mrb[0].mxu0
      %v2414 = vadd.f32 %v1356, %v2413
      %v2415 = vpop.f32.mrb[0].mxu0
      %v2416 = vadd.f32 %v1361, %v2415
      %v2417 = vpop.f32.mrb[0].mxu0
      %v2418 = vadd.f32 %v1361, %v2417
      %2419 = vmatprep.mubr.bf16.mxu0 0
      %2420 = vmatmul.mubr.bf16.gmra.mrb[0].mxu0 %v2142
      %v2421 = vpop.f32.mrb[0].mxu0
      %v2422 = vadd.f32 %v1366, %v2421
      %v2423 = vpop.f32.mrb[0].mxu0
      %v2424 = vadd.f32 %v1366, %v2423
      %v2425 = vpop.f32.mrb[0].mxu0
      %v2426 = vadd.f32 %v1371, %v2425
      %v2427 = vpop.f32.mrb[0].mxu0
      %v2428 = vadd.f32 %v1371, %v2427
      %2429 = vmatprep.mubr.bf16.mxu0 0
      %2430 = vmatmul.mubr.bf16.gmra.mrb[0].mxu0 %v2143
      %v2431 = vpop.f32.mrb[0].mxu0
      %v2432 = vadd.f32 %v1376, %v2431
      %v2433 = vpop.f32.mrb[0].mxu0
      %v2434 = vadd.f32 %v1376, %v2433
      %v2435 = vpop.f32.mrb[0].mxu0
      %v2436 = vadd.f32 %v1381, %v2435
      %v2437 = vpop.f32.mrb[0].mxu0
      %v2438 = vadd.f32 %v1381, %v2437
      %2439 = vmatprep.mubr.bf16.mxu0 0
      %2440 = vmatmul.mubr.bf16.gmra.mrb[0].mxu0 %v2144
      %v2441 = vpop.f32.mrb[0].mxu0
      %v2442 = vadd.f32 %v1386, %v2441
      %v2443 = vpop.f32.mrb[0].mxu0
      %v2444 = vadd.f32 %v1386, %v2443
      %v2445 = vpop.f32.mrb[0].mxu0
      %v2446 = vadd.f32 %v1391, %v2445
      %v2447 = vpop.f32.mrb[0].mxu0
      %v2448 = vadd.f32 %v1391, %v2447
      %2449 = vmatprep.mubr.bf16.mxu0 0
      %2450 = vmatmul.mubr.bf16.gmra.mrb[0].mxu0 %v2145
      %v2451 = vpop.f32.mrb[0].mxu0
      %v2452 = vadd.f32 %v1396, %v2451
      %v2453 = vpop.f32.mrb[0].mxu0
      %v2454 = vadd.f32 %v1396, %v2453
      %v2455 = vpop.f32.mrb[0].mxu0
      %v2456 = vadd.f32 %v1401, %v2455
      %v2457 = vpop.f32.mrb[0].mxu0
      %v2458 = vadd.f32 %v1401, %v2457
      %2459 = vmatprep.mubr.bf16.mxu0 0
      %2460 = vmatmul.mubr.bf16.gmra.mrb[0].mxu0 %v2146
      %v2461 = vpop.f32.mrb[0].mxu0
      %v2462 = vadd.f32 %v1406, %v2461
      %v2463 = vpop.f32.mrb[0].mxu0
      %v2464 = vadd.f32 %v1406, %v2463
      %v2465 = vpop.f32.mrb[0].mxu0
      %v2466 = vadd.f32 %v1411, %v2465
      %v2467 = vpop.f32.mrb[0].mxu0
      %v2468 = vadd.f32 %v1411, %v2467
      %2469 = vmatprep.mubr.bf16.mxu0 0
      %2470 = vmatmul.mubr.bf16.gmra.mrb[0].mxu0 %v2147
      %v2471 = vpop.f32.mrb[0].mxu0
      %v2472 = vadd.f32 %v1416, %v2471
      %v2473 = vpop.f32.mrb[0].mxu0
      %v2474 = vadd.f32 %v1416, %v2473
      %v2475 = vpop.f32.mrb[0].mxu0
      %v2476 = vadd.f32 %v1421, %v2475
      %v2477 = vpop.f32.mrb[0].mxu0
      %v2478 = vadd.f32 %v1421, %v2477
      %2479 = vmatprep.mubr.bf16.mxu0 0
      %2480 = vmatmul.mubr.bf16.gmra.mrb[0].mxu0 %v2148
      %v2481 = vpop.f32.mrb[0].mxu0
      %v2482 = vadd.f32 %v1426, %v2481
      %v2483 = vpop.f32.mrb[0].mxu0
      %v2484 = vadd.f32 %v1426, %v2483
      %v2485 = vpop.f32.mrb[0].mxu0
      %v2486 = vadd.f32 %v1431, %v2485
      %v2487 = vpop.f32.mrb[0].mxu0
      %v2488 = vadd.f32 %v1431, %v2487
      %2489 = vmatprep.mubr.bf16.mxu0 0
      %2490 = vmatmul.mubr.bf16.gmra.mrb[0].mxu0 %v2149
      %v2491 = vpop.f32.mrb[0].mxu0
      %v2492 = vadd.f32 %v1436, %v2491
      %v2493 = vpop.f32.mrb[0].mxu0
      %v2494 = vadd.f32 %v1436, %v2493
      %v2495 = vpop.f32.mrb[0].mxu0
      %v2496 = vadd.f32 %v1441, %v2495
      %v2497 = vpop.f32.mrb[0].mxu0
      %v2498 = vadd.f32 %v1441, %v2497
      %2499 = vmatprep.mubr.bf16.mxu0 0
      %2500 = vmatmul.mubr.bf16.gmra.mrb[0].mxu0 %v2150
      %v2501 = vpop.f32.mrb[0].mxu0
      %v2502 = vadd.f32 %v1446, %v2501
      %v2503 = vpop.f32.mrb[0].mxu0
      %v2504 = vadd.f32 %v1446, %v2503
      %v2505 = vpop.f32.mrb[0].mxu0
      %v2506 = vadd.f32 %v1451, %v2505
      %v2507 = vpop.f32.mrb[0].mxu0
      %v2508 = vadd.f32 %v1451, %v2507
      %2509 = vmatprep.mubr.bf16.mxu0 0
      %2510 = vmatmul.mubr.bf16.gmra.mrb[0].mxu0 %v2151
      %v2511 = vpop.f32.mrb[0].mxu0
      %v2512 = vadd.f32 %v1456, %v2511
      %v2513 = vpop.f32.mrb[0].mxu0
      %v2514 = vadd.f32 %v1456, %v2513
      %v2515 = vpop.f32.mrb[0].mxu0
      %v2516 = vadd.f32 %v1461, %v2515
      %v2517 = vpop.f32.mrb[0].mxu0
      %v2518 = vadd.f32 %v1461, %v2517
      %2519 = vmatprep.mubr.bf16.mxu0 0
      %2520 = vmatmul.mubr.bf16.gmra.mrb[0].mxu0 %v2152
      %v2521 = vpop.f32.mrb[0].mxu0
      %v2522 = vadd.f32 %v1466, %v2521
      %v2523 = vpop.f32.mrb[0].mxu0
      %v2524 = vadd.f32 %v1466, %v2523
      %v2525 = vpop.f32.mrb[0].mxu0
      %v2526 = vadd.f32 %v1471, %v2525
      %v2527 = vpop.f32.mrb[0].mxu0
      %v2528 = vadd.f32 %v1471, %v2527
      %2529 = vmatprep.mubr.bf16.mxu0 0
      %2530 = vmatmul.mubr.bf16.gmra.mrb[0].mxu0 %v2153
      %v2531 = vpop.f32.mrb[0].mxu0
      %v2532 = vadd.f32 %v1476, %v2531
      %v2533 = vpop.f32.mrb[0].mxu0
      %v2534 = vadd.f32 %v1476, %v2533
      %v2535 = vpop.f32.mrb[0].mxu0
      %v2536 = vadd.f32 %v1481, %v2535
      %v2537 = vpop.f32.mrb[0].mxu0
      %v2538 = vadd.f32 %v1481, %v2537
      %2539 = vmatprep.mubr.bf16.mxu0 0
      %2540 = vmatmul.mubr.bf16.gmra.mrb[0].mxu0 %v2154
      %v2541 = vpop.f32.mrb[0].mxu0
      %v2542 = vadd.f32 %v1486, %v2541
      %v2543 = vpop.f32.mrb[0].mxu0
      %v2544 = vadd.f32 %v1486, %v2543
      %v2545 = vpop.f32.mrb[0].mxu0
      %v2546 = vadd.f32 %v1491, %v2545
      %v2547 = vpop.f32.mrb[0].mxu0
      %v2548 = vadd.f32 %v1491, %v2547
      %2549 = vmatprep.mubr.bf16.mxu0 0
      %2550 = vmatmul.mubr.bf16.gmra.mrb[0].mxu0 %v2155
      %v2551 = vpop.f32.mrb[0].mxu0
      %v2552 = vadd.f32 %v1496, %v2551
      %v2553 = vpop.f32.mrb[0].mxu0
      %v2554 = vadd.f32 %v1496, %v2553
      %v2555 = vpop.f32.mrb[0].mxu0
      %v2556 = vadd.f32 %v1501, %v2555
      %v2557 = vpop.f32.mrb[0].mxu0
      %v2558 = vadd.f32 %v1501, %v2557
      %2559 = vmatprep.mubr.bf16.mxu0 0
      %2560 = vmatmul.mubr.bf16.gmra.mrb[0].mxu0 %v2156
      %v2561 = vpop.f32.mrb[0].mxu0
      %v2562 = vadd.f32 %v1506, %v2561
      %v2563 = vpop.f32.mrb[0].mxu0
      %v2564 = vadd.f32 %v1506, %v2563
      %v2565 = vpop.f32.mrb[0].mxu0
      %v2566 = vadd.f32 %v1511, %v2565
      %v2567 = vpop.f32.mrb[0].mxu0
      %v2568 = vadd.f32 %v1511, %v2567
      %2569 = vmatprep.mubr.bf16.mxu0 0
      %2570 = vmatmul.mubr.bf16.gmra.mrb[0].mxu0 %v2157
      %v2571 = vpop.f32.mrb[0].mxu0
      %v2572 = vadd.f32 %v1516, %v2571
      %v2573 = vpop.f32.mrb[0].mxu0
      %v2574 = vadd.f32 %v1516, %v2573
      %v2575 = vpop.f32.mrb[0].mxu0
      %v2576 = vadd.f32 %v1521, %v2575
      %v2577 = vpop.f32.mrb[0].mxu0
      %v2578 = vadd.f32 %v1521, %v2577
      %2579 = vmatprep.mubr.bf16.mxu0 0
      %2580 = vmatmul.mubr.bf16.gmra.mrb[0].mxu0 %v2158
      %v2581 = vpop.f32.mrb[0].mxu0
      %v2582 = vadd.f32 %v1526, %v2581
      %v2583 = vpop.f32.mrb[0].mxu0
      %v2584 = vadd.f32 %v1526, %v2583
      %v2585 = vpop.f32.mrb[0].mxu0
      %v2586 = vadd.f32 %v1531, %v2585
      %v2587 = vpop.f32.mrb[0].mxu0
      %v2588 = vadd.f32 %v1531, %v2587
      %2589 = vmatprep.mubr.bf16.mxu0 0
      %2590 = vmatmul.mubr.bf16.gmra.mrb[0].mxu0 %v2159
      %v2591 = vpop.f32.mrb[0].mxu0
      %v2592 = vadd.f32 %v1536, %v2591
      %v2593 = vpop.f32.mrb[0].mxu0
      %v2594 = vadd.f32 %v1536, %v2593
      %v2595 = vpop.f32.mrb[0].mxu0
      %v2596 = vadd.f32 %v1541, %v2595
      %v2597 = vpop.f32.mrb[0].mxu0
      %v2598 = vadd.f32 %v1541, %v2597
      %2599 = vmatprep.mubr.bf16.mxu0 0
      %2600 = vmatmul.mubr.bf16.gmra.mrb[0].mxu0 %v2160
      %v2601 = vpop.f32.mrb[0].mxu0
      %v2602 = vadd.f32 %v1546, %v2601
      %v2603 = vpop.f32.mrb[0].mxu0
      %v2604 = vadd.f32 %v1546, %v2603
      %v2605 = vpop.f32.mrb[0].mxu0
      %v2606 = vadd.f32 %v1551, %v2605
      %v2607 = vpop.f32.mrb[0].mxu0
      %v2608 = vadd.f32 %v1551, %v2607
      %2609 = vmatprep.mubr.bf16.mxu0 0
      %2610 = vmatmul.mubr.bf16.gmra.mrb[0].mxu0 %v2161
      %v2611 = vpop.f32.mrb[0].mxu0
      %v2612 = vadd.f32 %v1556, %v2611
      %v2613 = vpop.f32.mrb[0].mxu0
      %v2614 = vadd.f32 %v1556, %v2613
      %v2615 = vpop.f32.mrb[0].mxu0
      %v2616 = vadd.f32 %v1561, %v2615
      %v2617 = vpop.f32.mrb[0].mxu0
      %v2618 = vadd.f32 %v1561, %v2617
      %2619 = vmatprep.mubr.bf16.mxu0 0
      %2620 = vmatmul.mubr.bf16.gmra.mrb[0].mxu0 %v2162
      %v2621 = vpop.f32.mrb[0].mxu0
      %v2622 = vadd.f32 %v1566, %v2621
      %v2623 = vpop.f32.mrb[0].mxu0
      %v2624 = vadd.f32 %v1566, %v2623
      %v2625 = vpop.f32.mrb[0].mxu0
      %v2626 = vadd.f32 %v1571, %v2625
      %v2627 = vpop.f32.mrb[0].mxu0
      %v2628 = vadd.f32 %v1571, %v2627
      %2629 = vmatprep.mubr.bf16.mxu0 0
      %2630 = vmatmul.mubr.bf16.gmra.mrb[0].mxu0 %v2163
      %v2631 = vpop.f32.mrb[0].mxu0
      %v2632 = vadd.f32 %v1576, %v2631
      %v2633 = vpop.f32.mrb[0].mxu0
      %v2634 = vadd.f32 %v1576, %v2633
      %v2635 = vpop.f32.mrb[0].mxu0
      %v2636 = vadd.f32 %v1581, %v2635
      %v2637 = vpop.f32.mrb[0].mxu0
      %v2638 = vadd.f32 %v1581, %v2637
      %2639 = vmatprep.mubr.bf16.mxu0 0
      %2640 = vmatmul.mubr.bf16.gmra.mrb[0].mxu0 %v2164
      %v2641 = vpop.f32.mrb[0].mxu0
      %v2642 = vadd.f32 %v1586, %v2641
      %v2643 = vpop.f32.mrb[0].mxu0
      %v2644 = vadd.f32 %v1586, %v2643
      %v2645 = vpop.f32.mrb[0].mxu0
      %v2646 = vadd.f32 %v1591, %v2645
      %v2647 = vpop.f32.mrb[0].mxu0
      %v2648 = vadd.f32 %v1591, %v2647
      %2649 = vmatprep.mubr.bf16.mxu0 0
      %2650 = vmatmul.mubr.bf16.gmra.mrb[0].mxu0 %v2165
      %v2651 = vpop.f32.mrb[0].mxu0
      %v2652 = vadd.f32 %v1596, %v2651
      %v2653 = vpop.f32.mrb[0].mxu0
      %v2654 = vadd.f32 %v1596, %v2653
      %v2655 = vpop.f32.mrb[0].mxu0
      %v2656 = vadd.f32 %v1601, %v2655
      %v2657 = vpop.f32.mrb[0].mxu0
      %v2658 = vadd.f32 %v1601, %v2657
      %2659 = vmatprep.mubr.bf16.mxu0 0
      %2660 = vmatmul.mubr.bf16.gmra.mrb[0].mxu0 %v2166
      %v2661 = vpop.f32.mrb[0].mxu0
      %v2662 = vadd.f32 %v1606, %v2661
      %v2663 = vpop.f32.mrb[0].mxu0
      %v2664 = vadd.f32 %v1606, %v2663
      %v2665 = vpop.f32.mrb[0].mxu0
      %v2666 = vadd.f32 %v1611, %v2665
      %v2667 = vpop.f32.mrb[0].mxu0
      %v2668 = vadd.f32 %v1611, %v2667
      %2669 = vmatprep.mubr.bf16.mxu0 0
      %2670 = vmatmul.mubr.bf16.gmra.mrb[0].mxu0 %v2167
      %v2671 = vpop.f32.mrb[0].mxu0
      %v2672 = vadd.f32 %v1616, %v2671
      %v2673 = vpop.f32.mrb[0].mxu0
      %v2674 = vadd.f32 %v1616, %v2673
      %v2675 = vpop.f32.mrb[0].mxu0
      %v2676 = vadd.f32 %v1621, %v2675
      %v2677 = vpop.f32.mrb[0].mxu0
      %v2678 = vadd.f32 %v1621, %v2677
      %2679 = vmatprep.mubr.bf16.mxu0 0
      %2680 = vmatmul.mubr.bf16.gmra.mrb[0].mxu0 %v2168
      %v2681 = vpop.f32.mrb[0].mxu0
      %v2682 = vadd.f32 %v1626, %v2681
      %v2683 = vpop.f32.mrb[0].mxu0
      %v2684 = vadd.f32 %v1626, %v2683
      %v2685 = vpop.f32.mrb[0].mxu0
      %v2686 = vadd.f32 %v1631, %v2685
      %v2687 = vpop.f32.mrb[0].mxu0
      %v2688 = vadd.f32 %v1631, %v2687
      %2689 = vmatprep.mubr.bf16.mxu0 0
      %2690 = vmatmul.mubr.bf16.gmra.mrb[0].mxu0 %v2169
      %v2691 = vpop.f32.mrb[0].mxu0
      %v2692 = vadd.f32 %v1636, %v2691
      %v2693 = vpop.f32.mrb[0].mxu0
      %v2694 = vadd.f32 %v1636, %v2693
      %v2695 = vpop.f32.mrb[0].mxu0
      %v2696 = vadd.f32 %v1641, %v2695
      %v2697 = vpop.f32.mrb[0].mxu0
      %v2698 = vadd.f32 %v1641, %v2697
      %2699 = vmatprep.mubr.bf16.mxu0 0
      %2700 = vmatmul.mubr.bf16.gmra.mrb[0].mxu0 %v2170
      %v2701 = vpop.f32.mrb[0].mxu0
      %v2702 = vadd.f32 %v1646, %v2701
      %v2703 = vpop.f32.mrb[0].mxu0
      %v2704 = vadd.f32 %v1646, %v2703
      %v2705 = vpop.f32.mrb[0].mxu0
      %v2706 = vadd.f32 %v1651, %v2705
      %v2707 = vpop.f32.mrb[0].mxu0
      %v2708 = vadd.f32 %v1651, %v2707
      %2709 = vmatprep.mubr.bf16.mxu0 0
      %2710 = vmatmul.mubr.bf16.gmra.mrb[0].mxu0 %v2171
      %v2711 = vpop.f32.mrb[0].mxu0
      %v2712 = vadd.f32 %v1656, %v2711
      %v2713 = vpop.f32.mrb[0].mxu0
      %v2714 = vadd.f32 %v1656, %v2713
      %v2715 = vpop.f32.mrb[0].mxu0
      %v2716 = vadd.f32 %v1661, %v2715
      %v2717 = vpop.f32.mrb[0].mxu0
      %v2718 = vadd.f32 %v1661, %v2717
      %2719 = vmatprep.mubr.bf16.mxu0 0
      %2720 = vmatmul.mubr.bf16.gmra.mrb[0].mxu0 %v2172
      %v2721 = vpop.f32.mrb[0].mxu0
      %v2722 = vadd.f32 %v1666, %v2721
      %v2723 = vpop.f32.mrb[0].mxu0
      %v2724 = vadd.f32 %v1666, %v2723
      %v2725 = vpop.f32.mrb[0].mxu0
      %v2726 = vadd.f32 %v1671, %v2725
      %v2727 = vpop.f32.mrb[0].mxu0
      %v2728 = vadd.f32 %v1671, %v2727
      %2729 = vmatprep.mubr.bf16.mxu0 0
      %2730 = vmatmul.mubr.bf16.gmra.mrb[0].mxu0 %v2173
      %v2731 = vpop.f32.mrb[0].mxu0
      %v2732 = vadd.f32 %v1676, %v2731
      %v2733 = vpop.f32.mrb[0].mxu0
      %v2734 = vadd.f32 %v1676, %v2733
      %v2735 = vpop.f32.mrb[0].mxu0
      %v2736 = vadd.f32 %v1681, %v2735
      %v2737 = vpop.f32.mrb[0].mxu0
      %v2738 = vadd.f32 %v1681, %v2737
      %2739 = vmatprep.mubr.bf16.mxu0 0
      %2740 = vmatmul.mubr.bf16.gmra.mrb[0].mxu0 %v2174
      %v2741 = vpop.f32.mrb[0].mxu0
      %v2742 = vadd.f32 %v1686, %v2741
      %v2743 = vpop.f32.mrb[0].mxu0
      %v2744 = vadd.f32 %v1686, %v2743
      %v2745 = vpop.f32.mrb[0].mxu0
      %v2746 = vadd.f32 %v1691, %v2745
      %v2747 = vpop.f32.mrb[0].mxu0
      %v2748 = vadd.f32 %v1691, %v2747
      %2749 = vmatprep.mubr.bf16.mxu0 0
      %2750 = vmatmul.mubr.bf16.gmra.mrb[0].mxu0 %v2175
      %v2751 = vpop.f32.mrb[0].mxu0
      %v2752 = vadd.f32 %v1696, %v2751
      %v2753 = vpop.f32.mrb[0].mxu0
      %v2754 = vadd.f32 %v1696, %v2753
      %v2755 = vpop.f32.mrb[0].mxu0
      %v2756 = vadd.f32 %v1701, %v2755
      %v2757 = vpop.f32.mrb[0].mxu0
      %v2758 = vadd.f32 %v1701, %v2757
      %2759 = vmatprep.mubr.bf16.mxu0 0
      %2760 = vmatmul.mubr.bf16.gmra.mrb[0].mxu0 %v2176
      %v2761 = vpop.f32.mrb[0].mxu0
      %v2762 = vadd.f32 %v1706, %v2761
      %v2763 = vpop.f32.mrb[0].mxu0
      %v2764 = vadd.f32 %v1706, %v2763
      %v2765 = vpop.f32.mrb[0].mxu0
      %v2766 = vadd.f32 %v1711, %v2765
      %v2767 = vpop.f32.mrb[0].mxu0
      %v2768 = vadd.f32 %v1711, %v2767
      %2769 = vmatprep.mubr.bf16.mxu0 0
      %2770 = vmatmul.mubr.bf16.gmra.mrb[0].mxu0 %v2177
      %v2771 = vpop.f32.mrb[0].mxu0
      %v2772 = vadd.f32 %v1716, %v2771
      %v2773 = vpop.f32.mrb[0].mxu0
      %v2774 = vadd.f32 %v1716, %v2773
      %v2775 = vpop.f32.mrb[0].mxu0
      %v2776 = vadd.f32 %v1721, %v2775
      %v2777 = vpop.f32.mrb[0].mxu0
      %v2778 = vadd.f32 %v1721, %v2777
      %2779 = vmatprep.mubr.bf16.mxu0 0
      %2780 = vmatmul.mubr.bf16.gmra.mrb[0].mxu0 %v2178
      %v2781 = vpop.f32.mrb[0].mxu0
      %v2782 = vadd.f32 %v1726, %v2781
      %v2783 = vpop.f32.mrb[0].mxu0
      %v2784 = vadd.f32 %v1726, %v2783
      %v2785 = vpop.f32.mrb[0].mxu0
      %v2786 = vadd.f32 %v1731, %v2785
      %v2787 = vpop.f32.mrb[0].mxu0
      %v2788 = vadd.f32 %v1731, %v2787
      %2789 = vmatprep.mubr.bf16.mxu0 0
      %2790 = vmatmul.mubr.bf16.gmra.mrb[0].mxu0 %v2179
      %v2791 = vpop.f32.mrb[0].mxu0
      %v2792 = vadd.f32 %v1736, %v2791
      %v2793 = vpop.f32.mrb[0].mxu0
      %v2794 = vadd.f32 %v1736, %v2793
      %v2795 = vpop.f32.mrb[0].mxu0
      %v2796 = vadd.f32 %v1741, %v2795
      %v2797 = vpop.f32.mrb[0].mxu0
      %v2798 = vadd.f32 %v1741, %v2797
      %2799 = vmatprep.mubr.bf16.mxu0 0
      %2800 = vmatmul.mubr.bf16.gmra.mrb[0].mxu0 %v2180
      %v2801 = vpop.f32.mrb[0].mxu0
      %v2802 = vadd.f32 %v1746, %v2801
      %v2803 = vpop.f32.mrb[0].mxu0
      %v2804 = vadd.f32 %v1746, %v2803
      %v2805 = vpop.f32.mrb[0].mxu0
      %v2806 = vadd.f32 %v1751, %v2805
      %v2807 = vpop.f32.mrb[0].mxu0
      %v2808 = vadd.f32 %v1751, %v2807
      %2809 = vmatprep.mubr.bf16.mxu0 0
      %2810 = vmatmul.mubr.bf16.gmra.mrb[0].mxu0 %v2181
      %v2811 = vpop.f32.mrb[0].mxu0
      %v2812 = vadd.f32 %v1756, %v2811
      %v2813 = vpop.f32.mrb[0].mxu0
      %v2814 = vadd.f32 %v1756, %v2813
      %v2815 = vpop.f32.mrb[0].mxu0
      %v2816 = vadd.f32 %v1761, %v2815
      %v2817 = vpop.f32.mrb[0].mxu0
      %v2818 = vadd.f32 %v1761, %v2817
      %2819 = vmatprep.mubr.bf16.mxu0 0
      %2820 = vmatmul.mubr.bf16.gmra.mrb[0].mxu0 %v2182
      %v2821 = vpop.f32.mrb[0].mxu0
      %v2822 = vadd.f32 %v1766, %v2821
      %v2823 = vpop.f32.mrb[0].mxu0
      %v2824 = vadd.f32 %v1766, %v2823
      %v2825 = vpop.f32.mrb[0].mxu0
      %v2826 = vadd.f32 %v1771, %v2825
      %v2827 = vpop.f32.mrb[0].mxu0
      %v2828 = vadd.f32 %v1771, %v2827
      %2829 = vmatprep.mubr.bf16.mxu0 0
      %2830 = vmatmul.mubr.bf16.gmra.mrb[0].mxu0 %v2183
      %v2831 = vpop.f32.mrb[0].mxu0
      %v2832 = vadd.f32 %v1776, %v2831
      %v2833 = vpop.f32.mrb[0].mxu0
      %v2834 = vadd.f32 %v1776, %v2833
      %v2835 = vpop.f32.mrb[0].mxu0
      %v2836 = vadd.f32 %v1781, %v2835
      %v2837 = vpop.f32.mrb[0].mxu0
      %v2838 = vadd.f32 %v1781, %v2837
      %2839 = vmatprep.mubr.bf16.mxu0 0
      %2840 = vmatmul.mubr.bf16.gmra.mrb[0].mxu0 %v2184
      %v2841 = vpop.f32.mrb[0].mxu0
      %v2842 = vadd.f32 %v1786, %v2841
      %v2843 = vpop.f32.mrb[0].mxu0
      %v2844 = vadd.f32 %v1786, %v2843
      %v2845 = vpop.f32.mrb[0].mxu0
      %v2846 = vadd.f32 %v1791, %v2845
      %v2847 = vpop.f32.mrb[0].mxu0
      %v2848 = vadd.f32 %v1791, %v2847
      %2849 = vmatprep.mubr.bf16.mxu0 0
      %2850 = vmatmul.mubr.bf16.gmra.mrb[0].mxu0 %v2185
      %v2851 = vpop.f32.mrb[0].mxu0
      %v2852 = vadd.f32 %v1796, %v2851
      %v2853 = vpop.f32.mrb[0].mxu0
      %v2854 = vadd.f32 %v1796, %v2853
      %v2855 = vpop.f32.mrb[0].mxu0
      %v2856 = vadd.f32 %v1801, %v2855
      %v2857 = vpop.f32.mrb[0].mxu0
      %v2858 = vadd.f32 %v1801, %v2857
      %2859 = vmatprep.mubr.bf16.mxu0 0
      %2860 = vmatmul.mubr.bf16.gmra.mrb[0].mxu0 %v2186
      %v2861 = vpop.f32.mrb[0].mxu0
      %v2862 = vadd.f32 %v1806, %v2861
      %v2863 = vpop.f32.mrb[0].mxu0
      %v2864 = vadd.f32 %v1806, %v2863
      %v2865 = vpop.f32.mrb[0].mxu0
      %v2866 = vadd.f32 %v1811, %v2865
      %v2867 = vpop.f32.mrb[0].mxu0
      %v2868 = vadd.f32 %v1811, %v2867
      %2869 = vmatprep.mubr.bf16.mxu0 0
      %2870 = vmatmul.mubr.bf16.gmra.mrb[0].mxu0 %v2187
      %v2871 = vpop.f32.mrb[0].mxu0
      %v2872 = vadd.f32 %v1816, %v2871
      %v2873 = vpop.f32.mrb[0].mxu0
      %v2874 = vadd.f32 %v1816, %v2873
      %v2875 = vpop.f32.mrb[0].mxu0
      %v2876 = vadd.f32 %v1821, %v2875
      %v2877 = vpop.f32.mrb[0].mxu0
      %v2878 = vadd.f32 %v1821, %v2877
      %2879 = vmatprep.mubr.bf16.mxu0 0
      %2880 = vmatmul.mubr.bf16.gmra.mrb[0].mxu0 %v2188
      %v2881 = vpop.f32.mrb[0].mxu0
      %v2882 = vadd.f32 %v1826, %v2881
      %v2883 = vpop.f32.mrb[0].mxu0
      %v2884 = vadd.f32 %v1826, %v2883
      %v2885 = vpop.f32.mrb[0].mxu0
      %v2886 = vadd.f32 %v1831, %v2885
      %v2887 = vpop.f32.mrb[0].mxu0
      %v2888 = vadd.f32 %v1831, %v2887
      %2889 = vmatprep.mubr.bf16.mxu0 0
      %2890 = vmatmul.mubr.bf16.gmra.mrb[0].mxu0 %v2189
      %v2891 = vpop.f32.mrb[0].mxu0
      %v2892 = vadd.f32 %v1836, %v2891
      %v2893 = vpop.f32.mrb[0].mxu0
      %v2894 = vadd.f32 %v1836, %v2893
      %v2895 = vpop.f32.mrb[0].mxu0
      %v2896 = vadd.f32 %v1841, %v2895
      %v2897 = vpop.f32.mrb[0].mxu0
      %v2898 = vadd.f32 %v1841, %v2897
      %2899 = vmatprep.mubr.bf16.mxu0 0
      %2900 = vmatmul.mubr.bf16.gmra.mrb[0].mxu0 %v2190
      %v2901 = vpop.f32.mrb[0].mxu0
      %v2902 = vadd.f32 %v1846, %v2901
      %v2903 = vpop.f32.mrb[0].mxu0
      %v2904 = vadd.f32 %v1846, %v2903
      %v2905 = vpop.f32.mrb[0].mxu0
      %v2906 = vadd.f32 %v1851, %v2905
      %v2907 = vpop.f32.mrb[0].mxu0
      %v2908 = vadd.f32 %v1851, %v2907
      %2909 = vmatprep.mubr.bf16.mxu0 0
      %2910 = vmatmul.mubr.bf16.gmra.mrb[0].mxu0 %v2191
      %v2911 = vpop.f32.mrb[0].mxu0
      %v2912 = vadd.f32 %v1856, %v2911
      %v2913 = vpop.f32.mrb[0].mxu0
      %v2914 = vadd.f32 %v1856, %v2913
      %v2915 = vpop.f32.mrb[0].mxu0
      %v2916 = vadd.f32 %v1861, %v2915
      %v2917 = vpop.f32.mrb[0].mxu0
      %v2918 = vadd.f32 %v1861, %v2917
      %2919 = vmatprep.mubr.bf16.mxu0 0
      %2920 = vmatmul.mubr.bf16.gmra.mrb[0].mxu0 %v2192
      %v2921 = vpop.f32.mrb[0].mxu0
      %v2922 = vadd.f32 %v1866, %v2921
      %v2923 = vpop.f32.mrb[0].mxu0
      %v2924 = vadd.f32 %v1866, %v2923
      %v2925 = vpop.f32.mrb[0].mxu0
      %v2926 = vadd.f32 %v1871, %v2925
      %v2927 = vpop.f32.mrb[0].mxu0
      %v2928 = vadd.f32 %v1871, %v2927
      %2929 = vdwg.mxu0
      %v2930 = vld [vmem:[%s306] sm:$0xff]
      %v2931 = vld [vmem:[%s306 + $0x8] sm:$0xff]
      %v2932 = vld [vmem:[%s306 + $0x10] sm:$0xff]
      %v2933 = vld [vmem:[%s306 + $0x18] sm:$0xff]
      %v2934 = vld [vmem:[%s306 + $0x20] sm:$0xff]
      %v2935 = vld [vmem:[%s306 + $0x28] sm:$0xff]
      %v2936 = vld [vmem:[%s306 + $0x30] sm:$0xff]
      %v2937 = vld [vmem:[%s306 + $0x38] sm:$0xff]
      %v2938 = vld [vmem:[%s306 + $0x40] sm:$0xff]
      %v2939 = vld [vmem:[%s306 + $0x48] sm:$0xff]
      %v2940 = vld [vmem:[%s306 + $0x50] sm:$0xff]
      %v2941 = vld [vmem:[%s306 + $0x58] sm:$0xff]
      %v2942 = vld [vmem:[%s306 + $0x60] sm:$0xff]
      %v2943 = vld [vmem:[%s306 + $0x68] sm:$0xff]
      %v2944 = vld [vmem:[%s306 + $0x70] sm:$0xff]
      %v2945 = vld [vmem:[%s306 + $0x78] sm:$0xff]
      %v2946 = vld [vmem:[%s306 + $0x80] sm:$0xff]
      %v2947 = vld [vmem:[%s306 + $0x88] sm:$0xff]
      %v2948 = vld [vmem:[%s306 + $0x90] sm:$0xff]
      %v2949 = vld [vmem:[%s306 + $0x98] sm:$0xff]
      %v2950 = vld [vmem:[%s306 + $0xa0] sm:$0xff]
      %v2951 = vld [vmem:[%s306 + $0xa8] sm:$0xff]
      %v2952 = vld [vmem:[%s306 + $0xb0] sm:$0xff]
      %v2953 = vld [vmem:[%s306 + $0xb8] sm:$0xff]
      %v2954 = vld [vmem:[%s306 + $0xc0] sm:$0xff]
      %v2955 = vld [vmem:[%s306 + $0xc8] sm:$0xff]
      %v2956 = vld [vmem:[%s306 + $0xd0] sm:$0xff]
      %v2957 = vld [vmem:[%s306 + $0xd8] sm:$0xff]
      %v2958 = vld [vmem:[%s306 + $0xe0] sm:$0xff]
      %v2959 = vld [vmem:[%s306 + $0xe8] sm:$0xff]
      %v2960 = vld [vmem:[%s306 + $0xf0] sm:$0xff]
      %v2961 = vld [vmem:[%s306 + $0xf8] sm:$0xff]
      %v2962 = vld [vmem:[%s306 + $0x100] sm:$0xff]
      %v2963 = vld [vmem:[%s306 + $0x108] sm:$0xff]
      %v2964 = vld [vmem:[%s306 + $0x110] sm:$0xff]
      %v2965 = vld [vmem:[%s306 + $0x118] sm:$0xff]
      %v2966 = vld [vmem:[%s306 + $0x120] sm:$0xff]
      %v2967 = vld [vmem:[%s306 + $0x128] sm:$0xff]
      %v2968 = vld [vmem:[%s306 + $0x130] sm:$0xff]
      %v2969 = vld [vmem:[%s306 + $0x138] sm:$0xff]
      %v2970 = vld [vmem:[%s306 + $0x140] sm:$0xff]
      %v2971 = vld [vmem:[%s306 + $0x148] sm:$0xff]
      %v2972 = vld [vmem:[%s306 + $0x150] sm:$0xff]
      %v2973 = vld [vmem:[%s306 + $0x158] sm:$0xff]
      %v2974 = vld [vmem:[%s306 + $0x160] sm:$0xff]
      %v2975 = vld [vmem:[%s306 + $0x168] sm:$0xff]
      %v2976 = vld [vmem:[%s306 + $0x170] sm:$0xff]
      %v2977 = vld [vmem:[%s306 + $0x178] sm:$0xff]
      %v2978 = vld [vmem:[%s306 + $0x180] sm:$0xff]
      %v2979 = vld [vmem:[%s306 + $0x188] sm:$0xff]
      %v2980 = vld [vmem:[%s306 + $0x190] sm:$0xff]
      %v2981 = vld [vmem:[%s306 + $0x198] sm:$0xff]
      %v2982 = vld [vmem:[%s306 + $0x1a0] sm:$0xff]
      %v2983 = vld [vmem:[%s306 + $0x1a8] sm:$0xff]
      %v2984 = vld [vmem:[%s306 + $0x1b0] sm:$0xff]
      %v2985 = vld [vmem:[%s306 + $0x1b8] sm:$0xff]
      %v2986 = vld [vmem:[%s306 + $0x1c0] sm:$0xff]
      %v2987 = vld [vmem:[%s306 + $0x1c8] sm:$0xff]
      %v2988 = vld [vmem:[%s306 + $0x1d0] sm:$0xff]
      %v2989 = vld [vmem:[%s306 + $0x1d8] sm:$0xff]
      %v2990 = vld [vmem:[%s306 + $0x1e0] sm:$0xff]
      %v2991 = vld [vmem:[%s306 + $0x1e8] sm:$0xff]
      %v2992 = vld [vmem:[%s306 + $0x1f0] sm:$0xff]
      %v2993 = vld [vmem:[%s306 + $0x1f8] sm:$0xff]
      %v2994 = vld [vmem:[%s306 + $0x200] sm:$0xff]
      %v2995 = vld [vmem:[%s306 + $0x208] sm:$0xff]
      %v2996 = vld [vmem:[%s306 + $0x210] sm:$0xff]
      %v2997 = vld [vmem:[%s306 + $0x218] sm:$0xff]
      %v2998 = vld [vmem:[%s306 + $0x220] sm:$0xff]
      %v2999 = vld [vmem:[%s306 + $0x228] sm:$0xff]
      %v3000 = vld [vmem:[%s306 + $0x230] sm:$0xff]
      %v3001 = vld [vmem:[%s306 + $0x238] sm:$0xff]
      %v3002 = vld [vmem:[%s306 + $0x240] sm:$0xff]
      %v3003 = vld [vmem:[%s306 + $0x248] sm:$0xff]
      %v3004 = vld [vmem:[%s306 + $0x250] sm:$0xff]
      %v3005 = vld [vmem:[%s306 + $0x258] sm:$0xff]
      %v3006 = vld [vmem:[%s306 + $0x260] sm:$0xff]
      %v3007 = vld [vmem:[%s306 + $0x268] sm:$0xff]
      %v3008 = vld [vmem:[%s306 + $0x270] sm:$0xff]
      %v3009 = vld [vmem:[%s306 + $0x278] sm:$0xff]
      %v3010 = vld [vmem:[%s306 + $0x280] sm:$0xff]
      %v3011 = vld [vmem:[%s306 + $0x288] sm:$0xff]
      %v3012 = vld [vmem:[%s306 + $0x290] sm:$0xff]
      %v3013 = vld [vmem:[%s306 + $0x298] sm:$0xff]
      %v3014 = vld [vmem:[%s306 + $0x2a0] sm:$0xff]
      %v3015 = vld [vmem:[%s306 + $0x2a8] sm:$0xff]
      %v3016 = vld [vmem:[%s306 + $0x2b0] sm:$0xff]
      %v3017 = vld [vmem:[%s306 + $0x2b8] sm:$0xff]
      %v3018 = vld [vmem:[%s306 + $0x2c0] sm:$0xff]
      %v3019 = vld [vmem:[%s306 + $0x2c8] sm:$0xff]
      %v3020 = vld [vmem:[%s306 + $0x2d0] sm:$0xff]
      %v3021 = vld [vmem:[%s306 + $0x2d8] sm:$0xff]
      %v3022 = vld [vmem:[%s306 + $0x2e0] sm:$0xff]
      %v3023 = vld [vmem:[%s306 + $0x2e8] sm:$0xff]
      %v3024 = vld [vmem:[%s306 + $0x2f0] sm:$0xff]
      %v3025 = vld [vmem:[%s306 + $0x2f8] sm:$0xff]
      %v3026 = vld [vmem:[%s306 + $0x300] sm:$0xff]
      %v3027 = vld [vmem:[%s306 + $0x308] sm:$0xff]
      %v3028 = vld [vmem:[%s306 + $0x310] sm:$0xff]
      %v3029 = vld [vmem:[%s306 + $0x318] sm:$0xff]
      %v3030 = vld [vmem:[%s306 + $0x320] sm:$0xff]
      %v3031 = vld [vmem:[%s306 + $0x328] sm:$0xff]
      %v3032 = vld [vmem:[%s306 + $0x330] sm:$0xff]
      %v3033 = vld [vmem:[%s306 + $0x338] sm:$0xff]
      %v3034 = vld [vmem:[%s306 + $0x340] sm:$0xff]
      %v3035 = vld [vmem:[%s306 + $0x348] sm:$0xff]
      %v3036 = vld [vmem:[%s306 + $0x350] sm:$0xff]
      %v3037 = vld [vmem:[%s306 + $0x358] sm:$0xff]
      %v3038 = vld [vmem:[%s306 + $0x360] sm:$0xff]
      %v3039 = vld [vmem:[%s306 + $0x368] sm:$0xff]
      %v3040 = vld [vmem:[%s306 + $0x370] sm:$0xff]
      %v3041 = vld [vmem:[%s306 + $0x378] sm:$0xff]
      %v3042 = vld [vmem:[%s306 + $0x380] sm:$0xff]
      %v3043 = vld [vmem:[%s306 + $0x388] sm:$0xff]
      %v3044 = vld [vmem:[%s306 + $0x390] sm:$0xff]
      %v3045 = vld [vmem:[%s306 + $0x398] sm:$0xff]
      %v3046 = vld [vmem:[%s306 + $0x3a0] sm:$0xff]
      %v3047 = vld [vmem:[%s306 + $0x3a8] sm:$0xff]
      %v3048 = vld [vmem:[%s306 + $0x3b0] sm:$0xff]
      %v3049 = vld [vmem:[%s306 + $0x3b8] sm:$0xff]
      %v3050 = vld [vmem:[%s306 + $0x3c0] sm:$0xff]
      %v3051 = vld [vmem:[%s306 + $0x3c8] sm:$0xff]
      %v3052 = vld [vmem:[%s306 + $0x3d0] sm:$0xff]
      %v3053 = vld [vmem:[%s306 + $0x3d8] sm:$0xff]
      %v3054 = vld [vmem:[%s306 + $0x3e0] sm:$0xff]
      %v3055 = vld [vmem:[%s306 + $0x3e8] sm:$0xff]
      %v3056 = vld [vmem:[%s306 + $0x3f0] sm:$0xff]
      %v3057 = vld [vmem:[%s306 + $0x3f8] sm:$0xff]
      %v3058 = vmax.f32 %v2292, %v2294
      %3059 = vmax.xlane.f32.xlu0 %v3058
      %v3060 = vpop.xlane.xlu0 %3059
      %v3061 = vmax.f32 %v2296, %v2298
      %3062 = vmax.xlane.f32.xlu0 %v3061
      %v3063 = vpop.xlane.xlu0 %3062
      %v3064 = vmax.f32 %v2302, %v2304
      %3065 = vmax.xlane.f32.xlu0 %v3064
      %v3066 = vpop.xlane.xlu0 %3065
      %v3067 = vmax.f32 %v2306, %v2308
      %3068 = vmax.xlane.f32.xlu0 %v3067
      %v3069 = vpop.xlane.xlu0 %3068
      %v3070 = vmax.f32 %v2312, %v2314
      %3071 = vmax.xlane.f32.xlu0 %v3070
      %v3072 = vpop.xlane.xlu0 %3071
      %v3073 = vmax.f32 %v2316, %v2318
      %3074 = vmax.xlane.f32.xlu0 %v3073
      %v3075 = vpop.xlane.xlu0 %3074
      %v3076 = vmax.f32 %v2322, %v2324
      %3077 = vmax.xlane.f32.xlu0 %v3076
      %v3078 = vpop.xlane.xlu0 %3077
      %v3079 = vmax.f32 %v2326, %v2328
      %3080 = vmax.xlane.f32.xlu0 %v3079
      %v3081 = vpop.xlane.xlu0 %3080
      %v3082 = vmax.f32 %v2332, %v2334
      %3083 = vmax.xlane.f32.xlu0 %v3082
      %v3084 = vpop.xlane.xlu0 %3083
      %v3085 = vmax.f32 %v2336, %v2338
      %3086 = vmax.xlane.f32.xlu0 %v3085
      %v3087 = vpop.xlane.xlu0 %3086
      %v3088 = vmax.f32 %v2342, %v2344
      %3089 = vmax.xlane.f32.xlu0 %v3088
      %v3090 = vpop.xlane.xlu0 %3089
      %v3091 = vmax.f32 %v2346, %v2348
      %3092 = vmax.xlane.f32.xlu0 %v3091
      %v3093 = vpop.xlane.xlu0 %3092
      %v3094 = vmax.f32 %v2352, %v2354
      %3095 = vmax.xlane.f32.xlu0 %v3094
      %v3096 = vpop.xlane.xlu0 %3095
      %v3097 = vmax.f32 %v2356, %v2358
      %3098 = vmax.xlane.f32.xlu0 %v3097
      %v3099 = vpop.xlane.xlu0 %3098
      %v3100 = vmax.f32 %v2362, %v2364
      %3101 = vmax.xlane.f32.xlu0 %v3100
      %v3102 = vpop.xlane.xlu0 %3101
      %v3103 = vmax.f32 %v2366, %v2368
      %3104 = vmax.xlane.f32.xlu0 %v3103
      %v3105 = vpop.xlane.xlu0 %3104
      %v3106 = vmax.f32 %v2372, %v2374
      %3107 = vmax.xlane.f32.xlu0 %v3106
      %v3108 = vpop.xlane.xlu0 %3107
      %v3109 = vmax.f32 %v2376, %v2378
      %3110 = vmax.xlane.f32.xlu0 %v3109
      %v3111 = vpop.xlane.xlu0 %3110
      %v3112 = vmax.f32 %v2382, %v2384
      %3113 = vmax.xlane.f32.xlu0 %v3112
      %v3114 = vpop.xlane.xlu0 %3113
      %v3115 = vmax.f32 %v2386, %v2388
      %3116 = vmax.xlane.f32.xlu0 %v3115
      %v3117 = vpop.xlane.xlu0 %3116
      %v3118 = vmax.f32 %v2392, %v2394
      %3119 = vmax.xlane.f32.xlu0 %v3118
      %v3120 = vpop.xlane.xlu0 %3119
      %v3121 = vmax.f32 %v2396, %v2398
      %3122 = vmax.xlane.f32.xlu0 %v3121
      %v3123 = vpop.xlane.xlu0 %3122
      %v3124 = vmax.f32 %v2402, %v2404
      %3125 = vmax.xlane.f32.xlu0 %v3124
      %v3126 = vpop.xlane.xlu0 %3125
      %v3127 = vmax.f32 %v2406, %v2408
      %3128 = vmax.xlane.f32.xlu0 %v3127
      %v3129 = vpop.xlane.xlu0 %3128
      %v3130 = vmax.f32 %v2412, %v2414
      %3131 = vmax.xlane.f32.xlu0 %v3130
      %v3132 = vpop.xlane.xlu0 %3131
      %v3133 = vmax.f32 %v2416, %v2418
      %3134 = vmax.xlane.f32.xlu0 %v3133
      %v3135 = vpop.xlane.xlu0 %3134
      %v3136 = vmax.f32 %v2422, %v2424
      %3137 = vmax.xlane.f32.xlu0 %v3136
      %v3138 = vpop.xlane.xlu0 %3137
      %v3139 = vmax.f32 %v2426, %v2428
      %3140 = vmax.xlane.f32.xlu0 %v3139
      %v3141 = vpop.xlane.xlu0 %3140
      %v3142 = vmax.f32 %v2432, %v2434
      %3143 = vmax.xlane.f32.xlu0 %v3142
      %v3144 = vpop.xlane.xlu0 %3143
      %v3145 = vmax.f32 %v2436, %v2438
      %3146 = vmax.xlane.f32.xlu0 %v3145
      %v3147 = vpop.xlane.xlu0 %3146
      %v3148 = vmax.f32 %v2442, %v2444
      %3149 = vmax.xlane.f32.xlu0 %v3148
      %v3150 = vpop.xlane.xlu0 %3149
      %v3151 = vmax.f32 %v2446, %v2448
      %3152 = vmax.xlane.f32.xlu0 %v3151
      %v3153 = vpop.xlane.xlu0 %3152
      %v3154 = vmax.f32 %v2452, %v2454
      %3155 = vmax.xlane.f32.xlu0 %v3154
      %v3156 = vpop.xlane.xlu0 %3155
      %v3157 = vmax.f32 %v2456, %v2458
      %3158 = vmax.xlane.f32.xlu0 %v3157
      %v3159 = vpop.xlane.xlu0 %3158
      %v3160 = vmax.f32 %v2462, %v2464
      %3161 = vmax.xlane.f32.xlu0 %v3160
      %v3162 = vpop.xlane.xlu0 %3161
      %v3163 = vmax.f32 %v2466, %v2468
      %3164 = vmax.xlane.f32.xlu0 %v3163
      %v3165 = vpop.xlane.xlu0 %3164
      %v3166 = vmax.f32 %v2472, %v2474
      %3167 = vmax.xlane.f32.xlu0 %v3166
      %v3168 = vpop.xlane.xlu0 %3167
      %v3169 = vmax.f32 %v2476, %v2478
      %3170 = vmax.xlane.f32.xlu0 %v3169
      %v3171 = vpop.xlane.xlu0 %3170
      %v3172 = vmax.f32 %v2482, %v2484
      %3173 = vmax.xlane.f32.xlu0 %v3172
      %v3174 = vpop.xlane.xlu0 %3173
      %v3175 = vmax.f32 %v2486, %v2488
      %3176 = vmax.xlane.f32.xlu0 %v3175
      %v3177 = vpop.xlane.xlu0 %3176
      %v3178 = vmax.f32 %v2492, %v2494
      %3179 = vmax.xlane.f32.xlu0 %v3178
      %v3180 = vpop.xlane.xlu0 %3179
      %v3181 = vmax.f32 %v2496, %v2498
      %3182 = vmax.xlane.f32.xlu0 %v3181
      %v3183 = vpop.xlane.xlu0 %3182
      %v3184 = vmax.f32 %v2502, %v2504
      %3185 = vmax.xlane.f32.xlu0 %v3184
      %v3186 = vpop.xlane.xlu0 %3185
      %v3187 = vmax.f32 %v2506, %v2508
      %3188 = vmax.xlane.f32.xlu0 %v3187
      %v3189 = vpop.xlane.xlu0 %3188
      %v3190 = vmax.f32 %v2512, %v2514
      %3191 = vmax.xlane.f32.xlu0 %v3190
      %v3192 = vpop.xlane.xlu0 %3191
      %v3193 = vmax.f32 %v2516, %v2518
      %3194 = vmax.xlane.f32.xlu0 %v3193
      %v3195 = vpop.xlane.xlu0 %3194
      %v3196 = vmax.f32 %v2522, %v2524
      %3197 = vmax.xlane.f32.xlu0 %v3196
      %v3198 = vpop.xlane.xlu0 %3197
      %v3199 = vmax.f32 %v2526, %v2528
      %3200 = vmax.xlane.f32.xlu0 %v3199
      %v3201 = vpop.xlane.xlu0 %3200
      %v3202 = vmax.f32 %v2532, %v2534
      %3203 = vmax.xlane.f32.xlu0 %v3202
      %v3204 = vpop.xlane.xlu0 %3203
      %v3205 = vmax.f32 %v2536, %v2538
      %3206 = vmax.xlane.f32.xlu0 %v3205
      %v3207 = vpop.xlane.xlu0 %3206
      %v3208 = vmax.f32 %v2542, %v2544
      %3209 = vmax.xlane.f32.xlu0 %v3208
      %v3210 = vpop.xlane.xlu0 %3209
      %v3211 = vmax.f32 %v2546, %v2548
      %3212 = vmax.xlane.f32.xlu0 %v3211
      %v3213 = vpop.xlane.xlu0 %3212
      %v3214 = vmax.f32 %v2552, %v2554
      %3215 = vmax.xlane.f32.xlu0 %v3214
      %v3216 = vpop.xlane.xlu0 %3215
      %v3217 = vmax.f32 %v2556, %v2558
      %3218 = vmax.xlane.f32.xlu0 %v3217
      %v3219 = vpop.xlane.xlu0 %3218
      %v3220 = vmax.f32 %v2562, %v2564
      %3221 = vmax.xlane.f32.xlu0 %v3220
      %v3222 = vpop.xlane.xlu0 %3221
      %v3223 = vmax.f32 %v2566, %v2568
      %3224 = vmax.xlane.f32.xlu0 %v3223
      %v3225 = vpop.xlane.xlu0 %3224
      %v3226 = vmax.f32 %v2572, %v2574
      %3227 = vmax.xlane.f32.xlu0 %v3226
      %v3228 = vpop.xlane.xlu0 %3227
      %v3229 = vmax.f32 %v2576, %v2578
      %3230 = vmax.xlane.f32.xlu0 %v3229
      %v3231 = vpop.xlane.xlu0 %3230
      %v3232 = vmax.f32 %v2582, %v2584
      %3233 = vmax.xlane.f32.xlu0 %v3232
      %v3234 = vpop.xlane.xlu0 %3233
      %v3235 = vmax.f32 %v2586, %v2588
      %3236 = vmax.xlane.f32.xlu0 %v3235
      %v3237 = vpop.xlane.xlu0 %3236
      %v3238 = vmax.f32 %v2592, %v2594
      %3239 = vmax.xlane.f32.xlu0 %v3238
      %v3240 = vpop.xlane.xlu0 %3239
      %v3241 = vmax.f32 %v2596, %v2598
      %3242 = vmax.xlane.f32.xlu0 %v3241
      %v3243 = vpop.xlane.xlu0 %3242
      %v3244 = vmax.f32 %v2602, %v2604
      %3245 = vmax.xlane.f32.xlu0 %v3244
      %v3246 = vpop.xlane.xlu0 %3245
      %v3247 = vmax.f32 %v2606, %v2608
      %3248 = vmax.xlane.f32.xlu0 %v3247
      %v3249 = vpop.xlane.xlu0 %3248
      %v3250 = vmax.f32 %v2612, %v2614
      %3251 = vmax.xlane.f32.xlu0 %v3250
      %v3252 = vpop.xlane.xlu0 %3251
      %v3253 = vmax.f32 %v2616, %v2618
      %3254 = vmax.xlane.f32.xlu0 %v3253
      %v3255 = vpop.xlane.xlu0 %3254
      %v3256 = vmax.f32 %v2622, %v2624
      %3257 = vmax.xlane.f32.xlu0 %v3256
      %v3258 = vpop.xlane.xlu0 %3257
      %v3259 = vmax.f32 %v2626, %v2628
      %3260 = vmax.xlane.f32.xlu0 %v3259
      %v3261 = vpop.xlane.xlu0 %3260
      %v3262 = vmax.f32 %v2632, %v2634
      %3263 = vmax.xlane.f32.xlu0 %v3262
      %v3264 = vpop.xlane.xlu0 %3263
      %v3265 = vmax.f32 %v2636, %v2638
      %3266 = vmax.xlane.f32.xlu0 %v3265
      %v3267 = vpop.xlane.xlu0 %3266
      %v3268 = vmax.f32 %v2642, %v2644
      %3269 = vmax.xlane.f32.xlu0 %v3268
      %v3270 = vpop.xlane.xlu0 %3269
      %v3271 = vmax.f32 %v2646, %v2648
      %3272 = vmax.xlane.f32.xlu0 %v3271
      %v3273 = vpop.xlane.xlu0 %3272
      %v3274 = vmax.f32 %v2652, %v2654
      %3275 = vmax.xlane.f32.xlu0 %v3274
      %v3276 = vpop.xlane.xlu0 %3275
      %v3277 = vmax.f32 %v2656, %v2658
      %3278 = vmax.xlane.f32.xlu0 %v3277
      %v3279 = vpop.xlane.xlu0 %3278
      %v3280 = vmax.f32 %v2662, %v2664
      %3281 = vmax.xlane.f32.xlu0 %v3280
      %v3282 = vpop.xlane.xlu0 %3281
      %v3283 = vmax.f32 %v2666, %v2668
      %3284 = vmax.xlane.f32.xlu0 %v3283
      %v3285 = vpop.xlane.xlu0 %3284
      %v3286 = vmax.f32 %v2672, %v2674
      %3287 = vmax.xlane.f32.xlu0 %v3286
      %v3288 = vpop.xlane.xlu0 %3287
      %v3289 = vmax.f32 %v2676, %v2678
      %3290 = vmax.xlane.f32.xlu0 %v3289
      %v3291 = vpop.xlane.xlu0 %3290
      %v3292 = vmax.f32 %v2682, %v2684
      %3293 = vmax.xlane.f32.xlu0 %v3292
      %v3294 = vpop.xlane.xlu0 %3293
      %v3295 = vmax.f32 %v2686, %v2688
      %3296 = vmax.xlane.f32.xlu0 %v3295
      %v3297 = vpop.xlane.xlu0 %3296
      %v3298 = vmax.f32 %v2692, %v2694
      %3299 = vmax.xlane.f32.xlu0 %v3298
      %v3300 = vpop.xlane.xlu0 %3299
      %v3301 = vmax.f32 %v2696, %v2698
      %3302 = vmax.xlane.f32.xlu0 %v3301
      %v3303 = vpop.xlane.xlu0 %3302
      %v3304 = vmax.f32 %v2702, %v2704
      %3305 = vmax.xlane.f32.xlu0 %v3304
      %v3306 = vpop.xlane.xlu0 %3305
      %v3307 = vmax.f32 %v2706, %v2708
      %3308 = vmax.xlane.f32.xlu0 %v3307
      %v3309 = vpop.xlane.xlu0 %3308
      %v3310 = vmax.f32 %v2712, %v2714
      %3311 = vmax.xlane.f32.xlu0 %v3310
      %v3312 = vpop.xlane.xlu0 %3311
      %v3313 = vmax.f32 %v2716, %v2718
      %3314 = vmax.xlane.f32.xlu0 %v3313
      %v3315 = vpop.xlane.xlu0 %3314
      %v3316 = vmax.f32 %v2722, %v2724
      %3317 = vmax.xlane.f32.xlu0 %v3316
      %v3318 = vpop.xlane.xlu0 %3317
      %v3319 = vmax.f32 %v2726, %v2728
      %3320 = vmax.xlane.f32.xlu0 %v3319
      %v3321 = vpop.xlane.xlu0 %3320
      %v3322 = vmax.f32 %v2732, %v2734
      %3323 = vmax.xlane.f32.xlu0 %v3322
      %v3324 = vpop.xlane.xlu0 %3323
      %v3325 = vmax.f32 %v2736, %v2738
      %3326 = vmax.xlane.f32.xlu0 %v3325
      %v3327 = vpop.xlane.xlu0 %3326
      %v3328 = vmax.f32 %v2742, %v2744
      %3329 = vmax.xlane.f32.xlu0 %v3328
      %v3330 = vpop.xlane.xlu0 %3329
      %v3331 = vmax.f32 %v2746, %v2748
      %3332 = vmax.xlane.f32.xlu0 %v3331
      %v3333 = vpop.xlane.xlu0 %3332
      %v3334 = vmax.f32 %v2752, %v2754
      %3335 = vmax.xlane.f32.xlu0 %v3334
      %v3336 = vpop.xlane.xlu0 %3335
      %v3337 = vmax.f32 %v2756, %v2758
      %3338 = vmax.xlane.f32.xlu0 %v3337
      %v3339 = vpop.xlane.xlu0 %3338
      %v3340 = vmax.f32 %v2762, %v2764
      %3341 = vmax.xlane.f32.xlu0 %v3340
      %v3342 = vpop.xlane.xlu0 %3341
      %v3343 = vmax.f32 %v2766, %v2768
      %3344 = vmax.xlane.f32.xlu0 %v3343
      %v3345 = vpop.xlane.xlu0 %3344
      %v3346 = vmax.f32 %v2772, %v2774
      %3347 = vmax.xlane.f32.xlu0 %v3346
      %v3348 = vpop.xlane.xlu0 %3347
      %v3349 = vmax.f32 %v2776, %v2778
      %3350 = vmax.xlane.f32.xlu0 %v3349
      %v3351 = vpop.xlane.xlu0 %3350
      %v3352 = vmax.f32 %v2782, %v2784
      %3353 = vmax.xlane.f32.xlu0 %v3352
      %v3354 = vpop.xlane.xlu0 %3353
      %v3355 = vmax.f32 %v2786, %v2788
      %3356 = vmax.xlane.f32.xlu0 %v3355
      %v3357 = vpop.xlane.xlu0 %3356
      %v3358 = vmax.f32 %v2792, %v2794
      %3359 = vmax.xlane.f32.xlu0 %v3358
      %v3360 = vpop.xlane.xlu0 %3359
      %v3361 = vmax.f32 %v2796, %v2798
      %3362 = vmax.xlane.f32.xlu0 %v3361
      %v3363 = vpop.xlane.xlu0 %3362
      %v3364 = vmax.f32 %v2802, %v2804
      %3365 = vmax.xlane.f32.xlu0 %v3364
      %v3366 = vpop.xlane.xlu0 %3365
      %v3367 = vmax.f32 %v2806, %v2808
      %3368 = vmax.xlane.f32.xlu0 %v3367
      %v3369 = vpop.xlane.xlu0 %3368
      %v3370 = vmax.f32 %v2812, %v2814
      %3371 = vmax.xlane.f32.xlu0 %v3370
      %v3372 = vpop.xlane.xlu0 %3371
      %v3373 = vmax.f32 %v2816, %v2818
      %3374 = vmax.xlane.f32.xlu0 %v3373
      %v3375 = vpop.xlane.xlu0 %3374
      %v3376 = vmax.f32 %v2822, %v2824
      %3377 = vmax.xlane.f32.xlu0 %v3376
      %v3378 = vpop.xlane.xlu0 %3377
      %v3379 = vmax.f32 %v2826, %v2828
      %3380 = vmax.xlane.f32.xlu0 %v3379
      %v3381 = vpop.xlane.xlu0 %3380
      %v3382 = vmax.f32 %v2832, %v2834
      %3383 = vmax.xlane.f32.xlu0 %v3382
      %v3384 = vpop.xlane.xlu0 %3383
      %v3385 = vmax.f32 %v2836, %v2838
      %3386 = vmax.xlane.f32.xlu0 %v3385
      %v3387 = vpop.xlane.xlu0 %3386
      %v3388 = vmax.f32 %v2842, %v2844
      %3389 = vmax.xlane.f32.xlu0 %v3388
      %v3390 = vpop.xlane.xlu0 %3389
      %v3391 = vmax.f32 %v2846, %v2848
      %3392 = vmax.xlane.f32.xlu0 %v3391
      %v3393 = vpop.xlane.xlu0 %3392
      %v3394 = vmax.f32 %v2852, %v2854
      %3395 = vmax.xlane.f32.xlu0 %v3394
      %v3396 = vpop.xlane.xlu0 %3395
      %v3397 = vmax.f32 %v2856, %v2858
      %3398 = vmax.xlane.f32.xlu0 %v3397
      %v3399 = vpop.xlane.xlu0 %3398
      %v3400 = vmax.f32 %v2862, %v2864
      %3401 = vmax.xlane.f32.xlu0 %v3400
      %v3402 = vpop.xlane.xlu0 %3401
      %v3403 = vmax.f32 %v2866, %v2868
      %3404 = vmax.xlane.f32.xlu0 %v3403
      %v3405 = vpop.xlane.xlu0 %3404
      %v3406 = vmax.f32 %v2872, %v2874
      %3407 = vmax.xlane.f32.xlu0 %v3406
      %v3408 = vpop.xlane.xlu0 %3407
      %v3409 = vmax.f32 %v2876, %v2878
      %3410 = vmax.xlane.f32.xlu0 %v3409
      %v3411 = vpop.xlane.xlu0 %3410
      %v3412 = vmax.f32 %v2882, %v2884
      %3413 = vmax.xlane.f32.xlu0 %v3412
      %v3414 = vpop.xlane.xlu0 %3413
      %v3415 = vmax.f32 %v2886, %v2888
      %3416 = vmax.xlane.f32.xlu0 %v3415
      %v3417 = vpop.xlane.xlu0 %3416
      %v3418 = vmax.f32 %v2892, %v2894
      %3419 = vmax.xlane.f32.xlu0 %v3418
      %v3420 = vpop.xlane.xlu0 %3419
      %v3421 = vmax.f32 %v2896, %v2898
      %3422 = vmax.xlane.f32.xlu0 %v3421
      %v3423 = vpop.xlane.xlu0 %3422
      %v3424 = vmax.f32 %v2902, %v2904
      %3425 = vmax.xlane.f32.xlu0 %v3424
      %v3426 = vpop.xlane.xlu0 %3425
      %v3427 = vmax.f32 %v2906, %v2908
      %3428 = vmax.xlane.f32.xlu0 %v3427
      %v3429 = vpop.xlane.xlu0 %3428
      %v3430 = vmax.f32 %v2912, %v2914
      %3431 = vmax.xlane.f32.xlu0 %v3430
      %v3432 = vpop.xlane.xlu0 %3431
      %v3433 = vmax.f32 %v2916, %v2918
      %3434 = vmax.xlane.f32.xlu0 %v3433
      %v3435 = vpop.xlane.xlu0 %3434
      %v3436 = vmax.f32 %v2922, %v2924
      %3437 = vmax.xlane.f32.xlu0 %v3436
      %v3438 = vpop.xlane.xlu0 %3437
      %v3439 = vmax.f32 %v2926, %v2928
      %3440 = vmax.xlane.f32.xlu0 %v3439
      %v3441 = vpop.xlane.xlu0 %3440
      %v3442 = vmax.f32 %v2930, %v3060
      %v3443 = vmax.f32 %v2931, %v3063
      %v3444 = vmax.f32 %v2932, %v3066
      %v3445 = vmax.f32 %v2933, %v3069
      %v3446 = vmax.f32 %v2934, %v3072
      %v3447 = vmax.f32 %v2935, %v3075
      %v3448 = vmax.f32 %v2936, %v3078
      %v3449 = vmax.f32 %v2937, %v3081
      %v3450 = vmax.f32 %v2938, %v3084
      %v3451 = vmax.f32 %v2939, %v3087
      %v3452 = vmax.f32 %v2940, %v3090
      %v3453 = vmax.f32 %v2941, %v3093
      %v3454 = vmax.f32 %v2942, %v3096
      %v3455 = vmax.f32 %v2943, %v3099
      %v3456 = vmax.f32 %v2944, %v3102
      %v3457 = vmax.f32 %v2945, %v3105
      %v3458 = vmax.f32 %v2946, %v3108
      %v3459 = vmax.f32 %v2947, %v3111
      %v3460 = vmax.f32 %v2948, %v3114
      %v3461 = vmax.f32 %v2949, %v3117
      %v3462 = vmax.f32 %v2950, %v3120
      %v3463 = vmax.f32 %v2951, %v3123
      %v3464 = vmax.f32 %v2952, %v3126
      %v3465 = vmax.f32 %v2953, %v3129
      %v3466 = vmax.f32 %v2954, %v3132
      %v3467 = vmax.f32 %v2955, %v3135
      %v3468 = vmax.f32 %v2956, %v3138
      %v3469 = vmax.f32 %v2957, %v3141
      %v3470 = vmax.f32 %v2958, %v3144
      %v3471 = vmax.f32 %v2959, %v3147
      %v3472 = vmax.f32 %v2960, %v3150
      %v3473 = vmax.f32 %v2961, %v3153
      %v3474 = vmax.f32 %v2962, %v3156
      %v3475 = vmax.f32 %v2963, %v3159
      %v3476 = vmax.f32 %v2964, %v3162
      %v3477 = vmax.f32 %v2965, %v3165
      %v3478 = vmax.f32 %v2966, %v3168
      %v3479 = vmax.f32 %v2967, %v3171
      %v3480 = vmax.f32 %v2968, %v3174
      %v3481 = vmax.f32 %v2969, %v3177
      %v3482 = vmax.f32 %v2970, %v3180
      %v3483 = vmax.f32 %v2971, %v3183
      %v3484 = vmax.f32 %v2972, %v3186
      %v3485 = vmax.f32 %v2973, %v3189
      %v3486 = vmax.f32 %v2974, %v3192
      %v3487 = vmax.f32 %v2975, %v3195
      %v3488 = vmax.f32 %v2976, %v3198
      %v3489 = vmax.f32 %v2977, %v3201
      %v3490 = vmax.f32 %v2978, %v3204
      %v3491 = vmax.f32 %v2979, %v3207
      %v3492 = vmax.f32 %v2980, %v3210
      %v3493 = vmax.f32 %v2981, %v3213
      %v3494 = vmax.f32 %v2982, %v3216
      %v3495 = vmax.f32 %v2983, %v3219
      %v3496 = vmax.f32 %v2984, %v3222
      %v3497 = vmax.f32 %v2985, %v3225
      %v3498 = vmax.f32 %v2986, %v3228
      %v3499 = vmax.f32 %v2987, %v3231
      %v3500 = vmax.f32 %v2988, %v3234
      %v3501 = vmax.f32 %v2989, %v3237
      %v3502 = vmax.f32 %v2990, %v3240
      %v3503 = vmax.f32 %v2991, %v3243
      %v3504 = vmax.f32 %v2992, %v3246
      %v3505 = vmax.f32 %v2993, %v3249
      %v3506 = vmax.f32 %v2994, %v3252
      %v3507 = vmax.f32 %v2995, %v3255
      %v3508 = vmax.f32 %v2996, %v3258
      %v3509 = vmax.f32 %v2997, %v3261
      %v3510 = vmax.f32 %v2998, %v3264
      %v3511 = vmax.f32 %v2999, %v3267
      %v3512 = vmax.f32 %v3000, %v3270
      %v3513 = vmax.f32 %v3001, %v3273
      %v3514 = vmax.f32 %v3002, %v3276
      %v3515 = vmax.f32 %v3003, %v3279
      %v3516 = vmax.f32 %v3004, %v3282
      %v3517 = vmax.f32 %v3005, %v3285
      %v3518 = vmax.f32 %v3006, %v3288
      %v3519 = vmax.f32 %v3007, %v3291
      %v3520 = vmax.f32 %v3008, %v3294
      %v3521 = vmax.f32 %v3009, %v3297
      %v3522 = vmax.f32 %v3010, %v3300
      %v3523 = vmax.f32 %v3011, %v3303
      %v3524 = vmax.f32 %v3012, %v3306
      %v3525 = vmax.f32 %v3013, %v3309
      %v3526 = vmax.f32 %v3014, %v3312
      %v3527 = vmax.f32 %v3015, %v3315
      %v3528 = vmax.f32 %v3016, %v3318
      %v3529 = vmax.f32 %v3017, %v3321
      %v3530 = vmax.f32 %v3018, %v3324
      %v3531 = vmax.f32 %v3019, %v3327
      %v3532 = vmax.f32 %v3020, %v3330
      %v3533 = vmax.f32 %v3021, %v3333
      %v3534 = vmax.f32 %v3022, %v3336
      %v3535 = vmax.f32 %v3023, %v3339
      %v3536 = vmax.f32 %v3024, %v3342
      %v3537 = vmax.f32 %v3025, %v3345
      %v3538 = vmax.f32 %v3026, %v3348
      %v3539 = vmax.f32 %v3027, %v3351
      %v3540 = vmax.f32 %v3028, %v3354
      %v3541 = vmax.f32 %v3029, %v3357
      %v3542 = vmax.f32 %v3030, %v3360
      %v3543 = vmax.f32 %v3031, %v3363
      %v3544 = vmax.f32 %v3032, %v3366
      %v3545 = vmax.f32 %v3033, %v3369
      %v3546 = vmax.f32 %v3034, %v3372
      %v3547 = vmax.f32 %v3035, %v3375
      %v3548 = vmax.f32 %v3036, %v3378
      %v3549 = vmax.f32 %v3037, %v3381
      %v3550 = vmax.f32 %v3038, %v3384
      %v3551 = vmax.f32 %v3039, %v3387
      %v3552 = vmax.f32 %v3040, %v3390
      %v3553 = vmax.f32 %v3041, %v3393
      %v3554 = vmax.f32 %v3042, %v3396
      %v3555 = vmax.f32 %v3043, %v3399
      %v3556 = vmax.f32 %v3044, %v3402
      %v3557 = vmax.f32 %v3045, %v3405
      %v3558 = vmax.f32 %v3046, %v3408
      %v3559 = vmax.f32 %v3047, %v3411
      %v3560 = vmax.f32 %v3048, %v3414
      %v3561 = vmax.f32 %v3049, %v3417
      %v3562 = vmax.f32 %v3050, %v3420
      %v3563 = vmax.f32 %v3051, %v3423
      %v3564 = vmax.f32 %v3052, %v3426
      %v3565 = vmax.f32 %v3053, %v3429
      %v3566 = vmax.f32 %v3054, %v3432
      %v3567 = vmax.f32 %v3055, %v3435
      %v3568 = vmax.f32 %v3056, %v3438
      %v3569 = vmax.f32 %v3057, %v3441
      %vm3570 = vcmask 7168
      %3571 = vst.msk [vmem:[%s306] sm:$0xff] %vm3570, %v3442
      %3572 = vst.msk [vmem:[%s306 + $0x8] sm:$0xff] %vm3570, %v3443
      %3573 = vst.msk [vmem:[%s306 + $0x10] sm:$0xff] %vm3570, %v3444
      %3574 = vst.msk [vmem:[%s306 + $0x18] sm:$0xff] %vm3570, %v3445
      %3575 = vst.msk [vmem:[%s306 + $0x20] sm:$0xff] %vm3570, %v3446
      %3576 = vst.msk [vmem:[%s306 + $0x28] sm:$0xff] %vm3570, %v3447
      %3577 = vst.msk [vmem:[%s306 + $0x30] sm:$0xff] %vm3570, %v3448
      %3578 = vst.msk [vmem:[%s306 + $0x38] sm:$0xff] %vm3570, %v3449
      %3579 = vst.msk [vmem:[%s306 + $0x40] sm:$0xff] %vm3570, %v3450
      %3580 = vst.msk [vmem:[%s306 + $0x48] sm:$0xff] %vm3570, %v3451
      %3581 = vst.msk [vmem:[%s306 + $0x50] sm:$0xff] %vm3570, %v3452
      %3582 = vst.msk [vmem:[%s306 + $0x58] sm:$0xff] %vm3570, %v3453
      %3583 = vst.msk [vmem:[%s306 + $0x60] sm:$0xff] %vm3570, %v3454
      %3584 = vst.msk [vmem:[%s306 + $0x68] sm:$0xff] %vm3570, %v3455
      %3585 = vst.msk [vmem:[%s306 + $0x70] sm:$0xff] %vm3570, %v3456
      %3586 = vst.msk [vmem:[%s306 + $0x78] sm:$0xff] %vm3570, %v3457
      %3587 = vst.msk [vmem:[%s306 + $0x80] sm:$0xff] %vm3570, %v3458
      %3588 = vst.msk [vmem:[%s306 + $0x88] sm:$0xff] %vm3570, %v3459
      %3589 = vst.msk [vmem:[%s306 + $0x90] sm:$0xff] %vm3570, %v3460
      %3590 = vst.msk [vmem:[%s306 + $0x98] sm:$0xff] %vm3570, %v3461
      %3591 = vst.msk [vmem:[%s306 + $0xa0] sm:$0xff] %vm3570, %v3462
      %3592 = vst.msk [vmem:[%s306 + $0xa8] sm:$0xff] %vm3570, %v3463
      %3593 = vst.msk [vmem:[%s306 + $0xb0] sm:$0xff] %vm3570, %v3464
      %3594 = vst.msk [vmem:[%s306 + $0xb8] sm:$0xff] %vm3570, %v3465
      %3595 = vst.msk [vmem:[%s306 + $0xc0] sm:$0xff] %vm3570, %v3466
      %3596 = vst.msk [vmem:[%s306 + $0xc8] sm:$0xff] %vm3570, %v3467
      %3597 = vst.msk [vmem:[%s306 + $0xd0] sm:$0xff] %vm3570, %v3468
      %3598 = vst.msk [vmem:[%s306 + $0xd8] sm:$0xff] %vm3570, %v3469
      %3599 = vst.msk [vmem:[%s306 + $0xe0] sm:$0xff] %vm3570, %v3470
      %3600 = vst.msk [vmem:[%s306 + $0xe8] sm:$0xff] %vm3570, %v3471
      %3601 = vst.msk [vmem:[%s306 + $0xf0] sm:$0xff] %vm3570, %v3472
      %3602 = vst.msk [vmem:[%s306 + $0xf8] sm:$0xff] %vm3570, %v3473
      %3603 = vst.msk [vmem:[%s306 + $0x100] sm:$0xff] %vm3570, %v3474
      %3604 = vst.msk [vmem:[%s306 + $0x108] sm:$0xff] %vm3570, %v3475
      %3605 = vst.msk [vmem:[%s306 + $0x110] sm:$0xff] %vm3570, %v3476
      %3606 = vst.msk [vmem:[%s306 + $0x118] sm:$0xff] %vm3570, %v3477
      %3607 = vst.msk [vmem:[%s306 + $0x120] sm:$0xff] %vm3570, %v3478
      %3608 = vst.msk [vmem:[%s306 + $0x128] sm:$0xff] %vm3570, %v3479
      %3609 = vst.msk [vmem:[%s306 + $0x130] sm:$0xff] %vm3570, %v3480
      %3610 = vst.msk [vmem:[%s306 + $0x138] sm:$0xff] %vm3570, %v3481
      %3611 = vst.msk [vmem:[%s306 + $0x140] sm:$0xff] %vm3570, %v3482
      %3612 = vst.msk [vmem:[%s306 + $0x148] sm:$0xff] %vm3570, %v3483
      %3613 = vst.msk [vmem:[%s306 + $0x150] sm:$0xff] %vm3570, %v3484
      %3614 = vst.msk [vmem:[%s306 + $0x158] sm:$0xff] %vm3570, %v3485
      %3615 = vst.msk [vmem:[%s306 + $0x160] sm:$0xff] %vm3570, %v3486
      %3616 = vst.msk [vmem:[%s306 + $0x168] sm:$0xff] %vm3570, %v3487
      %3617 = vst.msk [vmem:[%s306 + $0x170] sm:$0xff] %vm3570, %v3488
      %3618 = vst.msk [vmem:[%s306 + $0x178] sm:$0xff] %vm3570, %v3489
      %3619 = vst.msk [vmem:[%s306 + $0x180] sm:$0xff] %vm3570, %v3490
      %3620 = vst.msk [vmem:[%s306 + $0x188] sm:$0xff] %vm3570, %v3491
      %3621 = vst.msk [vmem:[%s306 + $0x190] sm:$0xff] %vm3570, %v3492
      %3622 = vst.msk [vmem:[%s306 + $0x198] sm:$0xff] %vm3570, %v3493
      %3623 = vst.msk [vmem:[%s306 + $0x1a0] sm:$0xff] %vm3570, %v3494
      %3624 = vst.msk [vmem:[%s306 + $0x1a8] sm:$0xff] %vm3570, %v3495
      %3625 = vst.msk [vmem:[%s306 + $0x1b0] sm:$0xff] %vm3570, %v3496
      %3626 = vst.msk [vmem:[%s306 + $0x1b8] sm:$0xff] %vm3570, %v3497
      %3627 = vst.msk [vmem:[%s306 + $0x1c0] sm:$0xff] %vm3570, %v3498
      %3628 = vst.msk [vmem:[%s306 + $0x1c8] sm:$0xff] %vm3570, %v3499
      %3629 = vst.msk [vmem:[%s306 + $0x1d0] sm:$0xff] %vm3570, %v3500
      %3630 = vst.msk [vmem:[%s306 + $0x1d8] sm:$0xff] %vm3570, %v3501
      %3631 = vst.msk [vmem:[%s306 + $0x1e0] sm:$0xff] %vm3570, %v3502
      %3632 = vst.msk [vmem:[%s306 + $0x1e8] sm:$0xff] %vm3570, %v3503
      %3633 = vst.msk [vmem:[%s306 + $0x1f0] sm:$0xff] %vm3570, %v3504
      %3634 = vst.msk [vmem:[%s306 + $0x1f8] sm:$0xff] %vm3570, %v3505
      %3635 = vst.msk [vmem:[%s306 + $0x200] sm:$0xff] %vm3570, %v3506
      %3636 = vst.msk [vmem:[%s306 + $0x208] sm:$0xff] %vm3570, %v3507
      %3637 = vst.msk [vmem:[%s306 + $0x210] sm:$0xff] %vm3570, %v3508
      %3638 = vst.msk [vmem:[%s306 + $0x218] sm:$0xff] %vm3570, %v3509
      %3639 = vst.msk [vmem:[%s306 + $0x220] sm:$0xff] %vm3570, %v3510
      %3640 = vst.msk [vmem:[%s306 + $0x228] sm:$0xff] %vm3570, %v3511
      %3641 = vst.msk [vmem:[%s306 + $0x230] sm:$0xff] %vm3570, %v3512
      %3642 = vst.msk [vmem:[%s306 + $0x238] sm:$0xff] %vm3570, %v3513
      %3643 = vst.msk [vmem:[%s306 + $0x240] sm:$0xff] %vm3570, %v3514
      %3644 = vst.msk [vmem:[%s306 + $0x248] sm:$0xff] %vm3570, %v3515
      %3645 = vst.msk [vmem:[%s306 + $0x250] sm:$0xff] %vm3570, %v3516
      %3646 = vst.msk [vmem:[%s306 + $0x258] sm:$0xff] %vm3570, %v3517
      %3647 = vst.msk [vmem:[%s306 + $0x260] sm:$0xff] %vm3570, %v3518
      %3648 = vst.msk [vmem:[%s306 + $0x268] sm:$0xff] %vm3570, %v3519
      %3649 = vst.msk [vmem:[%s306 + $0x270] sm:$0xff] %vm3570, %v3520
      %3650 = vst.msk [vmem:[%s306 + $0x278] sm:$0xff] %vm3570, %v3521
      %3651 = vst.msk [vmem:[%s306 + $0x280] sm:$0xff] %vm3570, %v3522
      %3652 = vst.msk [vmem:[%s306 + $0x288] sm:$0xff] %vm3570, %v3523
      %3653 = vst.msk [vmem:[%s306 + $0x290] sm:$0xff] %vm3570, %v3524
      %3654 = vst.msk [vmem:[%s306 + $0x298] sm:$0xff] %vm3570, %v3525
      %3655 = vst.msk [vmem:[%s306 + $0x2a0] sm:$0xff] %vm3570, %v3526
      %3656 = vst.msk [vmem:[%s306 + $0x2a8] sm:$0xff] %vm3570, %v3527
      %3657 = vst.msk [vmem:[%s306 + $0x2b0] sm:$0xff] %vm3570, %v3528
      %3658 = vst.msk [vmem:[%s306 + $0x2b8] sm:$0xff] %vm3570, %v3529
      %3659 = vst.msk [vmem:[%s306 + $0x2c0] sm:$0xff] %vm3570, %v3530
      %3660 = vst.msk [vmem:[%s306 + $0x2c8] sm:$0xff] %vm3570, %v3531
      %3661 = vst.msk [vmem:[%s306 + $0x2d0] sm:$0xff] %vm3570, %v3532
      %3662 = vst.msk [vmem:[%s306 + $0x2d8] sm:$0xff] %vm3570, %v3533
      %3663 = vst.msk [vmem:[%s306 + $0x2e0] sm:$0xff] %vm3570, %v3534
      %3664 = vst.msk [vmem:[%s306 + $0x2e8] sm:$0xff] %vm3570, %v3535
      %3665 = vst.msk [vmem:[%s306 + $0x2f0] sm:$0xff] %vm3570, %v3536
      %3666 = vst.msk [vmem:[%s306 + $0x2f8] sm:$0xff] %vm3570, %v3537
      %3667 = vst.msk [vmem:[%s306 + $0x300] sm:$0xff] %vm3570, %v3538
      %3668 = vst.msk [vmem:[%s306 + $0x308] sm:$0xff] %vm3570, %v3539
      %3669 = vst.msk [vmem:[%s306 + $0x310] sm:$0xff] %vm3570, %v3540
      %3670 = vst.msk [vmem:[%s306 + $0x318] sm:$0xff] %vm3570, %v3541
      %3671 = vst.msk [vmem:[%s306 + $0x320] sm:$0xff] %vm3570, %v3542
      %3672 = vst.msk [vmem:[%s306 + $0x328] sm:$0xff] %vm3570, %v3543
      %3673 = vst.msk [vmem:[%s306 + $0x330] sm:$0xff] %vm3570, %v3544
      %3674 = vst.msk [vmem:[%s306 + $0x338] sm:$0xff] %vm3570, %v3545
      %3675 = vst.msk [vmem:[%s306 + $0x340] sm:$0xff] %vm3570, %v3546
      %3676 = vst.msk [vmem:[%s306 + $0x348] sm:$0xff] %vm3570, %v3547
      %3677 = vst.msk [vmem:[%s306 + $0x350] sm:$0xff] %vm3570, %v3548
      %3678 = vst.msk [vmem:[%s306 + $0x358] sm:$0xff] %vm3570, %v3549
      %3679 = vst.msk [vmem:[%s306 + $0x360] sm:$0xff] %vm3570, %v3550
      %3680 = vst.msk [vmem:[%s306 + $0x368] sm:$0xff] %vm3570, %v3551
      %3681 = vst.msk [vmem:[%s306 + $0x370] sm:$0xff] %vm3570, %v3552
      %3682 = vst.msk [vmem:[%s306 + $0x378] sm:$0xff] %vm3570, %v3553
      %3683 = vst.msk [vmem:[%s306 + $0x380] sm:$0xff] %vm3570, %v3554
      %3684 = vst.msk [vmem:[%s306 + $0x388] sm:$0xff] %vm3570, %v3555
      %3685 = vst.msk [vmem:[%s306 + $0x390] sm:$0xff] %vm3570, %v3556
      %3686 = vst.msk [vmem:[%s306 + $0x398] sm:$0xff] %vm3570, %v3557
      %3687 = vst.msk [vmem:[%s306 + $0x3a0] sm:$0xff] %vm3570, %v3558
      %3688 = vst.msk [vmem:[%s306 + $0x3a8] sm:$0xff] %vm3570, %v3559
      %3689 = vst.msk [vmem:[%s306 + $0x3b0] sm:$0xff] %vm3570, %v3560
      %3690 = vst.msk [vmem:[%s306 + $0x3b8] sm:$0xff] %vm3570, %v3561
      %3691 = vst.msk [vmem:[%s306 + $0x3c0] sm:$0xff] %vm3570, %v3562
      %3692 = vst.msk [vmem:[%s306 + $0x3c8] sm:$0xff] %vm3570, %v3563
      %3693 = vst.msk [vmem:[%s306 + $0x3d0] sm:$0xff] %vm3570, %v3564
      %3694 = vst.msk [vmem:[%s306 + $0x3d8] sm:$0xff] %vm3570, %v3565
      %3695 = vst.msk [vmem:[%s306 + $0x3e0] sm:$0xff] %vm3570, %v3566
      %3696 = vst.msk [vmem:[%s306 + $0x3e8] sm:$0xff] %vm3570, %v3567
      %3697 = vst.msk [vmem:[%s306 + $0x3f0] sm:$0xff] %vm3570, %v3568
      %3698 = vst.msk [vmem:[%s306 + $0x3f8] sm:$0xff] %vm3570, %v3569
      %p3699 = scmp.lt.s32.totalorder %s22, 1
      %s3700 = scalar_select %p3699, %s22, 1
      %s3701 = smul.addr %s3700, 128
      %s3702 = smul.addr %s3701, 8
      %s3703 = scalar_lea.vmem %s7, %s3702
      // Predicated region
      $region53: #{stnkd_forward.2} parent=47 // pred_check
        %p3704 = pneg %p202
      $region54: #{stnkd_forward.2} parent=47 // pred_check_branch
        %3706 = sbr.rel (%p3704) target = $region56
      $region55: #{stnkd_forward.2} parent=47 // pred_region
        _
      $region56: #{stnkd_forward.2} parent=47 // pred_fallthru
        _
    $region48: #{stnkd_forward.2} parent=5 // pred_fallthru
      _
    %p3707 = scmp.le.s32.totalorder 2, %s13
    // Predicated region
    $region57: #{stnkd_forward.2} parent=5 // pred_check
      %p3708 = pneg %p3707
    $region58: #{stnkd_forward.2} parent=5 // pred_check_branch
      %3710 = sbr.rel (%p3708) target = $region60
    $region59: #{stnkd_forward.2} parent=5 // pred_region
      %s3711 = ssub.s32 %s13, 2
      // Predicated region
      $region61: #{stnkd_forward.2} parent=59 // pred_check
        %p3712 = pneg %p208
      $region62: #{stnkd_forward.2} parent=59 // pred_check_branch
        %3714 = sbr.rel (%p3712) target = $region64
      $region63: #{stnkd_forward.2} parent=59 // pred_region
        %p3715 = scmp.lt.s32.totalorder %s24, 1
        %s3716 = scalar_select %p3715, %s24, 1
        %s3717 = smul.addr %s3716, 128
        %s3718 = smul.addr %s3717, 8
        %s3719 = scalar_lea.vmem %s7, %s3718
      $region64: #{stnkd_forward.2} parent=59 // pred_fallthru
        _
    $region60: #{stnkd_forward.2} parent=5 // pred_fallthru
      _
  $region6: #{stnkd_forward.2} parent=0 // loop_footer
    %s17 = sadd.s32 1, %s13
  $region7: #{stnkd_forward.2} parent=0 // loop_footer_branch
    %12 = sbr.rel target = $region3
  $region8: #{stnkd_forward.2} parent=0 // loop_exit
    _

// kernel: stnkd_forward.3
$region0: #{stnkd_forward.3}
  #allocation0 [shape = 'u32[]', space=smem, size = 0x4, offset = 0x4, fixed_abs, tag = 'smem constant byte address 0x4 - core index']
  #allocation1 [shape = 'u32[144,128]{1,0:T(1,128)}', space=vmem, size = 0x12000, scoped, tag = 'internal scratch']
  %s0 = inlined_call_operand.vmem [shape: f32[2,1024], index: 0, kind: input, shape index: {}]
  %s1 = inlined_call_operand.vmem [shape: bf16[1024,512], index: 1, kind: input, shape index: {}]
  %s2 = inlined_call_operand.vmem [shape: f32[1,512], index: 2, kind: input, shape index: {}]
  %s3 = inlined_call_operand.vmem [shape: bf16[512,256], index: 3, kind: input, shape index: {}]
  %s4 = inlined_call_operand.vmem [shape: f32[1,256], index: 4, kind: input, shape index: {}]
  %s5 = inlined_call_operand.vmem [shape: bf16[256,256], index: 5, kind: input, shape index: {}]
  %s6 = inlined_call_operand.vmem [shape: f32[1,256], index: 6, kind: input, shape index: {}]
  %s7 = inlined_call_operand.vmem [shape: f32[1,256], index: 7, kind: input, shape index: {}]
  %s8 = inlined_call_operand.vmem [shape: f32[2,256], index: 8, kind: output, shape index: {}]
  %s9 = sld [smem:[#allocation0]]
  $region42: #{stnkd_forward.3} parent=0
    _
  %s11 = ssub.s32 1, %s9
  %s12 = scalar_select 0, %s11, %s9
  // Predicated region
  $region2: #{stnkd_forward.3} parent=0 // pred_check
    _
  $region3: #{stnkd_forward.3} parent=0 // pred_check_branch
    %14 = sbr.rel (0) target = $region5
  $region4: #{stnkd_forward.3} parent=0 // pred_region
    _
  $region5: #{stnkd_forward.3} parent=0 // pred_fallthru
    _
  // Predicated region
  $region6: #{stnkd_forward.3} parent=0 // pred_check
    _
  $region7: #{stnkd_forward.3} parent=0 // pred_check_branch
    %16 = sbr.rel (0) target = $region9
  $region8: #{stnkd_forward.3} parent=0 // pred_region
    _
  $region9: #{stnkd_forward.3} parent=0 // pred_fallthru
    _
  // Predicated region
  $region10: #{stnkd_forward.3} parent=0 // pred_check
    _
  $region11: #{stnkd_forward.3} parent=0 // pred_check_branch
    %18 = sbr.rel (0) target = $region13
  $region12: #{stnkd_forward.3} parent=0 // pred_region
    _
  $region13: #{stnkd_forward.3} parent=0 // pred_fallthru
    _
  // Predicated region
  $region14: #{stnkd_forward.3} parent=0 // pred_check
    _
  $region15: #{stnkd_forward.3} parent=0 // pred_check_branch
    %20 = sbr.rel (0) target = $region17
  $region16: #{stnkd_forward.3} parent=0 // pred_region
    _
  $region17: #{stnkd_forward.3} parent=0 // pred_fallthru
    _
  // Predicated region
  $region18: #{stnkd_forward.3} parent=0 // pred_check
    _
  $region19: #{stnkd_forward.3} parent=0 // pred_check_branch
    %22 = sbr.rel (0) target = $region21
  $region20: #{stnkd_forward.3} parent=0 // pred_region
    _
  $region21: #{stnkd_forward.3} parent=0 // pred_fallthru
    _
  // Predicated region
  $region22: #{stnkd_forward.3} parent=0 // pred_check
    _
  $region23: #{stnkd_forward.3} parent=0 // pred_check_branch
    %24 = sbr.rel (0) target = $region25
  $region24: #{stnkd_forward.3} parent=0 // pred_region
    _
  $region25: #{stnkd_forward.3} parent=0 // pred_fallthru
    _
  // Predicated region
  $region26: #{stnkd_forward.3} parent=0 // pred_check
    _
  $region27: #{stnkd_forward.3} parent=0 // pred_check_branch
    %26 = sbr.rel (0) target = $region29
  $region28: #{stnkd_forward.3} parent=0 // pred_region
    _
  $region29: #{stnkd_forward.3} parent=0 // pred_fallthru
    _
  // Predicated region
  $region30: #{stnkd_forward.3} parent=0 // pred_check
    _
  $region31: #{stnkd_forward.3} parent=0 // pred_check_branch
    %28 = sbr.rel (0) target = $region33
  $region32: #{stnkd_forward.3} parent=0 // pred_region
    _
  $region33: #{stnkd_forward.3} parent=0 // pred_fallthru
    _
  %v29 = vld [vmem:[%s0] sm:$0xff]
  %v30 = vld [vmem:[%s0 + $0x8] sm:$0xff]
  %v31 = vtanh.pop %v29
  %v32 = vtanh.pop %v30
  %v35 = vcombine.high %v31, %v31
  %v37 = vunpack.c.l.s4 1983009808
  %v38 = vunpack.c.0.s8 %v37
  %v39 = vlaneseq
  %v40 = vshrl.u32 %v39, 7
  %v41 = vsub.s32 %v38, %v40
  %v42 = vrot.slane %v31, %v41
  %v44 = vunpack.c.l.s4 1983009808
  %v45 = vunpack.c.0.s8 %v44
  %v46 = vlaneseq
  %v47 = vshrl.u32 %v46, 7
  %v48 = vsub.s32 %v45, %v47
  %v49 = vrot.slane %v35, %v48
  %v50 = vcombine.high %v42, %v42
  %v51 = vcombine.high %v49, %v49
  %v52 = vcombine.high %v32, %v32
  %v54 = vunpack.c.l.s4 1983009808
  %v55 = vunpack.c.0.s8 %v54
  %v56 = vlaneseq
  %v57 = vshrl.u32 %v56, 7
  %v58 = vsub.s32 %v55, %v57
  %v59 = vrot.slane %v32, %v58
  %v61 = vunpack.c.l.s4 1983009808
  %v62 = vunpack.c.0.s8 %v61
  %v63 = vlaneseq
  %v64 = vshrl.u32 %v63, 7
  %v65 = vsub.s32 %v62, %v64
  %v66 = vrot.slane %v52, %v65
  %v67 = vcombine.high %v59, %v59
  %v68 = vcombine.high %v66, %v66
  %v77 = vpack.c.bf16 %v42, %v42
  %v78 = vpack.c.bf16 %v50, %v50
  %v79 = vpack.c.bf16 %v49, %v49
  %v80 = vpack.c.bf16 %v51, %v51
  %v81 = vpack.c.bf16 %v59, %v59
  %v82 = vpack.c.bf16 %v67, %v67
  %v83 = vpack.c.bf16 %v66, %v66
  %v84 = vpack.c.bf16 %v68, %v68
  %v85 = vld [vmem:[%s1] sm:$0xff]
  %v86 = vld [vmem:[%s1 + $0x8] sm:$0xff]
  %v87 = vld [vmem:[%s1 + $0x10] sm:$0xff]
  %v88 = vld [vmem:[%s1 + $0x18] sm:$0xff]
  %v89 = vld [vmem:[%s1 + $0x20] sm:$0xff]
  %v90 = vld [vmem:[%s1 + $0x28] sm:$0xff]
  %v91 = vld [vmem:[%s1 + $0x30] sm:$0xff]
  %v92 = vld [vmem:[%s1 + $0x38] sm:$0xff]
  %v93 = vld [vmem:[%s1 + $0x40] sm:$0xff]
  %v94 = vld [vmem:[%s1 + $0x48] sm:$0xff]
  %v95 = vld [vmem:[%s1 + $0x50] sm:$0xff]
  %v96 = vld [vmem:[%s1 + $0x58] sm:$0xff]
  %v97 = vld [vmem:[%s1 + $0x60] sm:$0xff]
  %v98 = vld [vmem:[%s1 + $0x68] sm:$0xff]
  %v99 = vld [vmem:[%s1 + $0x70] sm:$0xff]
  %v100 = vld [vmem:[%s1 + $0x78] sm:$0xff]
  %v101 = vld [vmem:[%s1 + $0x80] sm:$0xff]
  %v102 = vld [vmem:[%s1 + $0x88] sm:$0xff]
  %v103 = vld [vmem:[%s1 + $0x90] sm:$0xff]
  %v104 = vld [vmem:[%s1 + $0x98] sm:$0xff]
  %v105 = vld [vmem:[%s1 + $0xa0] sm:$0xff]
  %v106 = vld [vmem:[%s1 + $0xa8] sm:$0xff]
  %v107 = vld [vmem:[%s1 + $0xb0] sm:$0xff]
  %v108 = vld [vmem:[%s1 + $0xb8] sm:$0xff]
  %v109 = vld [vmem:[%s1 + $0xc0] sm:$0xff]
  %v110 = vld [vmem:[%s1 + $0xc8] sm:$0xff]
  %v111 = vld [vmem:[%s1 + $0xd0] sm:$0xff]
  %v112 = vld [vmem:[%s1 + $0xd8] sm:$0xff]
  %v113 = vld [vmem:[%s1 + $0xe0] sm:$0xff]
  %v114 = vld [vmem:[%s1 + $0xe8] sm:$0xff]
  %v115 = vld [vmem:[%s1 + $0xf0] sm:$0xff]
  %v116 = vld [vmem:[%s1 + $0xf8] sm:$0xff]
  %v117 = vld [vmem:[%s1 + $0x100] sm:$0xff]
  %v118 = vld [vmem:[%s1 + $0x108] sm:$0xff]
  %v119 = vld [vmem:[%s1 + $0x110] sm:$0xff]
  %v120 = vld [vmem:[%s1 + $0x118] sm:$0xff]
  %v121 = vld [vmem:[%s1 + $0x120] sm:$0xff]
  %v122 = vld [vmem:[%s1 + $0x128] sm:$0xff]
  %v123 = vld [vmem:[%s1 + $0x130] sm:$0xff]
  %v124 = vld [vmem:[%s1 + $0x138] sm:$0xff]
  %v125 = vld [vmem:[%s1 + $0x140] sm:$0xff]
  %v126 = vld [vmem:[%s1 + $0x148] sm:$0xff]
  %v127 = vld [vmem:[%s1 + $0x150] sm:$0xff]
  %v128 = vld [vmem:[%s1 + $0x158] sm:$0xff]
  %v129 = vld [vmem:[%s1 + $0x160] sm:$0xff]
  %v130 = vld [vmem:[%s1 + $0x168] sm:$0xff]
  %v131 = vld [vmem:[%s1 + $0x170] sm:$0xff]
  %v132 = vld [vmem:[%s1 + $0x178] sm:$0xff]
  %v133 = vld [vmem:[%s1 + $0x180] sm:$0xff]
  %v134 = vld [vmem:[%s1 + $0x188] sm:$0xff]
  %v135 = vld [vmem:[%s1 + $0x190] sm:$0xff]
  %v136 = vld [vmem:[%s1 + $0x198] sm:$0xff]
  %v137 = vld [vmem:[%s1 + $0x1a0] sm:$0xff]
  %v138 = vld [vmem:[%s1 + $0x1a8] sm:$0xff]
  %v139 = vld [vmem:[%s1 + $0x1b0] sm:$0xff]
  %v140 = vld [vmem:[%s1 + $0x1b8] sm:$0xff]
  %v141 = vld [vmem:[%s1 + $0x1c0] sm:$0xff]
  %v142 = vld [vmem:[%s1 + $0x1c8] sm:$0xff]
  %v143 = vld [vmem:[%s1 + $0x1d0] sm:$0xff]
  %v144 = vld [vmem:[%s1 + $0x1d8] sm:$0xff]
  %v145 = vld [vmem:[%s1 + $0x1e0] sm:$0xff]
  %v146 = vld [vmem:[%s1 + $0x1e8] sm:$0xff]
  %v147 = vld [vmem:[%s1 + $0x1f0] sm:$0xff]
  %v148 = vld [vmem:[%s1 + $0x1f8] sm:$0xff]
  %v149 = vld [vmem:[%s1 + $0x200] sm:$0xff]
  %v150 = vld [vmem:[%s1 + $0x208] sm:$0xff]
  %v151 = vld [vmem:[%s1 + $0x210] sm:$0xff]
  %v152 = vld [vmem:[%s1 + $0x218] sm:$0xff]
  %v153 = vld [vmem:[%s1 + $0x220] sm:$0xff]
  %v154 = vld [vmem:[%s1 + $0x228] sm:$0xff]
  %v155 = vld [vmem:[%s1 + $0x230] sm:$0xff]
  %v156 = vld [vmem:[%s1 + $0x238] sm:$0xff]
  %v157 = vld [vmem:[%s1 + $0x240] sm:$0xff]
  %v158 = vld [vmem:[%s1 + $0x248] sm:$0xff]
  %v159 = vld [vmem:[%s1 + $0x250] sm:$0xff]
  %v160 = vld [vmem:[%s1 + $0x258] sm:$0xff]
  %v161 = vld [vmem:[%s1 + $0x260] sm:$0xff]
  %v162 = vld [vmem:[%s1 + $0x268] sm:$0xff]
  %v163 = vld [vmem:[%s1 + $0x270] sm:$0xff]
  %v164 = vld [vmem:[%s1 + $0x278] sm:$0xff]
  %v165 = vld [vmem:[%s1 + $0x280] sm:$0xff]
  %v166 = vld [vmem:[%s1 + $0x288] sm:$0xff]
  %v167 = vld [vmem:[%s1 + $0x290] sm:$0xff]
  %v168 = vld [vmem:[%s1 + $0x298] sm:$0xff]
  %v169 = vld [vmem:[%s1 + $0x2a0] sm:$0xff]
  %v170 = vld [vmem:[%s1 + $0x2a8] sm:$0xff]
  %v171 = vld [vmem:[%s1 + $0x2b0] sm:$0xff]
  %v172 = vld [vmem:[%s1 + $0x2b8] sm:$0xff]
  %v173 = vld [vmem:[%s1 + $0x2c0] sm:$0xff]
  %v174 = vld [vmem:[%s1 + $0x2c8] sm:$0xff]
  %v175 = vld [vmem:[%s1 + $0x2d0] sm:$0xff]
  %v176 = vld [vmem:[%s1 + $0x2d8] sm:$0xff]
  %v177 = vld [vmem:[%s1 + $0x2e0] sm:$0xff]
  %v178 = vld [vmem:[%s1 + $0x2e8] sm:$0xff]
  %v179 = vld [vmem:[%s1 + $0x2f0] sm:$0xff]
  %v180 = vld [vmem:[%s1 + $0x2f8] sm:$0xff]
  %v181 = vld [vmem:[%s1 + $0x300] sm:$0xff]
  %v182 = vld [vmem:[%s1 + $0x308] sm:$0xff]
  %v183 = vld [vmem:[%s1 + $0x310] sm:$0xff]
  %v184 = vld [vmem:[%s1 + $0x318] sm:$0xff]
  %v185 = vld [vmem:[%s1 + $0x320] sm:$0xff]
  %v186 = vld [vmem:[%s1 + $0x328] sm:$0xff]
  %v187 = vld [vmem:[%s1 + $0x330] sm:$0xff]
  %v188 = vld [vmem:[%s1 + $0x338] sm:$0xff]
  %v189 = vld [vmem:[%s1 + $0x340] sm:$0xff]
  %v190 = vld [vmem:[%s1 + $0x348] sm:$0xff]
  %v191 = vld [vmem:[%s1 + $0x350] sm:$0xff]
  %v192 = vld [vmem:[%s1 + $0x358] sm:$0xff]
  %v193 = vld [vmem:[%s1 + $0x360] sm:$0xff]
  %v194 = vld [vmem:[%s1 + $0x368] sm:$0xff]
  %v195 = vld [vmem:[%s1 + $0x370] sm:$0xff]
  %v196 = vld [vmem:[%s1 + $0x378] sm:$0xff]
  %v197 = vld [vmem:[%s1 + $0x380] sm:$0xff]
  %v198 = vld [vmem:[%s1 + $0x388] sm:$0xff]
  %v199 = vld [vmem:[%s1 + $0x390] sm:$0xff]
  %v200 = vld [vmem:[%s1 + $0x398] sm:$0xff]
  %v201 = vld [vmem:[%s1 + $0x3a0] sm:$0xff]
  %v202 = vld [vmem:[%s1 + $0x3a8] sm:$0xff]
  %v203 = vld [vmem:[%s1 + $0x3b0] sm:$0xff]
  %v204 = vld [vmem:[%s1 + $0x3b8] sm:$0xff]
  %v205 = vld [vmem:[%s1 + $0x3c0] sm:$0xff]
  %v206 = vld [vmem:[%s1 + $0x3c8] sm:$0xff]
  %v207 = vld [vmem:[%s1 + $0x3d0] sm:$0xff]
  %v208 = vld [vmem:[%s1 + $0x3d8] sm:$0xff]
  %v209 = vld [vmem:[%s1 + $0x3e0] sm:$0xff]
  %v210 = vld [vmem:[%s1 + $0x3e8] sm:$0xff]
  %v211 = vld [vmem:[%s1 + $0x3f0] sm:$0xff]
  %v212 = vld [vmem:[%s1 + $0x3f8] sm:$0xff]
  %v213 = vld [vmem:[%s1 + $0x400] sm:$0xff]
  %v214 = vld [vmem:[%s1 + $0x408] sm:$0xff]
  %v215 = vld [vmem:[%s1 + $0x410] sm:$0xff]
  %v216 = vld [vmem:[%s1 + $0x418] sm:$0xff]
  %v217 = vld [vmem:[%s1 + $0x420] sm:$0xff]
  %v218 = vld [vmem:[%s1 + $0x428] sm:$0xff]
  %v219 = vld [vmem:[%s1 + $0x430] sm:$0xff]
  %v220 = vld [vmem:[%s1 + $0x438] sm:$0xff]
  %v221 = vld [vmem:[%s1 + $0x440] sm:$0xff]
  %v222 = vld [vmem:[%s1 + $0x448] sm:$0xff]
  %v223 = vld [vmem:[%s1 + $0x450] sm:$0xff]
  %v224 = vld [vmem:[%s1 + $0x458] sm:$0xff]
  %v225 = vld [vmem:[%s1 + $0x460] sm:$0xff]
  %v226 = vld [vmem:[%s1 + $0x468] sm:$0xff]
  %v227 = vld [vmem:[%s1 + $0x470] sm:$0xff]
  %v228 = vld [vmem:[%s1 + $0x478] sm:$0xff]
  %v229 = vld [vmem:[%s1 + $0x480] sm:$0xff]
  %v230 = vld [vmem:[%s1 + $0x488] sm:$0xff]
  %v231 = vld [vmem:[%s1 + $0x490] sm:$0xff]
  %v232 = vld [vmem:[%s1 + $0x498] sm:$0xff]
  %v233 = vld [vmem:[%s1 + $0x4a0] sm:$0xff]
  %v234 = vld [vmem:[%s1 + $0x4a8] sm:$0xff]
  %v235 = vld [vmem:[%s1 + $0x4b0] sm:$0xff]
  %v236 = vld [vmem:[%s1 + $0x4b8] sm:$0xff]
  %v237 = vld [vmem:[%s1 + $0x4c0] sm:$0xff]
  %v238 = vld [vmem:[%s1 + $0x4c8] sm:$0xff]
  %v239 = vld [vmem:[%s1 + $0x4d0] sm:$0xff]
  %v240 = vld [vmem:[%s1 + $0x4d8] sm:$0xff]
  %v241 = vld [vmem:[%s1 + $0x4e0] sm:$0xff]
  %v242 = vld [vmem:[%s1 + $0x4e8] sm:$0xff]
  %v243 = vld [vmem:[%s1 + $0x4f0] sm:$0xff]
  %v244 = vld [vmem:[%s1 + $0x4f8] sm:$0xff]
  %v245 = vld [vmem:[%s1 + $0x500] sm:$0xff]
  %v246 = vld [vmem:[%s1 + $0x508] sm:$0xff]
  %v247 = vld [vmem:[%s1 + $0x510] sm:$0xff]
  %v248 = vld [vmem:[%s1 + $0x518] sm:$0xff]
  %v249 = vld [vmem:[%s1 + $0x520] sm:$0xff]
  %v250 = vld [vmem:[%s1 + $0x528] sm:$0xff]
  %v251 = vld [vmem:[%s1 + $0x530] sm:$0xff]
  %v252 = vld [vmem:[%s1 + $0x538] sm:$0xff]
  %v253 = vld [vmem:[%s1 + $0x540] sm:$0xff]
  %v254 = vld [vmem:[%s1 + $0x548] sm:$0xff]
  %v255 = vld [vmem:[%s1 + $0x550] sm:$0xff]
  %v256 = vld [vmem:[%s1 + $0x558] sm:$0xff]
  %v257 = vld [vmem:[%s1 + $0x560] sm:$0xff]
  %v258 = vld [vmem:[%s1 + $0x568] sm:$0xff]
  %v259 = vld [vmem:[%s1 + $0x570] sm:$0xff]
  %v260 = vld [vmem:[%s1 + $0x578] sm:$0xff]
  %v261 = vld [vmem:[%s1 + $0x580] sm:$0xff]
  %v262 = vld [vmem:[%s1 + $0x588] sm:$0xff]
  %v263 = vld [vmem:[%s1 + $0x590] sm:$0xff]
  %v264 = vld [vmem:[%s1 + $0x598] sm:$0xff]
  %v265 = vld [vmem:[%s1 + $0x5a0] sm:$0xff]
  %v266 = vld [vmem:[%s1 + $0x5a8] sm:$0xff]
  %v267 = vld [vmem:[%s1 + $0x5b0] sm:$0xff]
  %v268 = vld [vmem:[%s1 + $0x5b8] sm:$0xff]
  %v269 = vld [vmem:[%s1 + $0x5c0] sm:$0xff]
  %v270 = vld [vmem:[%s1 + $0x5c8] sm:$0xff]
  %v271 = vld [vmem:[%s1 + $0x5d0] sm:$0xff]
  %v272 = vld [vmem:[%s1 + $0x5d8] sm:$0xff]
  %v273 = vld [vmem:[%s1 + $0x5e0] sm:$0xff]
  %v274 = vld [vmem:[%s1 + $0x5e8] sm:$0xff]
  %v275 = vld [vmem:[%s1 + $0x5f0] sm:$0xff]
  %v276 = vld [vmem:[%s1 + $0x5f8] sm:$0xff]
  %v277 = vld [vmem:[%s1 + $0x600] sm:$0xff]
  %v278 = vld [vmem:[%s1 + $0x608] sm:$0xff]
  %v279 = vld [vmem:[%s1 + $0x610] sm:$0xff]
  %v280 = vld [vmem:[%s1 + $0x618] sm:$0xff]
  %v281 = vld [vmem:[%s1 + $0x620] sm:$0xff]
  %v282 = vld [vmem:[%s1 + $0x628] sm:$0xff]
  %v283 = vld [vmem:[%s1 + $0x630] sm:$0xff]
  %v284 = vld [vmem:[%s1 + $0x638] sm:$0xff]
  %v285 = vld [vmem:[%s1 + $0x640] sm:$0xff]
  %v286 = vld [vmem:[%s1 + $0x648] sm:$0xff]
  %v287 = vld [vmem:[%s1 + $0x650] sm:$0xff]
  %v288 = vld [vmem:[%s1 + $0x658] sm:$0xff]
  %v289 = vld [vmem:[%s1 + $0x660] sm:$0xff]
  %v290 = vld [vmem:[%s1 + $0x668] sm:$0xff]
  %v291 = vld [vmem:[%s1 + $0x670] sm:$0xff]
  %v292 = vld [vmem:[%s1 + $0x678] sm:$0xff]
  %v293 = vld [vmem:[%s1 + $0x680] sm:$0xff]
  %v294 = vld [vmem:[%s1 + $0x688] sm:$0xff]
  %v295 = vld [vmem:[%s1 + $0x690] sm:$0xff]
  %v296 = vld [vmem:[%s1 + $0x698] sm:$0xff]
  %v297 = vld [vmem:[%s1 + $0x6a0] sm:$0xff]
  %v298 = vld [vmem:[%s1 + $0x6a8] sm:$0xff]
  %v299 = vld [vmem:[%s1 + $0x6b0] sm:$0xff]
  %v300 = vld [vmem:[%s1 + $0x6b8] sm:$0xff]
  %v301 = vld [vmem:[%s1 + $0x6c0] sm:$0xff]
  %v302 = vld [vmem:[%s1 + $0x6c8] sm:$0xff]
  %v303 = vld [vmem:[%s1 + $0x6d0] sm:$0xff]
  %v304 = vld [vmem:[%s1 + $0x6d8] sm:$0xff]
  %v305 = vld [vmem:[%s1 + $0x6e0] sm:$0xff]
  %v306 = vld [vmem:[%s1 + $0x6e8] sm:$0xff]
  %v307 = vld [vmem:[%s1 + $0x6f0] sm:$0xff]
  %v308 = vld [vmem:[%s1 + $0x6f8] sm:$0xff]
  %v309 = vld [vmem:[%s1 + $0x700] sm:$0xff]
  %v310 = vld [vmem:[%s1 + $0x708] sm:$0xff]
  %v311 = vld [vmem:[%s1 + $0x710] sm:$0xff]
  %v312 = vld [vmem:[%s1 + $0x718] sm:$0xff]
  %v313 = vld [vmem:[%s1 + $0x720] sm:$0xff]
  %v314 = vld [vmem:[%s1 + $0x728] sm:$0xff]
  %v315 = vld [vmem:[%s1 + $0x730] sm:$0xff]
  %v316 = vld [vmem:[%s1 + $0x738] sm:$0xff]
  %v317 = vld [vmem:[%s1 + $0x740] sm:$0xff]
  %v318 = vld [vmem:[%s1 + $0x748] sm:$0xff]
  %v319 = vld [vmem:[%s1 + $0x750] sm:$0xff]
  %v320 = vld [vmem:[%s1 + $0x758] sm:$0xff]
  %v321 = vld [vmem:[%s1 + $0x760] sm:$0xff]
  %v322 = vld [vmem:[%s1 + $0x768] sm:$0xff]
  %v323 = vld [vmem:[%s1 + $0x770] sm:$0xff]
  %v324 = vld [vmem:[%s1 + $0x778] sm:$0xff]
  %v325 = vld [vmem:[%s1 + $0x780] sm:$0xff]
  %v326 = vld [vmem:[%s1 + $0x788] sm:$0xff]
  %v327 = vld [vmem:[%s1 + $0x790] sm:$0xff]
  %v328 = vld [vmem:[%s1 + $0x798] sm:$0xff]
  %v329 = vld [vmem:[%s1 + $0x7a0] sm:$0xff]
  %v330 = vld [vmem:[%s1 + $0x7a8] sm:$0xff]
  %v331 = vld [vmem:[%s1 + $0x7b0] sm:$0xff]
  %v332 = vld [vmem:[%s1 + $0x7b8] sm:$0xff]
  %v333 = vld [vmem:[%s1 + $0x7c0] sm:$0xff]
  %v334 = vld [vmem:[%s1 + $0x7c8] sm:$0xff]
  %v335 = vld [vmem:[%s1 + $0x7d0] sm:$0xff]
  %v336 = vld [vmem:[%s1 + $0x7d8] sm:$0xff]
  %v337 = vld [vmem:[%s1 + $0x7e0] sm:$0xff]
  %v338 = vld [vmem:[%s1 + $0x7e8] sm:$0xff]
  %v339 = vld [vmem:[%s1 + $0x7f0] sm:$0xff]
  %v340 = vld [vmem:[%s1 + $0x7f8] sm:$0xff]
  %v341 = vld [vmem:[%s2] sm:$0xf]
  %v343 = vlaneseq
  %v344 = vshrl.u32 %v343, 7
  %v345 = vsub.s32 0, %v344
  %v346 = vrot.slane %v341, %v345
  %v347 = vlaneseq
  %v348 = vshrl.u32 %v347, 7
  %v349 = vsub.s32 1, %v348
  %v350 = vrot.slane %v341, %v349
  %v351 = vlaneseq
  %v352 = vshrl.u32 %v351, 7
  %v353 = vsub.s32 2, %v352
  %v354 = vrot.slane %v341, %v353
  %v355 = vlaneseq
  %v356 = vshrl.u32 %v355, 7
  %v357 = vsub.s32 3, %v356
  %v358 = vrot.slane %v341, %v357
  %v619 = vunpack.c.l.b16 %v85
  %v620 = vunpack.c.h.b16 %v85
  %v621 = vunpack.c.l.b16 %v86
  %v622 = vunpack.c.h.b16 %v86
  %v623 = vunpack.c.l.b16 %v87
  %v624 = vunpack.c.h.b16 %v87
  %v625 = vunpack.c.l.b16 %v88
  %v626 = vunpack.c.h.b16 %v88
  %v627 = vunpack.c.l.b16 %v89
  %v628 = vunpack.c.h.b16 %v89
  %v629 = vunpack.c.l.b16 %v90
  %v630 = vunpack.c.h.b16 %v90
  %v631 = vunpack.c.l.b16 %v91
  %v632 = vunpack.c.h.b16 %v91
  %v633 = vunpack.c.l.b16 %v92
  %v634 = vunpack.c.h.b16 %v92
  %v635 = vunpack.c.l.b16 %v93
  %v636 = vunpack.c.h.b16 %v93
  %v637 = vunpack.c.l.b16 %v94
  %v638 = vunpack.c.h.b16 %v94
  %v639 = vunpack.c.l.b16 %v95
  %v640 = vunpack.c.h.b16 %v95
  %v641 = vunpack.c.l.b16 %v96
  %v642 = vunpack.c.h.b16 %v96
  %v643 = vunpack.c.l.b16 %v97
  %v644 = vunpack.c.h.b16 %v97
  %v645 = vunpack.c.l.b16 %v98
  %v646 = vunpack.c.h.b16 %v98
  %v647 = vunpack.c.l.b16 %v99
  %v648 = vunpack.c.h.b16 %v99
  %v649 = vunpack.c.l.b16 %v100
  %v650 = vunpack.c.h.b16 %v100
  %v651 = vunpack.c.l.b16 %v101
  %v652 = vunpack.c.h.b16 %v101
  %v653 = vunpack.c.l.b16 %v102
  %v654 = vunpack.c.h.b16 %v102
  %v655 = vunpack.c.l.b16 %v103
  %v656 = vunpack.c.h.b16 %v103
  %v657 = vunpack.c.l.b16 %v104
  %v658 = vunpack.c.h.b16 %v104
  %v659 = vunpack.c.l.b16 %v105
  %v660 = vunpack.c.h.b16 %v105
  %v661 = vunpack.c.l.b16 %v106
  %v662 = vunpack.c.h.b16 %v106
  %v663 = vunpack.c.l.b16 %v107
  %v664 = vunpack.c.h.b16 %v107
  %v665 = vunpack.c.l.b16 %v108
  %v666 = vunpack.c.h.b16 %v108
  %v667 = vunpack.c.l.b16 %v109
  %v668 = vunpack.c.h.b16 %v109
  %v669 = vunpack.c.l.b16 %v110
  %v670 = vunpack.c.h.b16 %v110
  %v671 = vunpack.c.l.b16 %v111
  %v672 = vunpack.c.h.b16 %v111
  %v673 = vunpack.c.l.b16 %v112
  %v674 = vunpack.c.h.b16 %v112
  %v675 = vunpack.c.l.b16 %v113
  %v676 = vunpack.c.h.b16 %v113
  %v677 = vunpack.c.l.b16 %v114
  %v678 = vunpack.c.h.b16 %v114
  %v679 = vunpack.c.l.b16 %v115
  %v680 = vunpack.c.h.b16 %v115
  %v681 = vunpack.c.l.b16 %v116
  %v682 = vunpack.c.h.b16 %v116
  %v683 = vunpack.c.l.b16 %v117
  %v684 = vunpack.c.h.b16 %v117
  %v685 = vunpack.c.l.b16 %v118
  %v686 = vunpack.c.h.b16 %v118
  %v687 = vunpack.c.l.b16 %v119
  %v688 = vunpack.c.h.b16 %v119
  %v689 = vunpack.c.l.b16 %v120
  %v690 = vunpack.c.h.b16 %v120
  %v691 = vunpack.c.l.b16 %v121
  %v692 = vunpack.c.h.b16 %v121
  %v693 = vunpack.c.l.b16 %v122
  %v694 = vunpack.c.h.b16 %v122
  %v695 = vunpack.c.l.b16 %v123
  %v696 = vunpack.c.h.b16 %v123
  %v697 = vunpack.c.l.b16 %v124
  %v698 = vunpack.c.h.b16 %v124
  %v699 = vunpack.c.l.b16 %v125
  %v700 = vunpack.c.h.b16 %v125
  %v701 = vunpack.c.l.b16 %v126
  %v702 = vunpack.c.h.b16 %v126
  %v703 = vunpack.c.l.b16 %v127
  %v704 = vunpack.c.h.b16 %v127
  %v705 = vunpack.c.l.b16 %v128
  %v706 = vunpack.c.h.b16 %v128
  %v707 = vunpack.c.l.b16 %v129
  %v708 = vunpack.c.h.b16 %v129
  %v709 = vunpack.c.l.b16 %v130
  %v710 = vunpack.c.h.b16 %v130
  %v711 = vunpack.c.l.b16 %v131
  %v712 = vunpack.c.h.b16 %v131
  %v713 = vunpack.c.l.b16 %v132
  %v714 = vunpack.c.h.b16 %v132
  %v715 = vunpack.c.l.b16 %v133
  %v716 = vunpack.c.h.b16 %v133
  %v717 = vunpack.c.l.b16 %v134
  %v718 = vunpack.c.h.b16 %v134
  %v719 = vunpack.c.l.b16 %v135
  %v720 = vunpack.c.h.b16 %v135
  %v721 = vunpack.c.l.b16 %v136
  %v722 = vunpack.c.h.b16 %v136
  %v723 = vunpack.c.l.b16 %v137
  %v724 = vunpack.c.h.b16 %v137
  %v725 = vunpack.c.l.b16 %v138
  %v726 = vunpack.c.h.b16 %v138
  %v727 = vunpack.c.l.b16 %v139
  %v728 = vunpack.c.h.b16 %v139
  %v729 = vunpack.c.l.b16 %v140
  %v730 = vunpack.c.h.b16 %v140
  %v731 = vunpack.c.l.b16 %v141
  %v732 = vunpack.c.h.b16 %v141
  %v733 = vunpack.c.l.b16 %v142
  %v734 = vunpack.c.h.b16 %v142
  %v735 = vunpack.c.l.b16 %v143
  %v736 = vunpack.c.h.b16 %v143
  %v737 = vunpack.c.l.b16 %v144
  %v738 = vunpack.c.h.b16 %v144
  %v739 = vunpack.c.l.b16 %v145
  %v740 = vunpack.c.h.b16 %v145
  %v741 = vunpack.c.l.b16 %v146
  %v742 = vunpack.c.h.b16 %v146
  %v743 = vunpack.c.l.b16 %v147
  %v744 = vunpack.c.h.b16 %v147
  %v745 = vunpack.c.l.b16 %v148
  %v746 = vunpack.c.h.b16 %v148
  %v747 = vunpack.c.l.b16 %v149
  %v748 = vunpack.c.h.b16 %v149
  %v749 = vunpack.c.l.b16 %v150
  %v750 = vunpack.c.h.b16 %v150
  %v751 = vunpack.c.l.b16 %v151
  %v752 = vunpack.c.h.b16 %v151
  %v753 = vunpack.c.l.b16 %v152
  %v754 = vunpack.c.h.b16 %v152
  %v755 = vunpack.c.l.b16 %v153
  %v756 = vunpack.c.h.b16 %v153
  %v757 = vunpack.c.l.b16 %v154
  %v758 = vunpack.c.h.b16 %v154
  %v759 = vunpack.c.l.b16 %v155
  %v760 = vunpack.c.h.b16 %v155
  %v761 = vunpack.c.l.b16 %v156
  %v762 = vunpack.c.h.b16 %v156
  %v763 = vunpack.c.l.b16 %v157
  %v764 = vunpack.c.h.b16 %v157
  %v765 = vunpack.c.l.b16 %v158
  %v766 = vunpack.c.h.b16 %v158
  %v767 = vunpack.c.l.b16 %v159
  %v768 = vunpack.c.h.b16 %v159
  %v769 = vunpack.c.l.b16 %v160
  %v770 = vunpack.c.h.b16 %v160
  %v771 = vunpack.c.l.b16 %v161
  %v772 = vunpack.c.h.b16 %v161
  %v773 = vunpack.c.l.b16 %v162
  %v774 = vunpack.c.h.b16 %v162
  %v775 = vunpack.c.l.b16 %v163
  %v776 = vunpack.c.h.b16 %v163
  %v777 = vunpack.c.l.b16 %v164
  %v778 = vunpack.c.h.b16 %v164
  %v779 = vunpack.c.l.b16 %v165
  %v780 = vunpack.c.h.b16 %v165
  %v781 = vunpack.c.l.b16 %v166
  %v782 = vunpack.c.h.b16 %v166
  %v783 = vunpack.c.l.b16 %v167
  %v784 = vunpack.c.h.b16 %v167
  %v785 = vunpack.c.l.b16 %v168
  %v786 = vunpack.c.h.b16 %v168
  %v787 = vunpack.c.l.b16 %v169
  %v788 = vunpack.c.h.b16 %v169
  %v789 = vunpack.c.l.b16 %v170
  %v790 = vunpack.c.h.b16 %v170
  %v791 = vunpack.c.l.b16 %v171
  %v792 = vunpack.c.h.b16 %v171
  %v793 = vunpack.c.l.b16 %v172
  %v794 = vunpack.c.h.b16 %v172
  %v795 = vunpack.c.l.b16 %v173
  %v796 = vunpack.c.h.b16 %v173
  %v797 = vunpack.c.l.b16 %v174
  %v798 = vunpack.c.h.b16 %v174
  %v799 = vunpack.c.l.b16 %v175
  %v800 = vunpack.c.h.b16 %v175
  %v801 = vunpack.c.l.b16 %v176
  %v802 = vunpack.c.h.b16 %v176
  %v803 = vunpack.c.l.b16 %v177
  %v804 = vunpack.c.h.b16 %v177
  %v805 = vunpack.c.l.b16 %v178
  %v806 = vunpack.c.h.b16 %v178
  %v807 = vunpack.c.l.b16 %v179
  %v808 = vunpack.c.h.b16 %v179
  %v809 = vunpack.c.l.b16 %v180
  %v810 = vunpack.c.h.b16 %v180
  %v811 = vunpack.c.l.b16 %v181
  %v812 = vunpack.c.h.b16 %v181
  %v813 = vunpack.c.l.b16 %v182
  %v814 = vunpack.c.h.b16 %v182
  %v815 = vunpack.c.l.b16 %v183
  %v816 = vunpack.c.h.b16 %v183
  %v817 = vunpack.c.l.b16 %v184
  %v818 = vunpack.c.h.b16 %v184
  %v819 = vunpack.c.l.b16 %v185
  %v820 = vunpack.c.h.b16 %v185
  %v821 = vunpack.c.l.b16 %v186
  %v822 = vunpack.c.h.b16 %v186
  %v823 = vunpack.c.l.b16 %v187
  %v824 = vunpack.c.h.b16 %v187
  %v825 = vunpack.c.l.b16 %v188
  %v826 = vunpack.c.h.b16 %v188
  %v827 = vunpack.c.l.b16 %v189
  %v828 = vunpack.c.h.b16 %v189
  %v829 = vunpack.c.l.b16 %v190
  %v830 = vunpack.c.h.b16 %v190
  %v831 = vunpack.c.l.b16 %v191
  %v832 = vunpack.c.h.b16 %v191
  %v833 = vunpack.c.l.b16 %v192
  %v834 = vunpack.c.h.b16 %v192
  %v835 = vunpack.c.l.b16 %v193
  %v836 = vunpack.c.h.b16 %v193
  %v837 = vunpack.c.l.b16 %v194
  %v838 = vunpack.c.h.b16 %v194
  %v839 = vunpack.c.l.b16 %v195
  %v840 = vunpack.c.h.b16 %v195
  %v841 = vunpack.c.l.b16 %v196
  %v842 = vunpack.c.h.b16 %v196
  %v843 = vunpack.c.l.b16 %v197
  %v844 = vunpack.c.h.b16 %v197
  %v845 = vunpack.c.l.b16 %v198
  %v846 = vunpack.c.h.b16 %v198
  %v847 = vunpack.c.l.b16 %v199
  %v848 = vunpack.c.h.b16 %v199
  %v849 = vunpack.c.l.b16 %v200
  %v850 = vunpack.c.h.b16 %v200
  %v851 = vunpack.c.l.b16 %v201
  %v852 = vunpack.c.h.b16 %v201
  %v853 = vunpack.c.l.b16 %v202
  %v854 = vunpack.c.h.b16 %v202
  %v855 = vunpack.c.l.b16 %v203
  %v856 = vunpack.c.h.b16 %v203
  %v857 = vunpack.c.l.b16 %v204
  %v858 = vunpack.c.h.b16 %v204
  %v859 = vunpack.c.l.b16 %v205
  %v860 = vunpack.c.h.b16 %v205
  %v861 = vunpack.c.l.b16 %v206
  %v862 = vunpack.c.h.b16 %v206
  %v863 = vunpack.c.l.b16 %v207
  %v864 = vunpack.c.h.b16 %v207
  %v865 = vunpack.c.l.b16 %v208
  %v866 = vunpack.c.h.b16 %v208
  %v867 = vunpack.c.l.b16 %v209
  %v868 = vunpack.c.h.b16 %v209
  %v869 = vunpack.c.l.b16 %v210
  %v870 = vunpack.c.h.b16 %v210
  %v871 = vunpack.c.l.b16 %v211
  %v872 = vunpack.c.h.b16 %v211
  %v873 = vunpack.c.l.b16 %v212
  %v874 = vunpack.c.h.b16 %v212
  %v875 = vunpack.c.l.b16 %v213
  %v876 = vunpack.c.h.b16 %v213
  %v877 = vunpack.c.l.b16 %v214
  %v878 = vunpack.c.h.b16 %v214
  %v879 = vunpack.c.l.b16 %v215
  %v880 = vunpack.c.h.b16 %v215
  %v881 = vunpack.c.l.b16 %v216
  %v882 = vunpack.c.h.b16 %v216
  %v883 = vunpack.c.l.b16 %v217
  %v884 = vunpack.c.h.b16 %v217
  %v885 = vunpack.c.l.b16 %v218
  %v886 = vunpack.c.h.b16 %v218
  %v887 = vunpack.c.l.b16 %v219
  %v888 = vunpack.c.h.b16 %v219
  %v889 = vunpack.c.l.b16 %v220
  %v890 = vunpack.c.h.b16 %v220
  %v891 = vunpack.c.l.b16 %v221
  %v892 = vunpack.c.h.b16 %v221
  %v893 = vunpack.c.l.b16 %v222
  %v894 = vunpack.c.h.b16 %v222
  %v895 = vunpack.c.l.b16 %v223
  %v896 = vunpack.c.h.b16 %v223
  %v897 = vunpack.c.l.b16 %v224
  %v898 = vunpack.c.h.b16 %v224
  %v899 = vunpack.c.l.b16 %v225
  %v900 = vunpack.c.h.b16 %v225
  %v901 = vunpack.c.l.b16 %v226
  %v902 = vunpack.c.h.b16 %v226
  %v903 = vunpack.c.l.b16 %v227
  %v904 = vunpack.c.h.b16 %v227
  %v905 = vunpack.c.l.b16 %v228
  %v906 = vunpack.c.h.b16 %v228
  %v907 = vunpack.c.l.b16 %v229
  %v908 = vunpack.c.h.b16 %v229
  %v909 = vunpack.c.l.b16 %v230
  %v910 = vunpack.c.h.b16 %v230
  %v911 = vunpack.c.l.b16 %v231
  %v912 = vunpack.c.h.b16 %v231
  %v913 = vunpack.c.l.b16 %v232
  %v914 = vunpack.c.h.b16 %v232
  %v915 = vunpack.c.l.b16 %v233
  %v916 = vunpack.c.h.b16 %v233
  %v917 = vunpack.c.l.b16 %v234
  %v918 = vunpack.c.h.b16 %v234
  %v919 = vunpack.c.l.b16 %v235
  %v920 = vunpack.c.h.b16 %v235
  %v921 = vunpack.c.l.b16 %v236
  %v922 = vunpack.c.h.b16 %v236
  %v923 = vunpack.c.l.b16 %v237
  %v924 = vunpack.c.h.b16 %v237
  %v925 = vunpack.c.l.b16 %v238
  %v926 = vunpack.c.h.b16 %v238
  %v927 = vunpack.c.l.b16 %v239
  %v928 = vunpack.c.h.b16 %v239
  %v929 = vunpack.c.l.b16 %v240
  %v930 = vunpack.c.h.b16 %v240
  %v931 = vunpack.c.l.b16 %v241
  %v932 = vunpack.c.h.b16 %v241
  %v933 = vunpack.c.l.b16 %v242
  %v934 = vunpack.c.h.b16 %v242
  %v935 = vunpack.c.l.b16 %v243
  %v936 = vunpack.c.h.b16 %v243
  %v937 = vunpack.c.l.b16 %v244
  %v938 = vunpack.c.h.b16 %v244
  %v939 = vunpack.c.l.b16 %v245
  %v940 = vunpack.c.h.b16 %v245
  %v941 = vunpack.c.l.b16 %v246
  %v942 = vunpack.c.h.b16 %v246
  %v943 = vunpack.c.l.b16 %v247
  %v944 = vunpack.c.h.b16 %v247
  %v945 = vunpack.c.l.b16 %v248
  %v946 = vunpack.c.h.b16 %v248
  %v947 = vunpack.c.l.b16 %v249
  %v948 = vunpack.c.h.b16 %v249
  %v949 = vunpack.c.l.b16 %v250
  %v950 = vunpack.c.h.b16 %v250
  %v951 = vunpack.c.l.b16 %v251
  %v952 = vunpack.c.h.b16 %v251
  %v953 = vunpack.c.l.b16 %v252
  %v954 = vunpack.c.h.b16 %v252
  %v955 = vunpack.c.l.b16 %v253
  %v956 = vunpack.c.h.b16 %v253
  %v957 = vunpack.c.l.b16 %v254
  %v958 = vunpack.c.h.b16 %v254
  %v959 = vunpack.c.l.b16 %v255
  %v960 = vunpack.c.h.b16 %v255
  %v961 = vunpack.c.l.b16 %v256
  %v962 = vunpack.c.h.b16 %v256
  %v963 = vunpack.c.l.b16 %v257
  %v964 = vunpack.c.h.b16 %v257
  %v965 = vunpack.c.l.b16 %v258
  %v966 = vunpack.c.h.b16 %v258
  %v967 = vunpack.c.l.b16 %v259
  %v968 = vunpack.c.h.b16 %v259
  %v969 = vunpack.c.l.b16 %v260
  %v970 = vunpack.c.h.b16 %v260
  %v971 = vunpack.c.l.b16 %v261
  %v972 = vunpack.c.h.b16 %v261
  %v973 = vunpack.c.l.b16 %v262
  %v974 = vunpack.c.h.b16 %v262
  %v975 = vunpack.c.l.b16 %v263
  %v976 = vunpack.c.h.b16 %v263
  %v977 = vunpack.c.l.b16 %v264
  %v978 = vunpack.c.h.b16 %v264
  %v979 = vunpack.c.l.b16 %v265
  %v980 = vunpack.c.h.b16 %v265
  %v981 = vunpack.c.l.b16 %v266
  %v982 = vunpack.c.h.b16 %v266
  %v983 = vunpack.c.l.b16 %v267
  %v984 = vunpack.c.h.b16 %v267
  %v985 = vunpack.c.l.b16 %v268
  %v986 = vunpack.c.h.b16 %v268
  %v987 = vunpack.c.l.b16 %v269
  %v988 = vunpack.c.h.b16 %v269
  %v989 = vunpack.c.l.b16 %v270
  %v990 = vunpack.c.h.b16 %v270
  %v991 = vunpack.c.l.b16 %v271
  %v992 = vunpack.c.h.b16 %v271
  %v993 = vunpack.c.l.b16 %v272
  %v994 = vunpack.c.h.b16 %v272
  %v995 = vunpack.c.l.b16 %v273
  %v996 = vunpack.c.h.b16 %v273
  %v997 = vunpack.c.l.b16 %v274
  %v998 = vunpack.c.h.b16 %v274
  %v999 = vunpack.c.l.b16 %v275
  %v1000 = vunpack.c.h.b16 %v275
  %v1001 = vunpack.c.l.b16 %v276
  %v1002 = vunpack.c.h.b16 %v276
  %v1003 = vunpack.c.l.b16 %v277
  %v1004 = vunpack.c.h.b16 %v277
  %v1005 = vunpack.c.l.b16 %v278
  %v1006 = vunpack.c.h.b16 %v278
  %v1007 = vunpack.c.l.b16 %v279
  %v1008 = vunpack.c.h.b16 %v279
  %v1009 = vunpack.c.l.b16 %v280
  %v1010 = vunpack.c.h.b16 %v280
  %v1011 = vunpack.c.l.b16 %v281
  %v1012 = vunpack.c.h.b16 %v281
  %v1013 = vunpack.c.l.b16 %v282
  %v1014 = vunpack.c.h.b16 %v282
  %v1015 = vunpack.c.l.b16 %v283
  %v1016 = vunpack.c.h.b16 %v283
  %v1017 = vunpack.c.l.b16 %v284
  %v1018 = vunpack.c.h.b16 %v284
  %v1019 = vunpack.c.l.b16 %v285
  %v1020 = vunpack.c.h.b16 %v285
  %v1021 = vunpack.c.l.b16 %v286
  %v1022 = vunpack.c.h.b16 %v286
  %v1023 = vunpack.c.l.b16 %v287
  %v1024 = vunpack.c.h.b16 %v287
  %v1025 = vunpack.c.l.b16 %v288
  %v1026 = vunpack.c.h.b16 %v288
  %v1027 = vunpack.c.l.b16 %v289
  %v1028 = vunpack.c.h.b16 %v289
  %v1029 = vunpack.c.l.b16 %v290
  %v1030 = vunpack.c.h.b16 %v290
  %v1031 = vunpack.c.l.b16 %v291
  %v1032 = vunpack.c.h.b16 %v291
  %v1033 = vunpack.c.l.b16 %v292
  %v1034 = vunpack.c.h.b16 %v292
  %v1035 = vunpack.c.l.b16 %v293
  %v1036 = vunpack.c.h.b16 %v293
  %v1037 = vunpack.c.l.b16 %v294
  %v1038 = vunpack.c.h.b16 %v294
  %v1039 = vunpack.c.l.b16 %v295
  %v1040 = vunpack.c.h.b16 %v295
  %v1041 = vunpack.c.l.b16 %v296
  %v1042 = vunpack.c.h.b16 %v296
  %v1043 = vunpack.c.l.b16 %v297
  %v1044 = vunpack.c.h.b16 %v297
  %v1045 = vunpack.c.l.b16 %v298
  %v1046 = vunpack.c.h.b16 %v298
  %v1047 = vunpack.c.l.b16 %v299
  %v1048 = vunpack.c.h.b16 %v299
  %v1049 = vunpack.c.l.b16 %v300
  %v1050 = vunpack.c.h.b16 %v300
  %v1051 = vunpack.c.l.b16 %v301
  %v1052 = vunpack.c.h.b16 %v301
  %v1053 = vunpack.c.l.b16 %v302
  %v1054 = vunpack.c.h.b16 %v302
  %v1055 = vunpack.c.l.b16 %v303
  %v1056 = vunpack.c.h.b16 %v303
  %v1057 = vunpack.c.l.b16 %v304
  %v1058 = vunpack.c.h.b16 %v304
  %v1059 = vunpack.c.l.b16 %v305
  %v1060 = vunpack.c.h.b16 %v305
  %v1061 = vunpack.c.l.b16 %v306
  %v1062 = vunpack.c.h.b16 %v306
  %v1063 = vunpack.c.l.b16 %v307
  %v1064 = vunpack.c.h.b16 %v307
  %v1065 = vunpack.c.l.b16 %v308
  %v1066 = vunpack.c.h.b16 %v308
  %v1067 = vunpack.c.l.b16 %v309
  %v1068 = vunpack.c.h.b16 %v309
  %v1069 = vunpack.c.l.b16 %v310
  %v1070 = vunpack.c.h.b16 %v310
  %v1071 = vunpack.c.l.b16 %v311
  %v1072 = vunpack.c.h.b16 %v311
  %v1073 = vunpack.c.l.b16 %v312
  %v1074 = vunpack.c.h.b16 %v312
  %v1075 = vunpack.c.l.b16 %v313
  %v1076 = vunpack.c.h.b16 %v313
  %v1077 = vunpack.c.l.b16 %v314
  %v1078 = vunpack.c.h.b16 %v314
  %v1079 = vunpack.c.l.b16 %v315
  %v1080 = vunpack.c.h.b16 %v315
  %v1081 = vunpack.c.l.b16 %v316
  %v1082 = vunpack.c.h.b16 %v316
  %v1083 = vunpack.c.l.b16 %v317
  %v1084 = vunpack.c.h.b16 %v317
  %v1085 = vunpack.c.l.b16 %v318
  %v1086 = vunpack.c.h.b16 %v318
  %v1087 = vunpack.c.l.b16 %v319
  %v1088 = vunpack.c.h.b16 %v319
  %v1089 = vunpack.c.l.b16 %v320
  %v1090 = vunpack.c.h.b16 %v320
  %v1091 = vunpack.c.l.b16 %v321
  %v1092 = vunpack.c.h.b16 %v321
  %v1093 = vunpack.c.l.b16 %v322
  %v1094 = vunpack.c.h.b16 %v322
  %v1095 = vunpack.c.l.b16 %v323
  %v1096 = vunpack.c.h.b16 %v323
  %v1097 = vunpack.c.l.b16 %v324
  %v1098 = vunpack.c.h.b16 %v324
  %v1099 = vunpack.c.l.b16 %v325
  %v1100 = vunpack.c.h.b16 %v325
  %v1101 = vunpack.c.l.b16 %v326
  %v1102 = vunpack.c.h.b16 %v326
  %v1103 = vunpack.c.l.b16 %v327
  %v1104 = vunpack.c.h.b16 %v327
  %v1105 = vunpack.c.l.b16 %v328
  %v1106 = vunpack.c.h.b16 %v328
  %v1107 = vunpack.c.l.b16 %v329
  %v1108 = vunpack.c.h.b16 %v329
  %v1109 = vunpack.c.l.b16 %v330
  %v1110 = vunpack.c.h.b16 %v330
  %v1111 = vunpack.c.l.b16 %v331
  %v1112 = vunpack.c.h.b16 %v331
  %v1113 = vunpack.c.l.b16 %v332
  %v1114 = vunpack.c.h.b16 %v332
  %v1115 = vunpack.c.l.b16 %v333
  %v1116 = vunpack.c.h.b16 %v333
  %v1117 = vunpack.c.l.b16 %v334
  %v1118 = vunpack.c.h.b16 %v334
  %v1119 = vunpack.c.l.b16 %v335
  %v1120 = vunpack.c.h.b16 %v335
  %v1121 = vunpack.c.l.b16 %v336
  %v1122 = vunpack.c.h.b16 %v336
  %v1123 = vunpack.c.l.b16 %v337
  %v1124 = vunpack.c.h.b16 %v337
  %v1125 = vunpack.c.l.b16 %v338
  %v1126 = vunpack.c.h.b16 %v338
  %v1127 = vunpack.c.l.b16 %v339
  %v1128 = vunpack.c.h.b16 %v339
  %v1129 = vunpack.c.l.b16 %v340
  %v1130 = vunpack.c.h.b16 %v340
  %v1131 = vpack.c.b16 %v623, %v619
  %v1132 = vpack.c.b16 %v624, %v620
  %v1133 = vpack.c.b16 %v625, %v621
  %v1134 = vpack.c.b16 %v626, %v622
  %v1135 = vpack.c.b16 %v631, %v627
  %v1136 = vpack.c.b16 %v632, %v628
  %v1137 = vpack.c.b16 %v633, %v629
  %v1138 = vpack.c.b16 %v634, %v630
  %v1139 = vpack.c.b16 %v639, %v635
  %v1140 = vpack.c.b16 %v640, %v636
  %v1141 = vpack.c.b16 %v641, %v637
  %v1142 = vpack.c.b16 %v642, %v638
  %v1143 = vpack.c.b16 %v647, %v643
  %v1144 = vpack.c.b16 %v648, %v644
  %v1145 = vpack.c.b16 %v649, %v645
  %v1146 = vpack.c.b16 %v650, %v646
  %v1147 = vpack.c.b16 %v655, %v651
  %v1148 = vpack.c.b16 %v656, %v652
  %v1149 = vpack.c.b16 %v657, %v653
  %v1150 = vpack.c.b16 %v658, %v654
  %v1151 = vpack.c.b16 %v663, %v659
  %v1152 = vpack.c.b16 %v664, %v660
  %v1153 = vpack.c.b16 %v665, %v661
  %v1154 = vpack.c.b16 %v666, %v662
  %v1155 = vpack.c.b16 %v671, %v667
  %v1156 = vpack.c.b16 %v672, %v668
  %v1157 = vpack.c.b16 %v673, %v669
  %v1158 = vpack.c.b16 %v674, %v670
  %v1159 = vpack.c.b16 %v679, %v675
  %v1160 = vpack.c.b16 %v680, %v676
  %v1161 = vpack.c.b16 %v681, %v677
  %v1162 = vpack.c.b16 %v682, %v678
  %v1163 = vpack.c.b16 %v687, %v683
  %v1164 = vpack.c.b16 %v688, %v684
  %v1165 = vpack.c.b16 %v689, %v685
  %v1166 = vpack.c.b16 %v690, %v686
  %v1167 = vpack.c.b16 %v695, %v691
  %v1168 = vpack.c.b16 %v696, %v692
  %v1169 = vpack.c.b16 %v697, %v693
  %v1170 = vpack.c.b16 %v698, %v694
  %v1171 = vpack.c.b16 %v703, %v699
  %v1172 = vpack.c.b16 %v704, %v700
  %v1173 = vpack.c.b16 %v705, %v701
  %v1174 = vpack.c.b16 %v706, %v702
  %v1175 = vpack.c.b16 %v711, %v707
  %v1176 = vpack.c.b16 %v712, %v708
  %v1177 = vpack.c.b16 %v713, %v709
  %v1178 = vpack.c.b16 %v714, %v710
  %v1179 = vpack.c.b16 %v719, %v715
  %v1180 = vpack.c.b16 %v720, %v716
  %v1181 = vpack.c.b16 %v721, %v717
  %v1182 = vpack.c.b16 %v722, %v718
  %v1183 = vpack.c.b16 %v727, %v723
  %v1184 = vpack.c.b16 %v728, %v724
  %v1185 = vpack.c.b16 %v729, %v725
  %v1186 = vpack.c.b16 %v730, %v726
  %v1187 = vpack.c.b16 %v735, %v731
  %v1188 = vpack.c.b16 %v736, %v732
  %v1189 = vpack.c.b16 %v737, %v733
  %v1190 = vpack.c.b16 %v738, %v734
  %v1191 = vpack.c.b16 %v743, %v739
  %v1192 = vpack.c.b16 %v744, %v740
  %v1193 = vpack.c.b16 %v745, %v741
  %v1194 = vpack.c.b16 %v746, %v742
  %v1195 = vpack.c.b16 %v751, %v747
  %v1196 = vpack.c.b16 %v752, %v748
  %v1197 = vpack.c.b16 %v753, %v749
  %v1198 = vpack.c.b16 %v754, %v750
  %v1199 = vpack.c.b16 %v759, %v755
  %v1200 = vpack.c.b16 %v760, %v756
  %v1201 = vpack.c.b16 %v761, %v757
  %v1202 = vpack.c.b16 %v762, %v758
  %v1203 = vpack.c.b16 %v767, %v763
  %v1204 = vpack.c.b16 %v768, %v764
  %v1205 = vpack.c.b16 %v769, %v765
  %v1206 = vpack.c.b16 %v770, %v766
  %v1207 = vpack.c.b16 %v775, %v771
  %v1208 = vpack.c.b16 %v776, %v772
  %v1209 = vpack.c.b16 %v777, %v773
  %v1210 = vpack.c.b16 %v778, %v774
  %v1211 = vpack.c.b16 %v783, %v779
  %v1212 = vpack.c.b16 %v784, %v780
  %v1213 = vpack.c.b16 %v785, %v781
  %v1214 = vpack.c.b16 %v786, %v782
  %v1215 = vpack.c.b16 %v791, %v787
  %v1216 = vpack.c.b16 %v792, %v788
  %v1217 = vpack.c.b16 %v793, %v789
  %v1218 = vpack.c.b16 %v794, %v790
  %v1219 = vpack.c.b16 %v799, %v795
  %v1220 = vpack.c.b16 %v800, %v796
  %v1221 = vpack.c.b16 %v801, %v797
  %v1222 = vpack.c.b16 %v802, %v798
  %v1223 = vpack.c.b16 %v807, %v803
  %v1224 = vpack.c.b16 %v808, %v804
  %v1225 = vpack.c.b16 %v809, %v805
  %v1226 = vpack.c.b16 %v810, %v806
  %v1227 = vpack.c.b16 %v815, %v811
  %v1228 = vpack.c.b16 %v816, %v812
  %v1229 = vpack.c.b16 %v817, %v813
  %v1230 = vpack.c.b16 %v818, %v814
  %v1231 = vpack.c.b16 %v823, %v819
  %v1232 = vpack.c.b16 %v824, %v820
  %v1233 = vpack.c.b16 %v825, %v821
  %v1234 = vpack.c.b16 %v826, %v822
  %v1235 = vpack.c.b16 %v831, %v827
  %v1236 = vpack.c.b16 %v832, %v828
  %v1237 = vpack.c.b16 %v833, %v829
  %v1238 = vpack.c.b16 %v834, %v830
  %v1239 = vpack.c.b16 %v839, %v835
  %v1240 = vpack.c.b16 %v840, %v836
  %v1241 = vpack.c.b16 %v841, %v837
  %v1242 = vpack.c.b16 %v842, %v838
  %v1243 = vpack.c.b16 %v847, %v843
  %v1244 = vpack.c.b16 %v848, %v844
  %v1245 = vpack.c.b16 %v849, %v845
  %v1246 = vpack.c.b16 %v850, %v846
  %v1247 = vpack.c.b16 %v855, %v851
  %v1248 = vpack.c.b16 %v856, %v852
  %v1249 = vpack.c.b16 %v857, %v853
  %v1250 = vpack.c.b16 %v858, %v854
  %v1251 = vpack.c.b16 %v863, %v859
  %v1252 = vpack.c.b16 %v864, %v860
  %v1253 = vpack.c.b16 %v865, %v861
  %v1254 = vpack.c.b16 %v866, %v862
  %v1255 = vpack.c.b16 %v871, %v867
  %v1256 = vpack.c.b16 %v872, %v868
  %v1257 = vpack.c.b16 %v873, %v869
  %v1258 = vpack.c.b16 %v874, %v870
  %v1259 = vpack.c.b16 %v879, %v875
  %v1260 = vpack.c.b16 %v880, %v876
  %v1261 = vpack.c.b16 %v881, %v877
  %v1262 = vpack.c.b16 %v882, %v878
  %v1263 = vpack.c.b16 %v887, %v883
  %v1264 = vpack.c.b16 %v888, %v884
  %v1265 = vpack.c.b16 %v889, %v885
  %v1266 = vpack.c.b16 %v890, %v886
  %v1267 = vpack.c.b16 %v895, %v891
  %v1268 = vpack.c.b16 %v896, %v892
  %v1269 = vpack.c.b16 %v897, %v893
  %v1270 = vpack.c.b16 %v898, %v894
  %v1271 = vpack.c.b16 %v903, %v899
  %v1272 = vpack.c.b16 %v904, %v900
  %v1273 = vpack.c.b16 %v905, %v901
  %v1274 = vpack.c.b16 %v906, %v902
  %v1275 = vpack.c.b16 %v911, %v907
  %v1276 = vpack.c.b16 %v912, %v908
  %v1277 = vpack.c.b16 %v913, %v909
  %v1278 = vpack.c.b16 %v914, %v910
  %v1279 = vpack.c.b16 %v919, %v915
  %v1280 = vpack.c.b16 %v920, %v916
  %v1281 = vpack.c.b16 %v921, %v917
  %v1282 = vpack.c.b16 %v922, %v918
  %v1283 = vpack.c.b16 %v927, %v923
  %v1284 = vpack.c.b16 %v928, %v924
  %v1285 = vpack.c.b16 %v929, %v925
  %v1286 = vpack.c.b16 %v930, %v926
  %v1287 = vpack.c.b16 %v935, %v931
  %v1288 = vpack.c.b16 %v936, %v932
  %v1289 = vpack.c.b16 %v937, %v933
  %v1290 = vpack.c.b16 %v938, %v934
  %v1291 = vpack.c.b16 %v943, %v939
  %v1292 = vpack.c.b16 %v944, %v940
  %v1293 = vpack.c.b16 %v945, %v941
  %v1294 = vpack.c.b16 %v946, %v942
  %v1295 = vpack.c.b16 %v951, %v947
  %v1296 = vpack.c.b16 %v952, %v948
  %v1297 = vpack.c.b16 %v953, %v949
  %v1298 = vpack.c.b16 %v954, %v950
  %v1299 = vpack.c.b16 %v959, %v955
  %v1300 = vpack.c.b16 %v960, %v956
  %v1301 = vpack.c.b16 %v961, %v957
  %v1302 = vpack.c.b16 %v962, %v958
  %v1303 = vpack.c.b16 %v967, %v963
  %v1304 = vpack.c.b16 %v968, %v964
  %v1305 = vpack.c.b16 %v969, %v965
  %v1306 = vpack.c.b16 %v970, %v966
  %v1307 = vpack.c.b16 %v975, %v971
  %v1308 = vpack.c.b16 %v976, %v972
  %v1309 = vpack.c.b16 %v977, %v973
  %v1310 = vpack.c.b16 %v978, %v974
  %v1311 = vpack.c.b16 %v983, %v979
  %v1312 = vpack.c.b16 %v984, %v980
  %v1313 = vpack.c.b16 %v985, %v981
  %v1314 = vpack.c.b16 %v986, %v982
  %v1315 = vpack.c.b16 %v991, %v987
  %v1316 = vpack.c.b16 %v992, %v988
  %v1317 = vpack.c.b16 %v993, %v989
  %v1318 = vpack.c.b16 %v994, %v990
  %v1319 = vpack.c.b16 %v999, %v995
  %v1320 = vpack.c.b16 %v1000, %v996
  %v1321 = vpack.c.b16 %v1001, %v997
  %v1322 = vpack.c.b16 %v1002, %v998
  %v1323 = vpack.c.b16 %v1007, %v1003
  %v1324 = vpack.c.b16 %v1008, %v1004
  %v1325 = vpack.c.b16 %v1009, %v1005
  %v1326 = vpack.c.b16 %v1010, %v1006
  %v1327 = vpack.c.b16 %v1015, %v1011
  %v1328 = vpack.c.b16 %v1016, %v1012
  %v1329 = vpack.c.b16 %v1017, %v1013
  %v1330 = vpack.c.b16 %v1018, %v1014
  %v1331 = vpack.c.b16 %v1023, %v1019
  %v1332 = vpack.c.b16 %v1024, %v1020
  %v1333 = vpack.c.b16 %v1025, %v1021
  %v1334 = vpack.c.b16 %v1026, %v1022
  %v1335 = vpack.c.b16 %v1031, %v1027
  %v1336 = vpack.c.b16 %v1032, %v1028
  %v1337 = vpack.c.b16 %v1033, %v1029
  %v1338 = vpack.c.b16 %v1034, %v1030
  %v1339 = vpack.c.b16 %v1039, %v1035
  %v1340 = vpack.c.b16 %v1040, %v1036
  %v1341 = vpack.c.b16 %v1041, %v1037
  %v1342 = vpack.c.b16 %v1042, %v1038
  %v1343 = vpack.c.b16 %v1047, %v1043
  %v1344 = vpack.c.b16 %v1048, %v1044
  %v1345 = vpack.c.b16 %v1049, %v1045
  %v1346 = vpack.c.b16 %v1050, %v1046
  %v1347 = vpack.c.b16 %v1055, %v1051
  %v1348 = vpack.c.b16 %v1056, %v1052
  %v1349 = vpack.c.b16 %v1057, %v1053
  %v1350 = vpack.c.b16 %v1058, %v1054
  %v1351 = vpack.c.b16 %v1063, %v1059
  %v1352 = vpack.c.b16 %v1064, %v1060
  %v1353 = vpack.c.b16 %v1065, %v1061
  %v1354 = vpack.c.b16 %v1066, %v1062
  %v1355 = vpack.c.b16 %v1071, %v1067
  %v1356 = vpack.c.b16 %v1072, %v1068
  %v1357 = vpack.c.b16 %v1073, %v1069
  %v1358 = vpack.c.b16 %v1074, %v1070
  %v1359 = vpack.c.b16 %v1079, %v1075
  %v1360 = vpack.c.b16 %v1080, %v1076
  %v1361 = vpack.c.b16 %v1081, %v1077
  %v1362 = vpack.c.b16 %v1082, %v1078
  %v1363 = vpack.c.b16 %v1087, %v1083
  %v1364 = vpack.c.b16 %v1088, %v1084
  %v1365 = vpack.c.b16 %v1089, %v1085
  %v1366 = vpack.c.b16 %v1090, %v1086
  %v1367 = vpack.c.b16 %v1095, %v1091
  %v1368 = vpack.c.b16 %v1096, %v1092
  %v1369 = vpack.c.b16 %v1097, %v1093
  %v1370 = vpack.c.b16 %v1098, %v1094
  %v1371 = vpack.c.b16 %v1103, %v1099
  %v1372 = vpack.c.b16 %v1104, %v1100
  %v1373 = vpack.c.b16 %v1105, %v1101
  %v1374 = vpack.c.b16 %v1106, %v1102
  %v1375 = vpack.c.b16 %v1111, %v1107
  %v1376 = vpack.c.b16 %v1112, %v1108
  %v1377 = vpack.c.b16 %v1113, %v1109
  %v1378 = vpack.c.b16 %v1114, %v1110
  %v1379 = vpack.c.b16 %v1119, %v1115
  %v1380 = vpack.c.b16 %v1120, %v1116
  %v1381 = vpack.c.b16 %v1121, %v1117
  %v1382 = vpack.c.b16 %v1122, %v1118
  %v1383 = vpack.c.b16 %v1127, %v1123
  %v1384 = vpack.c.b16 %v1128, %v1124
  %v1385 = vpack.c.b16 %v1129, %v1125
  %v1386 = vpack.c.b16 %v1130, %v1126
  %1643 = vmatprep.subr.bf16.mxu0 %v1132
  %1644 = vmatpush1.bf16.msra.mxu0 %v1131
  %1645 = vmatprep.subr.bf16.mxu0 %v1136
  %1646 = vmatpush1.bf16.msra.mxu0 %v1135
  %1647 = vmatprep.subr.bf16.mxu0 %v1140
  %1648 = vmatpush1.bf16.msra.mxu0 %v1139
  %1649 = vmatprep.subr.bf16.mxu0 %v1144
  %1650 = vmatpush1.bf16.msra.mxu0 %v1143
  %1651 = vmatprep.subr.bf16.mxu0 %v1148
  %1652 = vmatpush1.bf16.msra.mxu0 %v1147
  %1653 = vmatprep.subr.bf16.mxu0 %v1152
  %1654 = vmatpush1.bf16.msra.mxu0 %v1151
  %1655 = vmatprep.subr.bf16.mxu0 %v1156
  %1656 = vmatpush1.bf16.msra.mxu0 %v1155
  %1657 = vmatprep.subr.bf16.mxu0 %v1160
  %1658 = vmatpush1.bf16.msra.mxu0 %v1159
  %1659 = vmatprep.subr.bf16.mxu0 %v1164
  %1660 = vmatpush1.bf16.msra.mxu0 %v1163
  %1661 = vmatprep.subr.bf16.mxu0 %v1168
  %1662 = vmatpush1.bf16.msra.mxu0 %v1167
  %1663 = vmatprep.subr.bf16.mxu0 %v1172
  %1664 = vmatpush1.bf16.msra.mxu0 %v1171
  %1665 = vmatprep.subr.bf16.mxu0 %v1176
  %1666 = vmatpush1.bf16.msra.mxu0 %v1175
  %1667 = vmatprep.subr.bf16.mxu0 %v1180
  %1668 = vmatpush1.bf16.msra.mxu0 %v1179
  %1669 = vmatprep.subr.bf16.mxu0 %v1184
  %1670 = vmatpush1.bf16.msra.mxu0 %v1183
  %1671 = vmatprep.subr.bf16.mxu0 %v1188
  %1672 = vmatpush1.bf16.msra.mxu0 %v1187
  %1673 = vmatprep.subr.bf16.mxu0 %v1192
  %1674 = vmatpush1.bf16.msra.mxu0 %v1191
  %1675 = vmatprep.mubr.bf16.mxu0 %v78
  %1676 = vmatmul.mubr.bf16.gmra.mrb[0].mxu0 %v77
  %v1677 = vpop.f32.mrb[0].mxu0
  %v1678 = vadd.f32 %v346, %v1677
  %v1679 = vpop.f32.mrb[0].mxu0
  %v1680 = vadd.f32 %v350, %v1679
  %v1681 = vpop.f32.mrb[0].mxu0
  %v1682 = vpop.f32.mrb[0].mxu0
  %1683 = vdwg.mxu0
  %1684 = vmatprep.subr.bf16.mxu0 %v1196
  %1685 = vmatpush1.bf16.msra.mxu0 %v1195
  %1686 = vmatprep.subr.bf16.mxu0 %v1200
  %1687 = vmatpush1.bf16.msra.mxu0 %v1199
  %1688 = vmatprep.subr.bf16.mxu0 %v1204
  %1689 = vmatpush1.bf16.msra.mxu0 %v1203
  %1690 = vmatprep.subr.bf16.mxu0 %v1208
  %1691 = vmatpush1.bf16.msra.mxu0 %v1207
  %1692 = vmatprep.subr.bf16.mxu0 %v1212
  %1693 = vmatpush1.bf16.msra.mxu0 %v1211
  %1694 = vmatprep.subr.bf16.mxu0 %v1216
  %1695 = vmatpush1.bf16.msra.mxu0 %v1215
  %1696 = vmatprep.subr.bf16.mxu0 %v1220
  %1697 = vmatpush1.bf16.msra.mxu0 %v1219
  %1698 = vmatprep.subr.bf16.mxu0 %v1224
  %1699 = vmatpush1.bf16.msra.mxu0 %v1223
  %1700 = vmatprep.subr.bf16.mxu0 %v1228
  %1701 = vmatpush1.bf16.msra.mxu0 %v1227
  %1702 = vmatprep.subr.bf16.mxu0 %v1232
  %1703 = vmatpush1.bf16.msra.mxu0 %v1231
  %1704 = vmatprep.subr.bf16.mxu0 %v1236
  %1705 = vmatpush1.bf16.msra.mxu0 %v1235
  %1706 = vmatprep.subr.bf16.mxu0 %v1240
  %1707 = vmatpush1.bf16.msra.mxu0 %v1239
  %1708 = vmatprep.subr.bf16.mxu0 %v1244
  %1709 = vmatpush1.bf16.msra.mxu0 %v1243
  %1710 = vmatprep.subr.bf16.mxu0 %v1248
  %1711 = vmatpush1.bf16.msra.mxu0 %v1247
  %1712 = vmatprep.subr.bf16.mxu0 %v1252
  %1713 = vmatpush1.bf16.msra.mxu0 %v1251
  %1714 = vmatprep.subr.bf16.mxu0 %v1256
  %1715 = vmatpush1.bf16.msra.mxu0 %v1255
  %1716 = vmatprep.mubr.bf16.mxu0 %v80
  %1717 = vmatmul.mubr.bf16.gmra.mrb[0].mxu0 %v79
  %v1718 = vpop.f32.mrb[0].mxu0
  %v1719 = vadd.f32 %v1678, %v1718
  %v1720 = vpop.f32.mrb[0].mxu0
  %v1721 = vadd.f32 %v1680, %v1720
  %v1722 = vpop.f32.mrb[0].mxu0
  %v1723 = vpop.f32.mrb[0].mxu0
  %1724 = vdwg.mxu0
  %1725 = vmatprep.subr.bf16.mxu0 %v1260
  %1726 = vmatpush1.bf16.msra.mxu0 %v1259
  %1727 = vmatprep.subr.bf16.mxu0 %v1264
  %1728 = vmatpush1.bf16.msra.mxu0 %v1263
  %1729 = vmatprep.subr.bf16.mxu0 %v1268
  %1730 = vmatpush1.bf16.msra.mxu0 %v1267
  %1731 = vmatprep.subr.bf16.mxu0 %v1272
  %1732 = vmatpush1.bf16.msra.mxu0 %v1271
  %1733 = vmatprep.subr.bf16.mxu0 %v1276
  %1734 = vmatpush1.bf16.msra.mxu0 %v1275
  %1735 = vmatprep.subr.bf16.mxu0 %v1280
  %1736 = vmatpush1.bf16.msra.mxu0 %v1279
  %1737 = vmatprep.subr.bf16.mxu0 %v1284
  %1738 = vmatpush1.bf16.msra.mxu0 %v1283
  %1739 = vmatprep.subr.bf16.mxu0 %v1288
  %1740 = vmatpush1.bf16.msra.mxu0 %v1287
  %1741 = vmatprep.subr.bf16.mxu0 %v1292
  %1742 = vmatpush1.bf16.msra.mxu0 %v1291
  %1743 = vmatprep.subr.bf16.mxu0 %v1296
  %1744 = vmatpush1.bf16.msra.mxu0 %v1295
  %1745 = vmatprep.subr.bf16.mxu0 %v1300
  %1746 = vmatpush1.bf16.msra.mxu0 %v1299
  %1747 = vmatprep.subr.bf16.mxu0 %v1304
  %1748 = vmatpush1.bf16.msra.mxu0 %v1303
  %1749 = vmatprep.subr.bf16.mxu0 %v1308
  %1750 = vmatpush1.bf16.msra.mxu0 %v1307
  %1751 = vmatprep.subr.bf16.mxu0 %v1312
  %1752 = vmatpush1.bf16.msra.mxu0 %v1311
  %1753 = vmatprep.subr.bf16.mxu0 %v1316
  %1754 = vmatpush1.bf16.msra.mxu0 %v1315
  %1755 = vmatprep.subr.bf16.mxu0 %v1320
  %1756 = vmatpush1.bf16.msra.mxu0 %v1319
  %1757 = vmatprep.mubr.bf16.mxu0 %v82
  %1758 = vmatmul.mubr.bf16.gmra.mrb[0].mxu0 %v81
  %v1759 = vpop.f32.mrb[0].mxu0
  %v1760 = vadd.f32 %v1719, %v1759
  %v1761 = vpop.f32.mrb[0].mxu0
  %v1762 = vadd.f32 %v1721, %v1761
  %v1763 = vpop.f32.mrb[0].mxu0
  %v1764 = vpop.f32.mrb[0].mxu0
  %1765 = vdwg.mxu0
  %1766 = vmatprep.subr.bf16.mxu0 %v1324
  %1767 = vmatpush1.bf16.msra.mxu0 %v1323
  %1768 = vmatprep.subr.bf16.mxu0 %v1328
  %1769 = vmatpush1.bf16.msra.mxu0 %v1327
  %1770 = vmatprep.subr.bf16.mxu0 %v1332
  %1771 = vmatpush1.bf16.msra.mxu0 %v1331
  %1772 = vmatprep.subr.bf16.mxu0 %v1336
  %1773 = vmatpush1.bf16.msra.mxu0 %v1335
  %1774 = vmatprep.subr.bf16.mxu0 %v1340
  %1775 = vmatpush1.bf16.msra.mxu0 %v1339
  %1776 = vmatprep.subr.bf16.mxu0 %v1344
  %1777 = vmatpush1.bf16.msra.mxu0 %v1343
  %1778 = vmatprep.subr.bf16.mxu0 %v1348
  %1779 = vmatpush1.bf16.msra.mxu0 %v1347
  %1780 = vmatprep.subr.bf16.mxu0 %v1352
  %1781 = vmatpush1.bf16.msra.mxu0 %v1351
  %1782 = vmatprep.subr.bf16.mxu0 %v1356
  %1783 = vmatpush1.bf16.msra.mxu0 %v1355
  %1784 = vmatprep.subr.bf16.mxu0 %v1360
  %1785 = vmatpush1.bf16.msra.mxu0 %v1359
  %1786 = vmatprep.subr.bf16.mxu0 %v1364
  %1787 = vmatpush1.bf16.msra.mxu0 %v1363
  %1788 = vmatprep.subr.bf16.mxu0 %v1368
  %1789 = vmatpush1.bf16.msra.mxu0 %v1367
  %1790 = vmatprep.subr.bf16.mxu0 %v1372
  %1791 = vmatpush1.bf16.msra.mxu0 %v1371
  %1792 = vmatprep.subr.bf16.mxu0 %v1376
  %1793 = vmatpush1.bf16.msra.mxu0 %v1375
  %1794 = vmatprep.subr.bf16.mxu0 %v1380
  %1795 = vmatpush1.bf16.msra.mxu0 %v1379
  %1796 = vmatprep.subr.bf16.mxu0 %v1384
  %1797 = vmatpush1.bf16.msra.mxu0 %v1383
  %1798 = vmatprep.mubr.bf16.mxu0 %v84
  %1799 = vmatmul.mubr.bf16.gmra.mrb[0].mxu0 %v83
  %v1800 = vpop.f32.mrb[0].mxu0
  %v1801 = vadd.f32 %v1760, %v1800
  %v1802 = vpop.f32.mrb[0].mxu0
  %v1803 = vadd.f32 %v1762, %v1802
  %v1804 = vpop.f32.mrb[0].mxu0
  %v1805 = vpop.f32.mrb[0].mxu0
  %1806 = vdwg.mxu0
  %1807 = vmatprep.subr.bf16.mxu0 %v1134
  %1808 = vmatpush1.bf16.msra.mxu0 %v1133
  %1809 = vmatprep.subr.bf16.mxu0 %v1138
  %1810 = vmatpush1.bf16.msra.mxu0 %v1137
  %1811 = vmatprep.subr.bf16.mxu0 %v1142
  %1812 = vmatpush1.bf16.msra.mxu0 %v1141
  %1813 = vmatprep.subr.bf16.mxu0 %v1146
  %1814 = vmatpush1.bf16.msra.mxu0 %v1145
  %1815 = vmatprep.subr.bf16.mxu0 %v1150
  %1816 = vmatpush1.bf16.msra.mxu0 %v1149
  %1817 = vmatprep.subr.bf16.mxu0 %v1154
  %1818 = vmatpush1.bf16.msra.mxu0 %v1153
  %1819 = vmatprep.subr.bf16.mxu0 %v1158
  %1820 = vmatpush1.bf16.msra.mxu0 %v1157
  %1821 = vmatprep.subr.bf16.mxu0 %v1162
  %1822 = vmatpush1.bf16.msra.mxu0 %v1161
  %1823 = vmatprep.subr.bf16.mxu0 %v1166
  %1824 = vmatpush1.bf16.msra.mxu0 %v1165
  %1825 = vmatprep.subr.bf16.mxu0 %v1170
  %1826 = vmatpush1.bf16.msra.mxu0 %v1169
  %1827 = vmatprep.subr.bf16.mxu0 %v1174
  %1828 = vmatpush1.bf16.msra.mxu0 %v1173
  %1829 = vmatprep.subr.bf16.mxu0 %v1178
  %1830 = vmatpush1.bf16.msra.mxu0 %v1177
  %1831 = vmatprep.subr.bf16.mxu0 %v1182
  %1832 = vmatpush1.bf16.msra.mxu0 %v1181
  %1833 = vmatprep.subr.bf16.mxu0 %v1186
  %1834 = vmatpush1.bf16.msra.mxu0 %v1185
  %1835 = vmatprep.subr.bf16.mxu0 %v1190
  %1836 = vmatpush1.bf16.msra.mxu0 %v1189
  %1837 = vmatprep.subr.bf16.mxu0 %v1194
  %1838 = vmatpush1.bf16.msra.mxu0 %v1193
  %1839 = vmatprep.mubr.bf16.mxu0 %v78
  %1840 = vmatmul.mubr.bf16.gmra.mrb[0].mxu0 %v77
  %v1841 = vpop.f32.mrb[0].mxu0
  %v1842 = vadd.f32 %v354, %v1841
  %v1843 = vpop.f32.mrb[0].mxu0
  %v1844 = vadd.f32 %v358, %v1843
  %v1845 = vpop.f32.mrb[0].mxu0
  %v1846 = vpop.f32.mrb[0].mxu0
  %1847 = vdwg.mxu0
  %1848 = vmatprep.subr.bf16.mxu0 %v1198
  %1849 = vmatpush1.bf16.msra.mxu0 %v1197
  %1850 = vmatprep.subr.bf16.mxu0 %v1202
  %1851 = vmatpush1.bf16.msra.mxu0 %v1201
  %1852 = vmatprep.subr.bf16.mxu0 %v1206
  %1853 = vmatpush1.bf16.msra.mxu0 %v1205
  %1854 = vmatprep.subr.bf16.mxu0 %v1210
  %1855 = vmatpush1.bf16.msra.mxu0 %v1209
  %1856 = vmatprep.subr.bf16.mxu0 %v1214
  %1857 = vmatpush1.bf16.msra.mxu0 %v1213
  %1858 = vmatprep.subr.bf16.mxu0 %v1218
  %1859 = vmatpush1.bf16.msra.mxu0 %v1217
  %1860 = vmatprep.subr.bf16.mxu0 %v1222
  %1861 = vmatpush1.bf16.msra.mxu0 %v1221
  %1862 = vmatprep.subr.bf16.mxu0 %v1226
  %1863 = vmatpush1.bf16.msra.mxu0 %v1225
  %1864 = vmatprep.subr.bf16.mxu0 %v1230
  %1865 = vmatpush1.bf16.msra.mxu0 %v1229
  %1866 = vmatprep.subr.bf16.mxu0 %v1234
  %1867 = vmatpush1.bf16.msra.mxu0 %v1233
  %1868 = vmatprep.subr.bf16.mxu0 %v1238
  %1869 = vmatpush1.bf16.msra.mxu0 %v1237
  %1870 = vmatprep.subr.bf16.mxu0 %v1242
  %1871 = vmatpush1.bf16.msra.mxu0 %v1241
  %1872 = vmatprep.subr.bf16.mxu0 %v1246
  %1873 = vmatpush1.bf16.msra.mxu0 %v1245
  %1874 = vmatprep.subr.bf16.mxu0 %v1250
  %1875 = vmatpush1.bf16.msra.mxu0 %v1249
  %1876 = vmatprep.subr.bf16.mxu0 %v1254
  %1877 = vmatpush1.bf16.msra.mxu0 %v1253
  %1878 = vmatprep.subr.bf16.mxu0 %v1258
  %1879 = vmatpush1.bf16.msra.mxu0 %v1257
  %1880 = vmatprep.mubr.bf16.mxu0 %v80
  %1881 = vmatmul.mubr.bf16.gmra.mrb[0].mxu0 %v79
  %v1882 = vpop.f32.mrb[0].mxu0
  %v1883 = vadd.f32 %v1842, %v1882
  %v1884 = vpop.f32.mrb[0].mxu0
  %v1885 = vadd.f32 %v1844, %v1884
  %v1886 = vpop.f32.mrb[0].mxu0
  %v1887 = vpop.f32.mrb[0].mxu0
  %1888 = vdwg.mxu0
  %1889 = vmatprep.subr.bf16.mxu0 %v1262
  %1890 = vmatpush1.bf16.msra.mxu0 %v1261
  %1891 = vmatprep.subr.bf16.mxu0 %v1266
  %1892 = vmatpush1.bf16.msra.mxu0 %v1265
  %1893 = vmatprep.subr.bf16.mxu0 %v1270
  %1894 = vmatpush1.bf16.msra.mxu0 %v1269
  %1895 = vmatprep.subr.bf16.mxu0 %v1274
  %1896 = vmatpush1.bf16.msra.mxu0 %v1273
  %1897 = vmatprep.subr.bf16.mxu0 %v1278
  %1898 = vmatpush1.bf16.msra.mxu0 %v1277
  %1899 = vmatprep.subr.bf16.mxu0 %v1282
  %1900 = vmatpush1.bf16.msra.mxu0 %v1281
  %1901 = vmatprep.subr.bf16.mxu0 %v1286
  %1902 = vmatpush1.bf16.msra.mxu0 %v1285
  %1903 = vmatprep.subr.bf16.mxu0 %v1290
  %1904 = vmatpush1.bf16.msra.mxu0 %v1289
  %1905 = vmatprep.subr.bf16.mxu0 %v1294
  %1906 = vmatpush1.bf16.msra.mxu0 %v1293
  %1907 = vmatprep.subr.bf16.mxu0 %v1298
  %1908 = vmatpush1.bf16.msra.mxu0 %v1297
  %1909 = vmatprep.subr.bf16.mxu0 %v1302
  %1910 = vmatpush1.bf16.msra.mxu0 %v1301
  %1911 = vmatprep.subr.bf16.mxu0 %v1306
  %1912 = vmatpush1.bf16.msra.mxu0 %v1305
  %1913 = vmatprep.subr.bf16.mxu0 %v1310
  %1914 = vmatpush1.bf16.msra.mxu0 %v1309
  %1915 = vmatprep.subr.bf16.mxu0 %v1314
  %1916 = vmatpush1.bf16.msra.mxu0 %v1313
  %1917 = vmatprep.subr.bf16.mxu0 %v1318
  %1918 = vmatpush1.bf16.msra.mxu0 %v1317
  %1919 = vmatprep.subr.bf16.mxu0 %v1322
  %1920 = vmatpush1.bf16.msra.mxu0 %v1321
  %1921 = vmatprep.mubr.bf16.mxu0 %v82
  %1922 = vmatmul.mubr.bf16.gmra.mrb[0].mxu0 %v81
  %v1923 = vpop.f32.mrb[0].mxu0
  %v1924 = vadd.f32 %v1883, %v1923
  %v1925 = vpop.f32.mrb[0].mxu0
  %v1926 = vadd.f32 %v1885, %v1925
  %v1927 = vpop.f32.mrb[0].mxu0
  %v1928 = vpop.f32.mrb[0].mxu0
  %1929 = vdwg.mxu0
  %1930 = vmatprep.subr.bf16.mxu0 %v1326
  %1931 = vmatpush1.bf16.msra.mxu0 %v1325
  %1932 = vmatprep.subr.bf16.mxu0 %v1330
  %1933 = vmatpush1.bf16.msra.mxu0 %v1329
  %1934 = vmatprep.subr.bf16.mxu0 %v1334
  %1935 = vmatpush1.bf16.msra.mxu0 %v1333
  %1936 = vmatprep.subr.bf16.mxu0 %v1338
  %1937 = vmatpush1.bf16.msra.mxu0 %v1337
  %1938 = vmatprep.subr.bf16.mxu0 %v1342
  %1939 = vmatpush1.bf16.msra.mxu0 %v1341
  %1940 = vmatprep.subr.bf16.mxu0 %v1346
  %1941 = vmatpush1.bf16.msra.mxu0 %v1345
  %1942 = vmatprep.subr.bf16.mxu0 %v1350
  %1943 = vmatpush1.bf16.msra.mxu0 %v1349
  %1944 = vmatprep.subr.bf16.mxu0 %v1354
  %1945 = vmatpush1.bf16.msra.mxu0 %v1353
  %1946 = vmatprep.subr.bf16.mxu0 %v1358
  %1947 = vmatpush1.bf16.msra.mxu0 %v1357
  %1948 = vmatprep.subr.bf16.mxu0 %v1362
  %1949 = vmatpush1.bf16.msra.mxu0 %v1361
  %1950 = vmatprep.subr.bf16.mxu0 %v1366
  %1951 = vmatpush1.bf16.msra.mxu0 %v1365
  %1952 = vmatprep.subr.bf16.mxu0 %v1370
  %1953 = vmatpush1.bf16.msra.mxu0 %v1369
  %1954 = vmatprep.subr.bf16.mxu0 %v1374
  %1955 = vmatpush1.bf16.msra.mxu0 %v1373
  %1956 = vmatprep.subr.bf16.mxu0 %v1378
  %1957 = vmatpush1.bf16.msra.mxu0 %v1377
  %1958 = vmatprep.subr.bf16.mxu0 %v1382
  %1959 = vmatpush1.bf16.msra.mxu0 %v1381
  %1960 = vmatprep.subr.bf16.mxu0 %v1386
  %1961 = vmatpush1.bf16.msra.mxu0 %v1385
  %1962 = vmatprep.mubr.bf16.mxu0 %v84
  %1963 = vmatmul.mubr.bf16.gmra.mrb[0].mxu0 %v83
  %v1964 = vpop.f32.mrb[0].mxu0
  %v1965 = vadd.f32 %v1924, %v1964
  %v1966 = vpop.f32.mrb[0].mxu0
  %v1967 = vadd.f32 %v1926, %v1966
  %v1968 = vpop.f32.mrb[0].mxu0
  %v1969 = vpop.f32.mrb[0].mxu0
  %1970 = vdwg.mxu0
  %v1971 = vtanh.pop %v1801
  %v1972 = vtanh.pop %v1803
  %v1973 = vtanh.pop %v1965
  %v1974 = vtanh.pop %v1967
  %v1975 = vpack.c.bf16 %v1971, %v1971
  %v1976 = vpack.c.bf16 %v1972, %v1972
  %v1977 = vpack.c.bf16 %v1973, %v1973
  %v1978 = vpack.c.bf16 %v1974, %v1974
  %v1979 = vld [vmem:[%s3] sm:$0xff]
  %v1980 = vld [vmem:[%s3 + $0x8] sm:$0xff]
  %v1981 = vld [vmem:[%s3 + $0x10] sm:$0xff]
  %v1982 = vld [vmem:[%s3 + $0x18] sm:$0xff]
  %v1983 = vld [vmem:[%s3 + $0x20] sm:$0xff]
  %v1984 = vld [vmem:[%s3 + $0x28] sm:$0xff]
  %v1985 = vld [vmem:[%s3 + $0x30] sm:$0xff]
  %v1986 = vld [vmem:[%s3 + $0x38] sm:$0xff]
  %v1987 = vld [vmem:[%s3 + $0x40] sm:$0xff]
  %v1988 = vld [vmem:[%s3 + $0x48] sm:$0xff]
  %v1989 = vld [vmem:[%s3 + $0x50] sm:$0xff]
  %v1990 = vld [vmem:[%s3 + $0x58] sm:$0xff]
  %v1991 = vld [vmem:[%s3 + $0x60] sm:$0xff]
  %v1992 = vld [vmem:[%s3 + $0x68] sm:$0xff]
  %v1993 = vld [vmem:[%s3 + $0x70] sm:$0xff]
  %v1994 = vld [vmem:[%s3 + $0x78] sm:$0xff]
  %v1995 = vld [vmem:[%s3 + $0x80] sm:$0xff]
  %v1996 = vld [vmem:[%s3 + $0x88] sm:$0xff]
  %v1997 = vld [vmem:[%s3 + $0x90] sm:$0xff]
  %v1998 = vld [vmem:[%s3 + $0x98] sm:$0xff]
  %v1999 = vld [vmem:[%s3 + $0xa0] sm:$0xff]
  %v2000 = vld [vmem:[%s3 + $0xa8] sm:$0xff]
  %v2001 = vld [vmem:[%s3 + $0xb0] sm:$0xff]
  %v2002 = vld [vmem:[%s3 + $0xb8] sm:$0xff]
  %v2003 = vld [vmem:[%s3 + $0xc0] sm:$0xff]
  %v2004 = vld [vmem:[%s3 + $0xc8] sm:$0xff]
  %v2005 = vld [vmem:[%s3 + $0xd0] sm:$0xff]
  %v2006 = vld [vmem:[%s3 + $0xd8] sm:$0xff]
  %v2007 = vld [vmem:[%s3 + $0xe0] sm:$0xff]
  %v2008 = vld [vmem:[%s3 + $0xe8] sm:$0xff]
  %v2009 = vld [vmem:[%s3 + $0xf0] sm:$0xff]
  %v2010 = vld [vmem:[%s3 + $0xf8] sm:$0xff]
  %v2011 = vld [vmem:[%s3 + $0x100] sm:$0xff]
  %v2012 = vld [vmem:[%s3 + $0x108] sm:$0xff]
  %v2013 = vld [vmem:[%s3 + $0x110] sm:$0xff]
  %v2014 = vld [vmem:[%s3 + $0x118] sm:$0xff]
  %v2015 = vld [vmem:[%s3 + $0x120] sm:$0xff]
  %v2016 = vld [vmem:[%s3 + $0x128] sm:$0xff]
  %v2017 = vld [vmem:[%s3 + $0x130] sm:$0xff]
  %v2018 = vld [vmem:[%s3 + $0x138] sm:$0xff]
  %v2019 = vld [vmem:[%s3 + $0x140] sm:$0xff]
  %v2020 = vld [vmem:[%s3 + $0x148] sm:$0xff]
  %v2021 = vld [vmem:[%s3 + $0x150] sm:$0xff]
  %v2022 = vld [vmem:[%s3 + $0x158] sm:$0xff]
  %v2023 = vld [vmem:[%s3 + $0x160] sm:$0xff]
  %v2024 = vld [vmem:[%s3 + $0x168] sm:$0xff]
  %v2025 = vld [vmem:[%s3 + $0x170] sm:$0xff]
  %v2026 = vld [vmem:[%s3 + $0x178] sm:$0xff]
  %v2027 = vld [vmem:[%s3 + $0x180] sm:$0xff]
  %v2028 = vld [vmem:[%s3 + $0x188] sm:$0xff]
  %v2029 = vld [vmem:[%s3 + $0x190] sm:$0xff]
  %v2030 = vld [vmem:[%s3 + $0x198] sm:$0xff]
  %v2031 = vld [vmem:[%s3 + $0x1a0] sm:$0xff]
  %v2032 = vld [vmem:[%s3 + $0x1a8] sm:$0xff]
  %v2033 = vld [vmem:[%s3 + $0x1b0] sm:$0xff]
  %v2034 = vld [vmem:[%s3 + $0x1b8] sm:$0xff]
  %v2035 = vld [vmem:[%s3 + $0x1c0] sm:$0xff]
  %v2036 = vld [vmem:[%s3 + $0x1c8] sm:$0xff]
  %v2037 = vld [vmem:[%s3 + $0x1d0] sm:$0xff]
  %v2038 = vld [vmem:[%s3 + $0x1d8] sm:$0xff]
  %v2039 = vld [vmem:[%s3 + $0x1e0] sm:$0xff]
  %v2040 = vld [vmem:[%s3 + $0x1e8] sm:$0xff]
  %v2041 = vld [vmem:[%s3 + $0x1f0] sm:$0xff]
  %v2042 = vld [vmem:[%s3 + $0x1f8] sm:$0xff]
  %v2043 = vld [vmem:[%s4] sm:$0x3]
  %v2045 = vlaneseq
  %v2046 = vshrl.u32 %v2045, 7
  %v2047 = vsub.s32 0, %v2046
  %v2048 = vrot.slane %v2043, %v2047
  %v2049 = vlaneseq
  %v2050 = vshrl.u32 %v2049, 7
  %v2051 = vsub.s32 1, %v2050
  %v2052 = vrot.slane %v2043, %v2051
  %v2119 = vunpack.c.l.b16 %v1979
  %v2120 = vunpack.c.h.b16 %v1979
  %v2121 = vunpack.c.l.b16 %v1980
  %v2122 = vunpack.c.h.b16 %v1980
  %v2123 = vunpack.c.l.b16 %v1981
  %v2124 = vunpack.c.h.b16 %v1981
  %v2125 = vunpack.c.l.b16 %v1982
  %v2126 = vunpack.c.h.b16 %v1982
  %v2127 = vunpack.c.l.b16 %v1983
  %v2128 = vunpack.c.h.b16 %v1983
  %v2129 = vunpack.c.l.b16 %v1984
  %v2130 = vunpack.c.h.b16 %v1984
  %v2131 = vunpack.c.l.b16 %v1985
  %v2132 = vunpack.c.h.b16 %v1985
  %v2133 = vunpack.c.l.b16 %v1986
  %v2134 = vunpack.c.h.b16 %v1986
  %v2135 = vunpack.c.l.b16 %v1987
  %v2136 = vunpack.c.h.b16 %v1987
  %v2137 = vunpack.c.l.b16 %v1988
  %v2138 = vunpack.c.h.b16 %v1988
  %v2139 = vunpack.c.l.b16 %v1989
  %v2140 = vunpack.c.h.b16 %v1989
  %v2141 = vunpack.c.l.b16 %v1990
  %v2142 = vunpack.c.h.b16 %v1990
  %v2143 = vunpack.c.l.b16 %v1991
  %v2144 = vunpack.c.h.b16 %v1991
  %v2145 = vunpack.c.l.b16 %v1992
  %v2146 = vunpack.c.h.b16 %v1992
  %v2147 = vunpack.c.l.b16 %v1993
  %v2148 = vunpack.c.h.b16 %v1993
  %v2149 = vunpack.c.l.b16 %v1994
  %v2150 = vunpack.c.h.b16 %v1994
  %v2151 = vunpack.c.l.b16 %v1995
  %v2152 = vunpack.c.h.b16 %v1995
  %v2153 = vunpack.c.l.b16 %v1996
  %v2154 = vunpack.c.h.b16 %v1996
  %v2155 = vunpack.c.l.b16 %v1997
  %v2156 = vunpack.c.h.b16 %v1997
  %v2157 = vunpack.c.l.b16 %v1998
  %v2158 = vunpack.c.h.b16 %v1998
  %v2159 = vunpack.c.l.b16 %v1999
  %v2160 = vunpack.c.h.b16 %v1999
  %v2161 = vunpack.c.l.b16 %v2000
  %v2162 = vunpack.c.h.b16 %v2000
  %v2163 = vunpack.c.l.b16 %v2001
  %v2164 = vunpack.c.h.b16 %v2001
  %v2165 = vunpack.c.l.b16 %v2002
  %v2166 = vunpack.c.h.b16 %v2002
  %v2167 = vunpack.c.l.b16 %v2003
  %v2168 = vunpack.c.h.b16 %v2003
  %v2169 = vunpack.c.l.b16 %v2004
  %v2170 = vunpack.c.h.b16 %v2004
  %v2171 = vunpack.c.l.b16 %v2005
  %v2172 = vunpack.c.h.b16 %v2005
  %v2173 = vunpack.c.l.b16 %v2006
  %v2174 = vunpack.c.h.b16 %v2006
  %v2175 = vunpack.c.l.b16 %v2007
  %v2176 = vunpack.c.h.b16 %v2007
  %v2177 = vunpack.c.l.b16 %v2008
  %v2178 = vunpack.c.h.b16 %v2008
  %v2179 = vunpack.c.l.b16 %v2009
  %v2180 = vunpack.c.h.b16 %v2009
  %v2181 = vunpack.c.l.b16 %v2010
  %v2182 = vunpack.c.h.b16 %v2010
  %v2183 = vunpack.c.l.b16 %v2011
  %v2184 = vunpack.c.h.b16 %v2011
  %v2185 = vunpack.c.l.b16 %v2012
  %v2186 = vunpack.c.h.b16 %v2012
  %v2187 = vunpack.c.l.b16 %v2013
  %v2188 = vunpack.c.h.b16 %v2013
  %v2189 = vunpack.c.l.b16 %v2014
  %v2190 = vunpack.c.h.b16 %v2014
  %v2191 = vunpack.c.l.b16 %v2015
  %v2192 = vunpack.c.h.b16 %v2015
  %v2193 = vunpack.c.l.b16 %v2016
  %v2194 = vunpack.c.h.b16 %v2016
  %v2195 = vunpack.c.l.b16 %v2017
  %v2196 = vunpack.c.h.b16 %v2017
  %v2197 = vunpack.c.l.b16 %v2018
  %v2198 = vunpack.c.h.b16 %v2018
  %v2199 = vunpack.c.l.b16 %v2019
  %v2200 = vunpack.c.h.b16 %v2019
  %v2201 = vunpack.c.l.b16 %v2020
  %v2202 = vunpack.c.h.b16 %v2020
  %v2203 = vunpack.c.l.b16 %v2021
  %v2204 = vunpack.c.h.b16 %v2021
  %v2205 = vunpack.c.l.b16 %v2022
  %v2206 = vunpack.c.h.b16 %v2022
  %v2207 = vunpack.c.l.b16 %v2023
  %v2208 = vunpack.c.h.b16 %v2023
  %v2209 = vunpack.c.l.b16 %v2024
  %v2210 = vunpack.c.h.b16 %v2024
  %v2211 = vunpack.c.l.b16 %v2025
  %v2212 = vunpack.c.h.b16 %v2025
  %v2213 = vunpack.c.l.b16 %v2026
  %v2214 = vunpack.c.h.b16 %v2026
  %v2215 = vunpack.c.l.b16 %v2027
  %v2216 = vunpack.c.h.b16 %v2027
  %v2217 = vunpack.c.l.b16 %v2028
  %v2218 = vunpack.c.h.b16 %v2028
  %v2219 = vunpack.c.l.b16 %v2029
  %v2220 = vunpack.c.h.b16 %v2029
  %v2221 = vunpack.c.l.b16 %v2030
  %v2222 = vunpack.c.h.b16 %v2030
  %v2223 = vunpack.c.l.b16 %v2031
  %v2224 = vunpack.c.h.b16 %v2031
  %v2225 = vunpack.c.l.b16 %v2032
  %v2226 = vunpack.c.h.b16 %v2032
  %v2227 = vunpack.c.l.b16 %v2033
  %v2228 = vunpack.c.h.b16 %v2033
  %v2229 = vunpack.c.l.b16 %v2034
  %v2230 = vunpack.c.h.b16 %v2034
  %v2231 = vunpack.c.l.b16 %v2035
  %v2232 = vunpack.c.h.b16 %v2035
  %v2233 = vunpack.c.l.b16 %v2036
  %v2234 = vunpack.c.h.b16 %v2036
  %v2235 = vunpack.c.l.b16 %v2037
  %v2236 = vunpack.c.h.b16 %v2037
  %v2237 = vunpack.c.l.b16 %v2038
  %v2238 = vunpack.c.h.b16 %v2038
  %v2239 = vunpack.c.l.b16 %v2039
  %v2240 = vunpack.c.h.b16 %v2039
  %v2241 = vunpack.c.l.b16 %v2040
  %v2242 = vunpack.c.h.b16 %v2040
  %v2243 = vunpack.c.l.b16 %v2041
  %v2244 = vunpack.c.h.b16 %v2041
  %v2245 = vunpack.c.l.b16 %v2042
  %v2246 = vunpack.c.h.b16 %v2042
  %v2247 = vpack.c.b16 %v2121, %v2119
  %v2248 = vpack.c.b16 %v2122, %v2120
  %v2249 = vpack.c.b16 %v2125, %v2123
  %v2250 = vpack.c.b16 %v2126, %v2124
  %v2251 = vpack.c.b16 %v2129, %v2127
  %v2252 = vpack.c.b16 %v2130, %v2128
  %v2253 = vpack.c.b16 %v2133, %v2131
  %v2254 = vpack.c.b16 %v2134, %v2132
  %v2255 = vpack.c.b16 %v2137, %v2135
  %v2256 = vpack.c.b16 %v2138, %v2136
  %v2257 = vpack.c.b16 %v2141, %v2139
  %v2258 = vpack.c.b16 %v2142, %v2140
  %v2259 = vpack.c.b16 %v2145, %v2143
  %v2260 = vpack.c.b16 %v2146, %v2144
  %v2261 = vpack.c.b16 %v2149, %v2147
  %v2262 = vpack.c.b16 %v2150, %v2148
  %v2263 = vpack.c.b16 %v2153, %v2151
  %v2264 = vpack.c.b16 %v2154, %v2152
  %v2265 = vpack.c.b16 %v2157, %v2155
  %v2266 = vpack.c.b16 %v2158, %v2156
  %v2267 = vpack.c.b16 %v2161, %v2159
  %v2268 = vpack.c.b16 %v2162, %v2160
  %v2269 = vpack.c.b16 %v2165, %v2163
  %v2270 = vpack.c.b16 %v2166, %v2164
  %v2271 = vpack.c.b16 %v2169, %v2167
  %v2272 = vpack.c.b16 %v2170, %v2168
  %v2273 = vpack.c.b16 %v2173, %v2171
  %v2274 = vpack.c.b16 %v2174, %v2172
  %v2275 = vpack.c.b16 %v2177, %v2175
  %v2276 = vpack.c.b16 %v2178, %v2176
  %v2277 = vpack.c.b16 %v2181, %v2179
  %v2278 = vpack.c.b16 %v2182, %v2180
  %v2279 = vpack.c.b16 %v2185, %v2183
  %v2280 = vpack.c.b16 %v2186, %v2184
  %v2281 = vpack.c.b16 %v2189, %v2187
  %v2282 = vpack.c.b16 %v2190, %v2188
  %v2283 = vpack.c.b16 %v2193, %v2191
  %v2284 = vpack.c.b16 %v2194, %v2192
  %v2285 = vpack.c.b16 %v2197, %v2195
  %v2286 = vpack.c.b16 %v2198, %v2196
  %v2287 = vpack.c.b16 %v2201, %v2199
  %v2288 = vpack.c.b16 %v2202, %v2200
  %v2289 = vpack.c.b16 %v2205, %v2203
  %v2290 = vpack.c.b16 %v2206, %v2204
  %v2291 = vpack.c.b16 %v2209, %v2207
  %v2292 = vpack.c.b16 %v2210, %v2208
  %v2293 = vpack.c.b16 %v2213, %v2211
  %v2294 = vpack.c.b16 %v2214, %v2212
  %v2295 = vpack.c.b16 %v2217, %v2215
  %v2296 = vpack.c.b16 %v2218, %v2216
  %v2297 = vpack.c.b16 %v2221, %v2219
  %v2298 = vpack.c.b16 %v2222, %v2220
  %v2299 = vpack.c.b16 %v2225, %v2223
  %v2300 = vpack.c.b16 %v2226, %v2224
  %v2301 = vpack.c.b16 %v2229, %v2227
  %v2302 = vpack.c.b16 %v2230, %v2228
  %v2303 = vpack.c.b16 %v2233, %v2231
  %v2304 = vpack.c.b16 %v2234, %v2232
  %v2305 = vpack.c.b16 %v2237, %v2235
  %v2306 = vpack.c.b16 %v2238, %v2236
  %v2307 = vpack.c.b16 %v2241, %v2239
  %v2308 = vpack.c.b16 %v2242, %v2240
  %v2309 = vpack.c.b16 %v2245, %v2243
  %v2310 = vpack.c.b16 %v2246, %v2244
  %2375 = vmatprep.subr.bf16.mxu0 %v2248
  %2376 = vmatpush1.bf16.msra.mxu0 %v2247
  %2377 = vmatprep.subr.bf16.mxu0 %v2250
  %2378 = vmatpush1.bf16.msra.mxu0 %v2249
  %2379 = vmatprep.subr.bf16.mxu0 %v2252
  %2380 = vmatpush1.bf16.msra.mxu0 %v2251
  %2381 = vmatprep.subr.bf16.mxu0 %v2254
  %2382 = vmatpush1.bf16.msra.mxu0 %v2253
  %2383 = vmatprep.subr.bf16.mxu0 %v2256
  %2384 = vmatpush1.bf16.msra.mxu0 %v2255
  %2385 = vmatprep.subr.bf16.mxu0 %v2258
  %2386 = vmatpush1.bf16.msra.mxu0 %v2257
  %2387 = vmatprep.subr.bf16.mxu0 %v2260
  %2388 = vmatpush1.bf16.msra.mxu0 %v2259
  %2389 = vmatprep.subr.bf16.mxu0 %v2262
  %2390 = vmatpush1.bf16.msra.mxu0 %v2261
  %2391 = vmatprep.subr.bf16.mxu0 %v2264
  %2392 = vmatpush1.bf16.msra.mxu0 %v2263
  %2393 = vmatprep.subr.bf16.mxu0 %v2266
  %2394 = vmatpush1.bf16.msra.mxu0 %v2265
  %2395 = vmatprep.subr.bf16.mxu0 %v2268
  %2396 = vmatpush1.bf16.msra.mxu0 %v2267
  %2397 = vmatprep.subr.bf16.mxu0 %v2270
  %2398 = vmatpush1.bf16.msra.mxu0 %v2269
  %2399 = vmatprep.subr.bf16.mxu0 %v2272
  %2400 = vmatpush1.bf16.msra.mxu0 %v2271
  %2401 = vmatprep.subr.bf16.mxu0 %v2274
  %2402 = vmatpush1.bf16.msra.mxu0 %v2273
  %2403 = vmatprep.subr.bf16.mxu0 %v2276
  %2404 = vmatpush1.bf16.msra.mxu0 %v2275
  %2405 = vmatprep.subr.bf16.mxu0 %v2278
  %2406 = vmatpush1.bf16.msra.mxu0 %v2277
  %2407 = vmatprep.mubr.bf16.mxu0 %v1976
  %2408 = vmatmul.mubr.bf16.gmra.mrb[0].mxu0 %v1975
  %v2409 = vpop.f32.mrb[0].mxu0
  %v2410 = vadd.f32 %v2048, %v2409
  %v2411 = vpop.f32.mrb[0].mxu0
  %v2412 = vadd.f32 %v2052, %v2411
  %v2413 = vpop.f32.mrb[0].mxu0
  %v2414 = vpop.f32.mrb[0].mxu0
  %2415 = vdwg.mxu0
  %2416 = vmatprep.subr.bf16.mxu0 %v2280
  %2417 = vmatpush1.bf16.msra.mxu0 %v2279
  %2418 = vmatprep.subr.bf16.mxu0 %v2282
  %2419 = vmatpush1.bf16.msra.mxu0 %v2281
  %2420 = vmatprep.subr.bf16.mxu0 %v2284
  %2421 = vmatpush1.bf16.msra.mxu0 %v2283
  %2422 = vmatprep.subr.bf16.mxu0 %v2286
  %2423 = vmatpush1.bf16.msra.mxu0 %v2285
  %2424 = vmatprep.subr.bf16.mxu0 %v2288
  %2425 = vmatpush1.bf16.msra.mxu0 %v2287
  %2426 = vmatprep.subr.bf16.mxu0 %v2290
  %2427 = vmatpush1.bf16.msra.mxu0 %v2289
  %2428 = vmatprep.subr.bf16.mxu0 %v2292
  %2429 = vmatpush1.bf16.msra.mxu0 %v2291
  %2430 = vmatprep.subr.bf16.mxu0 %v2294
  %2431 = vmatpush1.bf16.msra.mxu0 %v2293
  %2432 = vmatprep.subr.bf16.mxu0 %v2296
  %2433 = vmatpush1.bf16.msra.mxu0 %v2295
  %2434 = vmatprep.subr.bf16.mxu0 %v2298
  %2435 = vmatpush1.bf16.msra.mxu0 %v2297
  %2436 = vmatprep.subr.bf16.mxu0 %v2300
  %2437 = vmatpush1.bf16.msra.mxu0 %v2299
  %2438 = vmatprep.subr.bf16.mxu0 %v2302
  %2439 = vmatpush1.bf16.msra.mxu0 %v2301
  %2440 = vmatprep.subr.bf16.mxu0 %v2304
  %2441 = vmatpush1.bf16.msra.mxu0 %v2303
  %2442 = vmatprep.subr.bf16.mxu0 %v2306
  %2443 = vmatpush1.bf16.msra.mxu0 %v2305
  %2444 = vmatprep.subr.bf16.mxu0 %v2308
  %2445 = vmatpush1.bf16.msra.mxu0 %v2307
  %2446 = vmatprep.subr.bf16.mxu0 %v2310
  %2447 = vmatpush1.bf16.msra.mxu0 %v2309
  %2448 = vmatprep.mubr.bf16.mxu0 %v1978
  %2449 = vmatmul.mubr.bf16.gmra.mrb[0].mxu0 %v1977
  %v2450 = vpop.f32.mrb[0].mxu0
  %v2451 = vadd.f32 %v2410, %v2450
  %v2452 = vpop.f32.mrb[0].mxu0
  %v2453 = vadd.f32 %v2412, %v2452
  %v2454 = vpop.f32.mrb[0].mxu0
  %v2455 = vpop.f32.mrb[0].mxu0
  %2456 = vdwg.mxu0
  %v2457 = vtanh.pop %v2451
  %v2458 = vtanh.pop %v2453
  %v2459 = vpack.c.bf16 %v2457, %v2457
  %v2460 = vpack.c.bf16 %v2458, %v2458
  %v2461 = vld [vmem:[%s5] sm:$0xff]
  %v2462 = vld [vmem:[%s5 + $0x8] sm:$0xff]
  %v2463 = vld [vmem:[%s5 + $0x10] sm:$0xff]
  %v2464 = vld [vmem:[%s5 + $0x18] sm:$0xff]
  %v2465 = vld [vmem:[%s5 + $0x20] sm:$0xff]
  %v2466 = vld [vmem:[%s5 + $0x28] sm:$0xff]
  %v2467 = vld [vmem:[%s5 + $0x30] sm:$0xff]
  %v2468 = vld [vmem:[%s5 + $0x38] sm:$0xff]
  %v2469 = vld [vmem:[%s5 + $0x40] sm:$0xff]
  %v2470 = vld [vmem:[%s5 + $0x48] sm:$0xff]
  %v2471 = vld [vmem:[%s5 + $0x50] sm:$0xff]
  %v2472 = vld [vmem:[%s5 + $0x58] sm:$0xff]
  %v2473 = vld [vmem:[%s5 + $0x60] sm:$0xff]
  %v2474 = vld [vmem:[%s5 + $0x68] sm:$0xff]
  %v2475 = vld [vmem:[%s5 + $0x70] sm:$0xff]
  %v2476 = vld [vmem:[%s5 + $0x78] sm:$0xff]
  %v2477 = vld [vmem:[%s5 + $0x80] sm:$0xff]
  %v2478 = vld [vmem:[%s5 + $0x88] sm:$0xff]
  %v2479 = vld [vmem:[%s5 + $0x90] sm:$0xff]
  %v2480 = vld [vmem:[%s5 + $0x98] sm:$0xff]
  %v2481 = vld [vmem:[%s5 + $0xa0] sm:$0xff]
  %v2482 = vld [vmem:[%s5 + $0xa8] sm:$0xff]
  %v2483 = vld [vmem:[%s5 + $0xb0] sm:$0xff]
  %v2484 = vld [vmem:[%s5 + $0xb8] sm:$0xff]
  %v2485 = vld [vmem:[%s5 + $0xc0] sm:$0xff]
  %v2486 = vld [vmem:[%s5 + $0xc8] sm:$0xff]
  %v2487 = vld [vmem:[%s5 + $0xd0] sm:$0xff]
  %v2488 = vld [vmem:[%s5 + $0xd8] sm:$0xff]
  %v2489 = vld [vmem:[%s5 + $0xe0] sm:$0xff]
  %v2490 = vld [vmem:[%s5 + $0xe8] sm:$0xff]
  %v2491 = vld [vmem:[%s5 + $0xf0] sm:$0xff]
  %v2492 = vld [vmem:[%s5 + $0xf8] sm:$0xff]
  %v2493 = vld [vmem:[%s6] sm:$0x3]
  %v2495 = vlaneseq
  %v2496 = vshrl.u32 %v2495, 7
  %v2497 = vsub.s32 0, %v2496
  %v2498 = vrot.slane %v2493, %v2497
  %v2499 = vlaneseq
  %v2500 = vshrl.u32 %v2499, 7
  %v2501 = vsub.s32 1, %v2500
  %v2502 = vrot.slane %v2493, %v2501
  %v2537 = vunpack.c.l.b16 %v2461
  %v2538 = vunpack.c.h.b16 %v2461
  %v2539 = vunpack.c.l.b16 %v2462
  %v2540 = vunpack.c.h.b16 %v2462
  %v2541 = vunpack.c.l.b16 %v2463
  %v2542 = vunpack.c.h.b16 %v2463
  %v2543 = vunpack.c.l.b16 %v2464
  %v2544 = vunpack.c.h.b16 %v2464
  %v2545 = vunpack.c.l.b16 %v2465
  %v2546 = vunpack.c.h.b16 %v2465
  %v2547 = vunpack.c.l.b16 %v2466
  %v2548 = vunpack.c.h.b16 %v2466
  %v2549 = vunpack.c.l.b16 %v2467
  %v2550 = vunpack.c.h.b16 %v2467
  %v2551 = vunpack.c.l.b16 %v2468
  %v2552 = vunpack.c.h.b16 %v2468
  %v2553 = vunpack.c.l.b16 %v2469
  %v2554 = vunpack.c.h.b16 %v2469
  %v2555 = vunpack.c.l.b16 %v2470
  %v2556 = vunpack.c.h.b16 %v2470
  %v2557 = vunpack.c.l.b16 %v2471
  %v2558 = vunpack.c.h.b16 %v2471
  %v2559 = vunpack.c.l.b16 %v2472
  %v2560 = vunpack.c.h.b16 %v2472
  %v2561 = vunpack.c.l.b16 %v2473
  %v2562 = vunpack.c.h.b16 %v2473
  %v2563 = vunpack.c.l.b16 %v2474
  %v2564 = vunpack.c.h.b16 %v2474
  %v2565 = vunpack.c.l.b16 %v2475
  %v2566 = vunpack.c.h.b16 %v2475
  %v2567 = vunpack.c.l.b16 %v2476
  %v2568 = vunpack.c.h.b16 %v2476
  %v2569 = vunpack.c.l.b16 %v2477
  %v2570 = vunpack.c.h.b16 %v2477
  %v2571 = vunpack.c.l.b16 %v2478
  %v2572 = vunpack.c.h.b16 %v2478
  %v2573 = vunpack.c.l.b16 %v2479
  %v2574 = vunpack.c.h.b16 %v2479
  %v2575 = vunpack.c.l.b16 %v2480
  %v2576 = vunpack.c.h.b16 %v2480
  %v2577 = vunpack.c.l.b16 %v2481
  %v2578 = vunpack.c.h.b16 %v2481
  %v2579 = vunpack.c.l.b16 %v2482
  %v2580 = vunpack.c.h.b16 %v2482
  %v2581 = vunpack.c.l.b16 %v2483
  %v2582 = vunpack.c.h.b16 %v2483
  %v2583 = vunpack.c.l.b16 %v2484
  %v2584 = vunpack.c.h.b16 %v2484
  %v2585 = vunpack.c.l.b16 %v2485
  %v2586 = vunpack.c.h.b16 %v2485
  %v2587 = vunpack.c.l.b16 %v2486
  %v2588 = vunpack.c.h.b16 %v2486
  %v2589 = vunpack.c.l.b16 %v2487
  %v2590 = vunpack.c.h.b16 %v2487
  %v2591 = vunpack.c.l.b16 %v2488
  %v2592 = vunpack.c.h.b16 %v2488
  %v2593 = vunpack.c.l.b16 %v2489
  %v2594 = vunpack.c.h.b16 %v2489
  %v2595 = vunpack.c.l.b16 %v2490
  %v2596 = vunpack.c.h.b16 %v2490
  %v2597 = vunpack.c.l.b16 %v2491
  %v2598 = vunpack.c.h.b16 %v2491
  %v2599 = vunpack.c.l.b16 %v2492
  %v2600 = vunpack.c.h.b16 %v2492
  %v2601 = vpack.c.b16 %v2539, %v2537
  %v2602 = vpack.c.b16 %v2540, %v2538
  %v2603 = vpack.c.b16 %v2543, %v2541
  %v2604 = vpack.c.b16 %v2544, %v2542
  %v2605 = vpack.c.b16 %v2547, %v2545
  %v2606 = vpack.c.b16 %v2548, %v2546
  %v2607 = vpack.c.b16 %v2551, %v2549
  %v2608 = vpack.c.b16 %v2552, %v2550
  %v2609 = vpack.c.b16 %v2555, %v2553
  %v2610 = vpack.c.b16 %v2556, %v2554
  %v2611 = vpack.c.b16 %v2559, %v2557
  %v2612 = vpack.c.b16 %v2560, %v2558
  %v2613 = vpack.c.b16 %v2563, %v2561
  %v2614 = vpack.c.b16 %v2564, %v2562
  %v2615 = vpack.c.b16 %v2567, %v2565
  %v2616 = vpack.c.b16 %v2568, %v2566
  %v2617 = vpack.c.b16 %v2571, %v2569
  %v2618 = vpack.c.b16 %v2572, %v2570
  %v2619 = vpack.c.b16 %v2575, %v2573
  %v2620 = vpack.c.b16 %v2576, %v2574
  %v2621 = vpack.c.b16 %v2579, %v2577
  %v2622 = vpack.c.b16 %v2580, %v2578
  %v2623 = vpack.c.b16 %v2583, %v2581
  %v2624 = vpack.c.b16 %v2584, %v2582
  %v2625 = vpack.c.b16 %v2587, %v2585
  %v2626 = vpack.c.b16 %v2588, %v2586
  %v2627 = vpack.c.b16 %v2591, %v2589
  %v2628 = vpack.c.b16 %v2592, %v2590
  %v2629 = vpack.c.b16 %v2595, %v2593
  %v2630 = vpack.c.b16 %v2596, %v2594
  %v2631 = vpack.c.b16 %v2599, %v2597
  %v2632 = vpack.c.b16 %v2600, %v2598
  %2665 = vmatprep.subr.bf16.mxu0 %v2602
  %2666 = vmatpush1.bf16.msra.mxu0 %v2601
  %2667 = vmatprep.subr.bf16.mxu0 %v2604
  %2668 = vmatpush1.bf16.msra.mxu0 %v2603
  %2669 = vmatprep.subr.bf16.mxu0 %v2606
  %2670 = vmatpush1.bf16.msra.mxu0 %v2605
  %2671 = vmatprep.subr.bf16.mxu0 %v2608
  %2672 = vmatpush1.bf16.msra.mxu0 %v2607
  %2673 = vmatprep.subr.bf16.mxu0 %v2610
  %2674 = vmatpush1.bf16.msra.mxu0 %v2609
  %2675 = vmatprep.subr.bf16.mxu0 %v2612
  %2676 = vmatpush1.bf16.msra.mxu0 %v2611
  %2677 = vmatprep.subr.bf16.mxu0 %v2614
  %2678 = vmatpush1.bf16.msra.mxu0 %v2613
  %2679 = vmatprep.subr.bf16.mxu0 %v2616
  %2680 = vmatpush1.bf16.msra.mxu0 %v2615
  %2681 = vmatprep.subr.bf16.mxu0 %v2618
  %2682 = vmatpush1.bf16.msra.mxu0 %v2617
  %2683 = vmatprep.subr.bf16.mxu0 %v2620
  %2684 = vmatpush1.bf16.msra.mxu0 %v2619
  %2685 = vmatprep.subr.bf16.mxu0 %v2622
  %2686 = vmatpush1.bf16.msra.mxu0 %v2621
  %2687 = vmatprep.subr.bf16.mxu0 %v2624
  %2688 = vmatpush1.bf16.msra.mxu0 %v2623
  %2689 = vmatprep.subr.bf16.mxu0 %v2626
  %2690 = vmatpush1.bf16.msra.mxu0 %v2625
  %2691 = vmatprep.subr.bf16.mxu0 %v2628
  %2692 = vmatpush1.bf16.msra.mxu0 %v2627
  %2693 = vmatprep.subr.bf16.mxu0 %v2630
  %2694 = vmatpush1.bf16.msra.mxu0 %v2629
  %2695 = vmatprep.subr.bf16.mxu0 %v2632
  %2696 = vmatpush1.bf16.msra.mxu0 %v2631
  %2697 = vmatprep.mubr.bf16.mxu0 %v2460
  %2698 = vmatmul.mubr.bf16.gmra.mrb[0].mxu0 %v2459
  %v2699 = vpop.f32.mrb[0].mxu0
  %v2700 = vadd.f32 %v2498, %v2699
  %v2701 = vpop.f32.mrb[0].mxu0
  %v2702 = vadd.f32 %v2502, %v2701
  %v2703 = vpop.f32.mrb[0].mxu0
  %v2704 = vpop.f32.mrb[0].mxu0
  %2705 = vdwg.mxu0
  %v2706 = vld [vmem:[%s7] sm:$0x3]
  %v2708 = vlaneseq
  %v2709 = vshrl.u32 %v2708, 7
  %v2710 = vsub.s32 0, %v2709
  %v2711 = vrot.slane %v2706, %v2710
  %v2712 = vlaneseq
  %v2713 = vshrl.u32 %v2712, 7
  %v2714 = vsub.s32 1, %v2713
  %v2715 = vrot.slane %v2706, %v2714
  %v2718 = vadd.f32 %v2700, %v2711
  %v2719 = vadd.f32 %v2702, %v2715
  %v2722 = vcombine.low %v2718, %v2719
  %v2724 = vunpack.c.l.s4 1983009808
  %v2725 = vunpack.c.0.s8 %v2724
  %v2726 = vlaneseq
  %v2727 = vshrl.u32 %v2726, 7
  %v2728 = vsub.s32 %v2725, %v2727
  %v2729 = vrot.slane %v2722, %v2728
  %2731 = vst [vmem:[%s8] sm:$0xf] %v2729
  // Predicated region
  $region34: #{stnkd_forward.3} parent=0 // pred_check
    _
  $region35: #{stnkd_forward.3} parent=0 // pred_check_branch
    %2733 = sbr.rel (0) target = $region37
  $region36: #{stnkd_forward.3} parent=0 // pred_region
    _
  $region37: #{stnkd_forward.3} parent=0 // pred_fallthru
    _
  // Predicated region
  $region38: #{stnkd_forward.3} parent=0 // pred_check
    _
  $region39: #{stnkd_forward.3} parent=0 // pred_check_branch
    %2735 = sbr.rel (0) target = $region41
  $region40: #{stnkd_forward.3} parent=0 // pred_region
    _
  $region41: #{stnkd_forward.3} parent=0 // pred_fallthru
    _

</llo_original>
